<compile_context>
chip_gen: v5e
topology: v5e:2x2
jax: 0.10.0
libtpu: 0.0.40
codegen_flags: <defaults>
</compile_context>

<pallas_src>
import jax
import jax.numpy as jnp
from jax import lax
from jax.experimental import pallas as pl
from jax.experimental.pallas import tpu as pltpu


_DIMS = (1, 4, 9, 16, 9, 4, 1)
_NEG_SLOPE = 0.1
_SUBLANES = 8                 # f32 sublane tile height
_CHUNK = 128                  # lanes per compute chunk (one vreg per feature row)
_UNIT = _SUBLANES * _CHUNK    # 1024 batch elements: minimal f32 tile
_MAX_CHUNKS_PER_STEP = 16     # up to 8 x 2048 = 16384 batch elements per grid step


def _param_layout():
    """Static offsets of each layer's W [in,out] and b [out] in the packed slab."""
    layout = []
    off = 0
    for l in range(len(_DIMS) - 1):
        fi, fo = _DIMS[l], _DIMS[l + 1]
        layout.append((off, off + fi * fo, fi, fo))
        off += fi * fo + fo
    return tuple(layout), off


_LAYOUT, _NPARAMS = _param_layout()   # _NPARAMS == 411


def mlp_kernel(wb_ref, x_ref, o_ref):
    """Six dense layers as per-output-feature VPU multiply-adds.

    wb_ref : VMEM f32[_NPARAMS, 8, 128] pre-broadcast weight/bias tiles
             (constant index_map -> fetched once per launch, resident).
    x_ref  : VMEM f32[8, lane_w]  one batch block, 1 input feature.
    o_ref  : VMEM f32[8, lane_w]  one batch block, 1 output feature.
    """
    n_chunks = x_ref.shape[1] // _CHUNK      # static: block width / 128
    n_layers = len(_LAYOUT)

    def chunk_body(c, carry):
        base = pl.multiple_of(c * _CHUNK, _CHUNK)    # 128-aligned lane offset
        rows = [x_ref[:, pl.ds(base, _CHUNK)]]       # layer-0: single feature row
        for li, (w_off, b_off, fi, fo) in enumerate(_LAYOUT):
            new_rows = []
            for j in range(fo):
                acc = wb_ref[b_off + j]              # bias tile: vld, no splat
                for i in range(fi):
                    # weight tile is a vld; multiply-add stays on the VALU
                    acc = acc + wb_ref[w_off + i * fo + j] * rows[i]
                if li < n_layers - 1:
                    # leaky_relu(x, 0.1) == max(x, 0.1*x) since 0 <= slope < 1
                    acc = jnp.maximum(acc, _NEG_SLOPE * acc)
                new_rows.append(acc)
            rows = new_rows
        o_ref[:, pl.ds(base, _CHUNK)] = rows[0]      # lane-dense unmasked store
        return carry

    # fori_loop (not a Python for) so per-chunk live vreg ranges are bounded.
    lax.fori_loop(0, n_chunks, chunk_body, 0)


def _choose_tiling(batch):
    """Pick (n_steps, chunks_per_step) for a given batch size.

    Large steps amortize the ~0.35us/grid-step overhead; >=2 (even) steps keep
    both v7x TensorCores busy under dimension_semantics=("parallel",). On
    v5e/v6e (1 TC) the even-step rule is harmless.
    """
    n_units = -(-batch // _UNIT)                      # 1024-elem units needed
    n_steps = -(-n_units // _MAX_CHUNKS_PER_STEP)
    if n_units >= 2:
        n_steps = max(n_steps, 2)
        if n_steps % 2:
            n_steps += 1                              # even split across 2 TCs
    chunks_per_step = -(-n_units // n_steps)
    return n_steps, chunks_per_step


def pack_params(params):
    """Pack [(W [in,out], b [out]), ...] into pre-broadcast (411, 8, 128) tiles.

    Each scalar parameter is broadcast once, here, to a full (8,128) f32 vreg
    tile so the kernel never issues a splat on the binding VALU slot.
    NOTE: weights are stored [in, out], the transpose of torch nn.Linear's
    [out, in]; transpose when importing a real torch state_dict.
    """
    flat = []
    for w, b in params:
        flat.append(jnp.asarray(w, jnp.float32).reshape(-1))
        flat.append(jnp.asarray(b, jnp.float32).reshape(-1))
    packed = jnp.concatenate(flat)
    assert packed.shape == (_NPARAMS,), packed.shape
    return jnp.broadcast_to(packed[:, None, None],
                            (_NPARAMS, _SUBLANES, _CHUNK))


def net_forward(x, wb):
    """x: [B, 1] float32; wb: f32[411, 8, 128] from pack_params. Returns [B, 1]."""
    x = jnp.asarray(x, jnp.float32)
    B = x.shape[0]
    n_steps, chunks_per_step = _choose_tiling(B)
    lane_w = chunks_per_step * _CHUNK
    Bp = n_steps * _SUBLANES * lane_w

    flat = x.reshape(B)
    if Bp != B:
        # TODO(synk): for very large B, pad only the last block instead of
        # materializing a full padded copy (minor; see review item 9).
        flat = jnp.pad(flat, (0, Bp - B))
    xt = flat.reshape(n_steps * _SUBLANES, lane_w)    # batch on (sublanes, lanes)

    out = pl.pallas_call(
        mlp_kernel,
        out_shape=jax.ShapeDtypeStruct(xt.shape, jnp.float32),
        grid=(n_steps,),
        in_specs=[
            # Pre-broadcast parameter tiles; constant block index -> single DMA
            # into VMEM at launch, resident across all grid steps.
            pl.BlockSpec((_NPARAMS, _SUBLANES, _CHUNK), lambda i: (0, 0, 0)),
            # One (8, lane_w) activation block per grid step (auto-pipelined).
            pl.BlockSpec((_SUBLANES, lane_w), lambda i: (i, 0)),
        ],
        out_specs=pl.BlockSpec((_SUBLANES, lane_w), lambda i: (i, 0)),
        compiler_params=pltpu.CompilerParams(
            # Only affects multi-TC parts (v7x); no-op but harmless on v5e/v6e.
            dimension_semantics=("parallel",),
        ),
    )(wb, xt)

    return out.reshape(Bp)[:B].reshape(B, 1)


def init_params(key):
    """Deterministic init matching nn.Linear shapes, stored as (W [in,out], b [out])."""
    params = []
    for i in range(len(_DIMS) - 1):
        fan_in, fan_out = _DIMS[i], _DIMS[i + 1]
        key, kw, kb = jax.random.split(key, 3)
        bound = 1.0 / (fan_in ** 0.5)
        w = jax.random.uniform(kw, (fan_in, fan_out), jnp.float32, -bound, bound)
        b = jax.random.uniform(kb, (fan_out,), jnp.float32, -bound, bound)
        params.append((w, b))
    return params


def reference_forward(x, params):
    h = jnp.asarray(x, jnp.float32)
    for i, (w, b) in enumerate(params):
        h = jnp.dot(h, w, precision=jax.lax.Precision.HIGHEST) + b
        if i < len(params) - 1:
            h = jnp.where(h > 0, h, _NEG_SLOPE * h)
    return h


if __name__ == "__main__":
    key = jax.random.PRNGKey(0)
    key, kx = jax.random.split(key)

    B = 5000  # deliberately not a multiple of the 1024-element tile
    x = jax.random.normal(kx, (B, 1), jnp.float32)

    params = init_params(key)
    wb = pack_params(params)

    fwd = jax.jit(net_forward)
    out = jax.block_until_ready(fwd(x, wb))

    ref = reference_forward(x, params)
    assert out.shape == (B, 1), out.shape
    err = float(jnp.max(jnp.abs(out - ref)))
    assert jnp.allclose(out, ref, atol=1e-5, rtol=1e-5), err

    print("KERNEL_OK")
</pallas_src>

<mosaic_0001>
module attributes {stable_mosaic.version = 11 : i64} {
  func.func @mlp_kernel(%arg0: i32, %arg1: memref<411x8x128xf32, #tpu.memory_space<vmem>>, %arg2: memref<8x384xf32, #tpu.memory_space<vmem>>, %arg3: memref<8x384xf32, #tpu.memory_space<vmem>>) attributes {dimension_semantics = [#tpu.dimension_semantics<parallel>], iteration_bounds = array<i64: 2>, scalar_prefetch = 0 : i64, scratch_operands = 0 : i64, tpu.core_type = #tpu.core_type<tc>, window_params = [{pipeline_mode = #tpu.pipeline_mode<synchronous>, transform_indices = @transform_0, window_bounds = array<i64: 411, 8, 128>}, {transform_indices = @transform_1, window_bounds = array<i64: 8, 384>}, {transform_indices = @transform_2, window_bounds = array<i64: 8, 384>}]} {
    %c0_i32 = arith.constant 0 : i32
    %c3_i32 = arith.constant 3 : i32
    %0 = arith.addi %c0_i32, %c3_i32 : i32
    %c1_i32 = arith.constant 1 : i32
    scf.for %arg4 = %c0_i32 to %0 step %c1_i32  : i32 {
      %c128_i32 = arith.constant 128 : i32
      %1 = arith.muli %arg4, %c128_i32 : i32
      %2 = tpu.assume_multiple %1, 128 : i32
      %c0 = arith.constant 0 : index
      %3 = arith.index_cast %2 : i32 to index
      %4 = vector.load %arg2[%c0, %3] : memref<8x384xf32, #tpu.memory_space<vmem>>, vector<8x128xf32>
      %c4 = arith.constant 4 : index
      %c0_1 = arith.constant 0 : index
      %c0_2 = arith.constant 0 : index
      %5 = vector.load %arg1[%c4, %c0_1, %c0_2] : memref<411x8x128xf32, #tpu.memory_space<vmem>>, vector<1x8x128xf32>
      %6 = vector.shape_cast %5 : vector<1x8x128xf32> to vector<8x128xf32>
      %c0_3 = arith.constant 0 : index
      %c0_4 = arith.constant 0 : index
      %c0_5 = arith.constant 0 : index
      %7 = vector.load %arg1[%c0_3, %c0_4, %c0_5] : memref<411x8x128xf32, #tpu.memory_space<vmem>>, vector<1x8x128xf32>
      %8 = vector.shape_cast %7 : vector<1x8x128xf32> to vector<8x128xf32>
      %9 = arith.mulf %8, %4 : vector<8x128xf32>
      %10 = arith.addf %6, %9 : vector<8x128xf32>
      %cst = arith.constant 1.000000e-01 : f32
      %11 = vector.broadcast %cst : f32 to vector<8x128xf32>
      %12 = arith.mulf %11, %10 : vector<8x128xf32>
      %13 = arith.maximumf %10, %12 : vector<8x128xf32>
      %c5 = arith.constant 5 : index
      %c0_6 = arith.constant 0 : index
      %c0_7 = arith.constant 0 : index
      %14 = vector.load %arg1[%c5, %c0_6, %c0_7] : memref<411x8x128xf32, #tpu.memory_space<vmem>>, vector<1x8x128xf32>
      %15 = vector.shape_cast %14 : vector<1x8x128xf32> to vector<8x128xf32>
      %c1 = arith.constant 1 : index
      %c0_8 = arith.constant 0 : index
      %c0_9 = arith.constant 0 : index
      %16 = vector.load %arg1[%c1, %c0_8, %c0_9] : memref<411x8x128xf32, #tpu.memory_space<vmem>>, vector<1x8x128xf32>
      %17 = vector.shape_cast %16 : vector<1x8x128xf32> to vector<8x128xf32>
      %18 = arith.mulf %17, %4 : vector<8x128xf32>
      %19 = arith.addf %15, %18 : vector<8x128xf32>
      %cst_10 = arith.constant 1.000000e-01 : f32
      %20 = vector.broadcast %cst_10 : f32 to vector<8x128xf32>
      %21 = arith.mulf %20, %19 : vector<8x128xf32>
      %22 = arith.maximumf %19, %21 : vector<8x128xf32>
      %c6 = arith.constant 6 : index
      %c0_11 = arith.constant 0 : index
      %c0_12 = arith.constant 0 : index
      %23 = vector.load %arg1[%c6, %c0_11, %c0_12] : memref<411x8x128xf32, #tpu.memory_space<vmem>>, vector<1x8x128xf32>
      %24 = vector.shape_cast %23 : vector<1x8x128xf32> to vector<8x128xf32>
      %c2 = arith.constant 2 : index
      %c0_13 = arith.constant 0 : index
      %c0_14 = arith.constant 0 : index
      %25 = vector.load %arg1[%c2, %c0_13, %c0_14] : memref<411x8x128xf32, #tpu.memory_space<vmem>>, vector<1x8x128xf32>
      %26 = vector.shape_cast %25 : vector<1x8x128xf32> to vector<8x128xf32>
      %27 = arith.mulf %26, %4 : vector<8x128xf32>
      %28 = arith.addf %24, %27 : vector<8x128xf32>
      %cst_15 = arith.constant 1.000000e-01 : f32
      %29 = vector.broadcast %cst_15 : f32 to vector<8x128xf32>
      %30 = arith.mulf %29, %28 : vector<8x128xf32>
      %31 = arith.maximumf %28, %30 : vector<8x128xf32>
      %c7 = arith.constant 7 : index
      %c0_16 = arith.constant 0 : index
      %c0_17 = arith.constant 0 : index
      %32 = vector.load %arg1[%c7, %c0_16, %c0_17] : memref<411x8x128xf32, #tpu.memory_space<vmem>>, vector<1x8x128xf32>
      %33 = vector.shape_cast %32 : vector<1x8x128xf32> to vector<8x128xf32>
      %c3 = arith.constant 3 : index
      %c0_18 = arith.constant 0 : index
      %c0_19 = arith.constant 0 : index
      %34 = vector.load %arg1[%c3, %c0_18, %c0_19] : memref<411x8x128xf32, #tpu.memory_space<vmem>>, vector<1x8x128xf32>
      %35 = vector.shape_cast %34 : vector<1x8x128xf32> to vector<8x128xf32>
      %36 = arith.mulf %35, %4 : vector<8x128xf32>
      %37 = arith.addf %33, %36 : vector<8x128xf32>
      %cst_20 = arith.constant 1.000000e-01 : f32
      %38 = vector.broadcast %cst_20 : f32 to vector<8x128xf32>
      %39 = arith.mulf %38, %37 : vector<8x128xf32>
      %40 = arith.maximumf %37, %39 : vector<8x128xf32>
      %c44 = arith.constant 44 : index
      %c0_21 = arith.constant 0 : index
      %c0_22 = arith.constant 0 : index
      %41 = vector.load %arg1[%c44, %c0_21, %c0_22] : memref<411x8x128xf32, #tpu.memory_space<vmem>>, vector<1x8x128xf32>
      %42 = vector.shape_cast %41 : vector<1x8x128xf32> to vector<8x128xf32>
      %c8 = arith.constant 8 : index
      %c0_23 = arith.constant 0 : index
      %c0_24 = arith.constant 0 : index
      %43 = vector.load %arg1[%c8, %c0_23, %c0_24] : memref<411x8x128xf32, #tpu.memory_space<vmem>>, vector<1x8x128xf32>
      %44 = vector.shape_cast %43 : vector<1x8x128xf32> to vector<8x128xf32>
      %45 = arith.mulf %44, %13 : vector<8x128xf32>
      %46 = arith.addf %42, %45 : vector<8x128xf32>
      %c17 = arith.constant 17 : index
      %c0_25 = arith.constant 0 : index
      %c0_26 = arith.constant 0 : index
      %47 = vector.load %arg1[%c17, %c0_25, %c0_26] : memref<411x8x128xf32, #tpu.memory_space<vmem>>, vector<1x8x128xf32>
      %48 = vector.shape_cast %47 : vector<1x8x128xf32> to vector<8x128xf32>
      %49 = arith.mulf %48, %22 : vector<8x128xf32>
      %50 = arith.addf %46, %49 : vector<8x128xf32>
      %c26 = arith.constant 26 : index
      %c0_27 = arith.constant 0 : index
      %c0_28 = arith.constant 0 : index
      %51 = vector.load %arg1[%c26, %c0_27, %c0_28] : memref<411x8x128xf32, #tpu.memory_space<vmem>>, vector<1x8x128xf32>
      %52 = vector.shape_cast %51 : vector<1x8x128xf32> to vector<8x128xf32>
      %53 = arith.mulf %52, %31 : vector<8x128xf32>
      %54 = arith.addf %50, %53 : vector<8x128xf32>
      %c35 = arith.constant 35 : index
      %c0_29 = arith.constant 0 : index
      %c0_30 = arith.constant 0 : index
      %55 = vector.load %arg1[%c35, %c0_29, %c0_30] : memref<411x8x128xf32, #tpu.memory_space<vmem>>, vector<1x8x128xf32>
      %56 = vector.shape_cast %55 : vector<1x8x128xf32> to vector<8x128xf32>
      %57 = arith.mulf %56, %40 : vector<8x128xf32>
      %58 = arith.addf %54, %57 : vector<8x128xf32>
      %cst_31 = arith.constant 1.000000e-01 : f32
      %59 = vector.broadcast %cst_31 : f32 to vector<8x128xf32>
      %60 = arith.mulf %59, %58 : vector<8x128xf32>
      %61 = arith.maximumf %58, %60 : vector<8x128xf32>
      %c45 = arith.constant 45 : index
      %c0_32 = arith.constant 0 : index
      %c0_33 = arith.constant 0 : index
      %62 = vector.load %arg1[%c45, %c0_32, %c0_33] : memref<411x8x128xf32, #tpu.memory_space<vmem>>, vector<1x8x128xf32>
      %63 = vector.shape_cast %62 : vector<1x8x128xf32> to vector<8x128xf32>
      %c9 = arith.constant 9 : index
      %c0_34 = arith.constant 0 : index
      %c0_35 = arith.constant 0 : index
      %64 = vector.load %arg1[%c9, %c0_34, %c0_35] : memref<411x8x128xf32, #tpu.memory_space<vmem>>, vector<1x8x128xf32>
      %65 = vector.shape_cast %64 : vector<1x8x128xf32> to vector<8x128xf32>
      %66 = arith.mulf %65, %13 : vector<8x128xf32>
      %67 = arith.addf %63, %66 : vector<8x128xf32>
      %c18 = arith.constant 18 : index
      %c0_36 = arith.constant 0 : index
      %c0_37 = arith.constant 0 : index
      %68 = vector.load %arg1[%c18, %c0_36, %c0_37] : memref<411x8x128xf32, #tpu.memory_space<vmem>>, vector<1x8x128xf32>
      %69 = vector.shape_cast %68 : vector<1x8x128xf32> to vector<8x128xf32>
      %70 = arith.mulf %69, %22 : vector<8x128xf32>
      %71 = arith.addf %67, %70 : vector<8x128xf32>
      %c27 = arith.constant 27 : index
      %c0_38 = arith.constant 0 : index
      %c0_39 = arith.constant 0 : index
      %72 = vector.load %arg1[%c27, %c0_38, %c0_39] : memref<411x8x128xf32, #tpu.memory_space<vmem>>, vector<1x8x128xf32>
      %73 = vector.shape_cast %72 : vector<1x8x128xf32> to vector<8x128xf32>
      %74 = arith.mulf %73, %31 : vector<8x128xf32>
      %75 = arith.addf %71, %74 : vector<8x128xf32>
      %c36 = arith.constant 36 : index
      %c0_40 = arith.constant 0 : index
      %c0_41 = arith.constant 0 : index
      %76 = vector.load %arg1[%c36, %c0_40, %c0_41] : memref<411x8x128xf32, #tpu.memory_space<vmem>>, vector<1x8x128xf32>
      %77 = vector.shape_cast %76 : vector<1x8x128xf32> to vector<8x128xf32>
      %78 = arith.mulf %77, %40 : vector<8x128xf32>
      %79 = arith.addf %75, %78 : vector<8x128xf32>
      %cst_42 = arith.constant 1.000000e-01 : f32
      %80 = vector.broadcast %cst_42 : f32 to vector<8x128xf32>
      %81 = arith.mulf %80, %79 : vector<8x128xf32>
      %82 = arith.maximumf %79, %81 : vector<8x128xf32>
      %c46 = arith.constant 46 : index
      %c0_43 = arith.constant 0 : index
      %c0_44 = arith.constant 0 : index
      %83 = vector.load %arg1[%c46, %c0_43, %c0_44] : memref<411x8x128xf32, #tpu.memory_space<vmem>>, vector<1x8x128xf32>
      %84 = vector.shape_cast %83 : vector<1x8x128xf32> to vector<8x128xf32>
      %c10 = arith.constant 10 : index
      %c0_45 = arith.constant 0 : index
      %c0_46 = arith.constant 0 : index
      %85 = vector.load %arg1[%c10, %c0_45, %c0_46] : memref<411x8x128xf32, #tpu.memory_space<vmem>>, vector<1x8x128xf32>
      %86 = vector.shape_cast %85 : vector<1x8x128xf32> to vector<8x128xf32>
      %87 = arith.mulf %86, %13 : vector<8x128xf32>
      %88 = arith.addf %84, %87 : vector<8x128xf32>
      %c19 = arith.constant 19 : index
      %c0_47 = arith.constant 0 : index
      %c0_48 = arith.constant 0 : index
      %89 = vector.load %arg1[%c19, %c0_47, %c0_48] : memref<411x8x128xf32, #tpu.memory_space<vmem>>, vector<1x8x128xf32>
      %90 = vector.shape_cast %89 : vector<1x8x128xf32> to vector<8x128xf32>
      %91 = arith.mulf %90, %22 : vector<8x128xf32>
      %92 = arith.addf %88, %91 : vector<8x128xf32>
      %c28 = arith.constant 28 : index
      %c0_49 = arith.constant 0 : index
      %c0_50 = arith.constant 0 : index
      %93 = vector.load %arg1[%c28, %c0_49, %c0_50] : memref<411x8x128xf32, #tpu.memory_space<vmem>>, vector<1x8x128xf32>
      %94 = vector.shape_cast %93 : vector<1x8x128xf32> to vector<8x128xf32>
      %95 = arith.mulf %94, %31 : vector<8x128xf32>
      %96 = arith.addf %92, %95 : vector<8x128xf32>
      %c37 = arith.constant 37 : index
      %c0_51 = arith.constant 0 : index
      %c0_52 = arith.constant 0 : index
      %97 = vector.load %arg1[%c37, %c0_51, %c0_52] : memref<411x8x128xf32, #tpu.memory_space<vmem>>, vector<1x8x128xf32>
      %98 = vector.shape_cast %97 : vector<1x8x128xf32> to vector<8x128xf32>
      %99 = arith.mulf %98, %40 : vector<8x128xf32>
      %100 = arith.addf %96, %99 : vector<8x128xf32>
      %cst_53 = arith.constant 1.000000e-01 : f32
      %101 = vector.broadcast %cst_53 : f32 to vector<8x128xf32>
      %102 = arith.mulf %101, %100 : vector<8x128xf32>
      %103 = arith.maximumf %100, %102 : vector<8x128xf32>
      %c47 = arith.constant 47 : index
      %c0_54 = arith.constant 0 : index
      %c0_55 = arith.constant 0 : index
      %104 = vector.load %arg1[%c47, %c0_54, %c0_55] : memref<411x8x128xf32, #tpu.memory_space<vmem>>, vector<1x8x128xf32>
      %105 = vector.shape_cast %104 : vector<1x8x128xf32> to vector<8x128xf32>
      %c11 = arith.constant 11 : index
      %c0_56 = arith.constant 0 : index
      %c0_57 = arith.constant 0 : index
      %106 = vector.load %arg1[%c11, %c0_56, %c0_57] : memref<411x8x128xf32, #tpu.memory_space<vmem>>, vector<1x8x128xf32>
      %107 = vector.shape_cast %106 : vector<1x8x128xf32> to vector<8x128xf32>
      %108 = arith.mulf %107, %13 : vector<8x128xf32>
      %109 = arith.addf %105, %108 : vector<8x128xf32>
      %c20 = arith.constant 20 : index
      %c0_58 = arith.constant 0 : index
      %c0_59 = arith.constant 0 : index
      %110 = vector.load %arg1[%c20, %c0_58, %c0_59] : memref<411x8x128xf32, #tpu.memory_space<vmem>>, vector<1x8x128xf32>
      %111 = vector.shape_cast %110 : vector<1x8x128xf32> to vector<8x128xf32>
      %112 = arith.mulf %111, %22 : vector<8x128xf32>
      %113 = arith.addf %109, %112 : vector<8x128xf32>
      %c29 = arith.constant 29 : index
      %c0_60 = arith.constant 0 : index
      %c0_61 = arith.constant 0 : index
      %114 = vector.load %arg1[%c29, %c0_60, %c0_61] : memref<411x8x128xf32, #tpu.memory_space<vmem>>, vector<1x8x128xf32>
      %115 = vector.shape_cast %114 : vector<1x8x128xf32> to vector<8x128xf32>
      %116 = arith.mulf %115, %31 : vector<8x128xf32>
      %117 = arith.addf %113, %116 : vector<8x128xf32>
      %c38 = arith.constant 38 : index
      %c0_62 = arith.constant 0 : index
      %c0_63 = arith.constant 0 : index
      %118 = vector.load %arg1[%c38, %c0_62, %c0_63] : memref<411x8x128xf32, #tpu.memory_space<vmem>>, vector<1x8x128xf32>
      %119 = vector.shape_cast %118 : vector<1x8x128xf32> to vector<8x128xf32>
      %120 = arith.mulf %119, %40 : vector<8x128xf32>
      %121 = arith.addf %117, %120 : vector<8x128xf32>
      %cst_64 = arith.constant 1.000000e-01 : f32
      %122 = vector.broadcast %cst_64 : f32 to vector<8x128xf32>
      %123 = arith.mulf %122, %121 : vector<8x128xf32>
      %124 = arith.maximumf %121, %123 : vector<8x128xf32>
      %c48 = arith.constant 48 : index
      %c0_65 = arith.constant 0 : index
      %c0_66 = arith.constant 0 : index
      %125 = vector.load %arg1[%c48, %c0_65, %c0_66] : memref<411x8x128xf32, #tpu.memory_space<vmem>>, vector<1x8x128xf32>
      %126 = vector.shape_cast %125 : vector<1x8x128xf32> to vector<8x128xf32>
      %c12 = arith.constant 12 : index
      %c0_67 = arith.constant 0 : index
      %c0_68 = arith.constant 0 : index
      %127 = vector.load %arg1[%c12, %c0_67, %c0_68] : memref<411x8x128xf32, #tpu.memory_space<vmem>>, vector<1x8x128xf32>
      %128 = vector.shape_cast %127 : vector<1x8x128xf32> to vector<8x128xf32>
      %129 = arith.mulf %128, %13 : vector<8x128xf32>
      %130 = arith.addf %126, %129 : vector<8x128xf32>
      %c21 = arith.constant 21 : index
      %c0_69 = arith.constant 0 : index
      %c0_70 = arith.constant 0 : index
      %131 = vector.load %arg1[%c21, %c0_69, %c0_70] : memref<411x8x128xf32, #tpu.memory_space<vmem>>, vector<1x8x128xf32>
      %132 = vector.shape_cast %131 : vector<1x8x128xf32> to vector<8x128xf32>
      %133 = arith.mulf %132, %22 : vector<8x128xf32>
      %134 = arith.addf %130, %133 : vector<8x128xf32>
      %c30 = arith.constant 30 : index
      %c0_71 = arith.constant 0 : index
      %c0_72 = arith.constant 0 : index
      %135 = vector.load %arg1[%c30, %c0_71, %c0_72] : memref<411x8x128xf32, #tpu.memory_space<vmem>>, vector<1x8x128xf32>
      %136 = vector.shape_cast %135 : vector<1x8x128xf32> to vector<8x128xf32>
      %137 = arith.mulf %136, %31 : vector<8x128xf32>
      %138 = arith.addf %134, %137 : vector<8x128xf32>
      %c39 = arith.constant 39 : index
      %c0_73 = arith.constant 0 : index
      %c0_74 = arith.constant 0 : index
      %139 = vector.load %arg1[%c39, %c0_73, %c0_74] : memref<411x8x128xf32, #tpu.memory_space<vmem>>, vector<1x8x128xf32>
      %140 = vector.shape_cast %139 : vector<1x8x128xf32> to vector<8x128xf32>
      %141 = arith.mulf %140, %40 : vector<8x128xf32>
      %142 = arith.addf %138, %141 : vector<8x128xf32>
      %cst_75 = arith.constant 1.000000e-01 : f32
      %143 = vector.broadcast %cst_75 : f32 to vector<8x128xf32>
      %144 = arith.mulf %143, %142 : vector<8x128xf32>
      %145 = arith.maximumf %142, %144 : vector<8x128xf32>
      %c49 = arith.constant 49 : index
      %c0_76 = arith.constant 0 : index
      %c0_77 = arith.constant 0 : index
      %146 = vector.load %arg1[%c49, %c0_76, %c0_77] : memref<411x8x128xf32, #tpu.memory_space<vmem>>, vector<1x8x128xf32>
      %147 = vector.shape_cast %146 : vector<1x8x128xf32> to vector<8x128xf32>
      %c13 = arith.constant 13 : index
      %c0_78 = arith.constant 0 : index
      %c0_79 = arith.constant 0 : index
      %148 = vector.load %arg1[%c13, %c0_78, %c0_79] : memref<411x8x128xf32, #tpu.memory_space<vmem>>, vector<1x8x128xf32>
      %149 = vector.shape_cast %148 : vector<1x8x128xf32> to vector<8x128xf32>
      %150 = arith.mulf %149, %13 : vector<8x128xf32>
      %151 = arith.addf %147, %150 : vector<8x128xf32>
      %c22 = arith.constant 22 : index
      %c0_80 = arith.constant 0 : index
      %c0_81 = arith.constant 0 : index
      %152 = vector.load %arg1[%c22, %c0_80, %c0_81] : memref<411x8x128xf32, #tpu.memory_space<vmem>>, vector<1x8x128xf32>
      %153 = vector.shape_cast %152 : vector<1x8x128xf32> to vector<8x128xf32>
      %154 = arith.mulf %153, %22 : vector<8x128xf32>
      %155 = arith.addf %151, %154 : vector<8x128xf32>
      %c31 = arith.constant 31 : index
      %c0_82 = arith.constant 0 : index
      %c0_83 = arith.constant 0 : index
      %156 = vector.load %arg1[%c31, %c0_82, %c0_83] : memref<411x8x128xf32, #tpu.memory_space<vmem>>, vector<1x8x128xf32>
      %157 = vector.shape_cast %156 : vector<1x8x128xf32> to vector<8x128xf32>
      %158 = arith.mulf %157, %31 : vector<8x128xf32>
      %159 = arith.addf %155, %158 : vector<8x128xf32>
      %c40 = arith.constant 40 : index
      %c0_84 = arith.constant 0 : index
      %c0_85 = arith.constant 0 : index
      %160 = vector.load %arg1[%c40, %c0_84, %c0_85] : memref<411x8x128xf32, #tpu.memory_space<vmem>>, vector<1x8x128xf32>
      %161 = vector.shape_cast %160 : vector<1x8x128xf32> to vector<8x128xf32>
      %162 = arith.mulf %161, %40 : vector<8x128xf32>
      %163 = arith.addf %159, %162 : vector<8x128xf32>
      %cst_86 = arith.constant 1.000000e-01 : f32
      %164 = vector.broadcast %cst_86 : f32 to vector<8x128xf32>
      %165 = arith.mulf %164, %163 : vector<8x128xf32>
      %166 = arith.maximumf %163, %165 : vector<8x128xf32>
      %c50 = arith.constant 50 : index
      %c0_87 = arith.constant 0 : index
      %c0_88 = arith.constant 0 : index
      %167 = vector.load %arg1[%c50, %c0_87, %c0_88] : memref<411x8x128xf32, #tpu.memory_space<vmem>>, vector<1x8x128xf32>
      %168 = vector.shape_cast %167 : vector<1x8x128xf32> to vector<8x128xf32>
      %c14 = arith.constant 14 : index
      %c0_89 = arith.constant 0 : index
      %c0_90 = arith.constant 0 : index
      %169 = vector.load %arg1[%c14, %c0_89, %c0_90] : memref<411x8x128xf32, #tpu.memory_space<vmem>>, vector<1x8x128xf32>
      %170 = vector.shape_cast %169 : vector<1x8x128xf32> to vector<8x128xf32>
      %171 = arith.mulf %170, %13 : vector<8x128xf32>
      %172 = arith.addf %168, %171 : vector<8x128xf32>
      %c23 = arith.constant 23 : index
      %c0_91 = arith.constant 0 : index
      %c0_92 = arith.constant 0 : index
      %173 = vector.load %arg1[%c23, %c0_91, %c0_92] : memref<411x8x128xf32, #tpu.memory_space<vmem>>, vector<1x8x128xf32>
      %174 = vector.shape_cast %173 : vector<1x8x128xf32> to vector<8x128xf32>
      %175 = arith.mulf %174, %22 : vector<8x128xf32>
      %176 = arith.addf %172, %175 : vector<8x128xf32>
      %c32 = arith.constant 32 : index
      %c0_93 = arith.constant 0 : index
      %c0_94 = arith.constant 0 : index
      %177 = vector.load %arg1[%c32, %c0_93, %c0_94] : memref<411x8x128xf32, #tpu.memory_space<vmem>>, vector<1x8x128xf32>
      %178 = vector.shape_cast %177 : vector<1x8x128xf32> to vector<8x128xf32>
      %179 = arith.mulf %178, %31 : vector<8x128xf32>
      %180 = arith.addf %176, %179 : vector<8x128xf32>
      %c41 = arith.constant 41 : index
      %c0_95 = arith.constant 0 : index
      %c0_96 = arith.constant 0 : index
      %181 = vector.load %arg1[%c41, %c0_95, %c0_96] : memref<411x8x128xf32, #tpu.memory_space<vmem>>, vector<1x8x128xf32>
      %182 = vector.shape_cast %181 : vector<1x8x128xf32> to vector<8x128xf32>
      %183 = arith.mulf %182, %40 : vector<8x128xf32>
      %184 = arith.addf %180, %183 : vector<8x128xf32>
      %cst_97 = arith.constant 1.000000e-01 : f32
      %185 = vector.broadcast %cst_97 : f32 to vector<8x128xf32>
      %186 = arith.mulf %185, %184 : vector<8x128xf32>
      %187 = arith.maximumf %184, %186 : vector<8x128xf32>
      %c51 = arith.constant 51 : index
      %c0_98 = arith.constant 0 : index
      %c0_99 = arith.constant 0 : index
      %188 = vector.load %arg1[%c51, %c0_98, %c0_99] : memref<411x8x128xf32, #tpu.memory_space<vmem>>, vector<1x8x128xf32>
      %189 = vector.shape_cast %188 : vector<1x8x128xf32> to vector<8x128xf32>
      %c15 = arith.constant 15 : index
      %c0_100 = arith.constant 0 : index
      %c0_101 = arith.constant 0 : index
      %190 = vector.load %arg1[%c15, %c0_100, %c0_101] : memref<411x8x128xf32, #tpu.memory_space<vmem>>, vector<1x8x128xf32>
      %191 = vector.shape_cast %190 : vector<1x8x128xf32> to vector<8x128xf32>
      %192 = arith.mulf %191, %13 : vector<8x128xf32>
      %193 = arith.addf %189, %192 : vector<8x128xf32>
      %c24 = arith.constant 24 : index
      %c0_102 = arith.constant 0 : index
      %c0_103 = arith.constant 0 : index
      %194 = vector.load %arg1[%c24, %c0_102, %c0_103] : memref<411x8x128xf32, #tpu.memory_space<vmem>>, vector<1x8x128xf32>
      %195 = vector.shape_cast %194 : vector<1x8x128xf32> to vector<8x128xf32>
      %196 = arith.mulf %195, %22 : vector<8x128xf32>
      %197 = arith.addf %193, %196 : vector<8x128xf32>
      %c33 = arith.constant 33 : index
      %c0_104 = arith.constant 0 : index
      %c0_105 = arith.constant 0 : index
      %198 = vector.load %arg1[%c33, %c0_104, %c0_105] : memref<411x8x128xf32, #tpu.memory_space<vmem>>, vector<1x8x128xf32>
      %199 = vector.shape_cast %198 : vector<1x8x128xf32> to vector<8x128xf32>
      %200 = arith.mulf %199, %31 : vector<8x128xf32>
      %201 = arith.addf %197, %200 : vector<8x128xf32>
      %c42 = arith.constant 42 : index
      %c0_106 = arith.constant 0 : index
      %c0_107 = arith.constant 0 : index
      %202 = vector.load %arg1[%c42, %c0_106, %c0_107] : memref<411x8x128xf32, #tpu.memory_space<vmem>>, vector<1x8x128xf32>
      %203 = vector.shape_cast %202 : vector<1x8x128xf32> to vector<8x128xf32>
      %204 = arith.mulf %203, %40 : vector<8x128xf32>
      %205 = arith.addf %201, %204 : vector<8x128xf32>
      %cst_108 = arith.constant 1.000000e-01 : f32
      %206 = vector.broadcast %cst_108 : f32 to vector<8x128xf32>
      %207 = arith.mulf %206, %205 : vector<8x128xf32>
      %208 = arith.maximumf %205, %207 : vector<8x128xf32>
      %c52 = arith.constant 52 : index
      %c0_109 = arith.constant 0 : index
      %c0_110 = arith.constant 0 : index
      %209 = vector.load %arg1[%c52, %c0_109, %c0_110] : memref<411x8x128xf32, #tpu.memory_space<vmem>>, vector<1x8x128xf32>
      %210 = vector.shape_cast %209 : vector<1x8x128xf32> to vector<8x128xf32>
      %c16 = arith.constant 16 : index
      %c0_111 = arith.constant 0 : index
      %c0_112 = arith.constant 0 : index
      %211 = vector.load %arg1[%c16, %c0_111, %c0_112] : memref<411x8x128xf32, #tpu.memory_space<vmem>>, vector<1x8x128xf32>
      %212 = vector.shape_cast %211 : vector<1x8x128xf32> to vector<8x128xf32>
      %213 = arith.mulf %212, %13 : vector<8x128xf32>
      %214 = arith.addf %210, %213 : vector<8x128xf32>
      %c25 = arith.constant 25 : index
      %c0_113 = arith.constant 0 : index
      %c0_114 = arith.constant 0 : index
      %215 = vector.load %arg1[%c25, %c0_113, %c0_114] : memref<411x8x128xf32, #tpu.memory_space<vmem>>, vector<1x8x128xf32>
      %216 = vector.shape_cast %215 : vector<1x8x128xf32> to vector<8x128xf32>
      %217 = arith.mulf %216, %22 : vector<8x128xf32>
      %218 = arith.addf %214, %217 : vector<8x128xf32>
      %c34 = arith.constant 34 : index
      %c0_115 = arith.constant 0 : index
      %c0_116 = arith.constant 0 : index
      %219 = vector.load %arg1[%c34, %c0_115, %c0_116] : memref<411x8x128xf32, #tpu.memory_space<vmem>>, vector<1x8x128xf32>
      %220 = vector.shape_cast %219 : vector<1x8x128xf32> to vector<8x128xf32>
      %221 = arith.mulf %220, %31 : vector<8x128xf32>
      %222 = arith.addf %218, %221 : vector<8x128xf32>
      %c43 = arith.constant 43 : index
      %c0_117 = arith.constant 0 : index
      %c0_118 = arith.constant 0 : index
      %223 = vector.load %arg1[%c43, %c0_117, %c0_118] : memref<411x8x128xf32, #tpu.memory_space<vmem>>, vector<1x8x128xf32>
      %224 = vector.shape_cast %223 : vector<1x8x128xf32> to vector<8x128xf32>
      %225 = arith.mulf %224, %40 : vector<8x128xf32>
      %226 = arith.addf %222, %225 : vector<8x128xf32>
      %cst_119 = arith.constant 1.000000e-01 : f32
      %227 = vector.broadcast %cst_119 : f32 to vector<8x128xf32>
      %228 = arith.mulf %227, %226 : vector<8x128xf32>
      %229 = arith.maximumf %226, %228 : vector<8x128xf32>
      %c197 = arith.constant 197 : index
      %c0_120 = arith.constant 0 : index
      %c0_121 = arith.constant 0 : index
      %230 = vector.load %arg1[%c197, %c0_120, %c0_121] : memref<411x8x128xf32, #tpu.memory_space<vmem>>, vector<1x8x128xf32>
      %231 = vector.shape_cast %230 : vector<1x8x128xf32> to vector<8x128xf32>
      %c53 = arith.constant 53 : index
      %c0_122 = arith.constant 0 : index
      %c0_123 = arith.constant 0 : index
      %232 = vector.load %arg1[%c53, %c0_122, %c0_123] : memref<411x8x128xf32, #tpu.memory_space<vmem>>, vector<1x8x128xf32>
      %233 = vector.shape_cast %232 : vector<1x8x128xf32> to vector<8x128xf32>
      %234 = arith.mulf %233, %61 : vector<8x128xf32>
      %235 = arith.addf %231, %234 : vector<8x128xf32>
      %c69 = arith.constant 69 : index
      %c0_124 = arith.constant 0 : index
      %c0_125 = arith.constant 0 : index
      %236 = vector.load %arg1[%c69, %c0_124, %c0_125] : memref<411x8x128xf32, #tpu.memory_space<vmem>>, vector<1x8x128xf32>
      %237 = vector.shape_cast %236 : vector<1x8x128xf32> to vector<8x128xf32>
      %238 = arith.mulf %237, %82 : vector<8x128xf32>
      %239 = arith.addf %235, %238 : vector<8x128xf32>
      %c85 = arith.constant 85 : index
      %c0_126 = arith.constant 0 : index
      %c0_127 = arith.constant 0 : index
      %240 = vector.load %arg1[%c85, %c0_126, %c0_127] : memref<411x8x128xf32, #tpu.memory_space<vmem>>, vector<1x8x128xf32>
      %241 = vector.shape_cast %240 : vector<1x8x128xf32> to vector<8x128xf32>
      %242 = arith.mulf %241, %103 : vector<8x128xf32>
      %243 = arith.addf %239, %242 : vector<8x128xf32>
      %c101 = arith.constant 101 : index
      %c0_128 = arith.constant 0 : index
      %c0_129 = arith.constant 0 : index
      %244 = vector.load %arg1[%c101, %c0_128, %c0_129] : memref<411x8x128xf32, #tpu.memory_space<vmem>>, vector<1x8x128xf32>
      %245 = vector.shape_cast %244 : vector<1x8x128xf32> to vector<8x128xf32>
      %246 = arith.mulf %245, %124 : vector<8x128xf32>
      %247 = arith.addf %243, %246 : vector<8x128xf32>
      %c117 = arith.constant 117 : index
      %c0_130 = arith.constant 0 : index
      %c0_131 = arith.constant 0 : index
      %248 = vector.load %arg1[%c117, %c0_130, %c0_131] : memref<411x8x128xf32, #tpu.memory_space<vmem>>, vector<1x8x128xf32>
      %249 = vector.shape_cast %248 : vector<1x8x128xf32> to vector<8x128xf32>
      %250 = arith.mulf %249, %145 : vector<8x128xf32>
      %251 = arith.addf %247, %250 : vector<8x128xf32>
      %c133 = arith.constant 133 : index
      %c0_132 = arith.constant 0 : index
      %c0_133 = arith.constant 0 : index
      %252 = vector.load %arg1[%c133, %c0_132, %c0_133] : memref<411x8x128xf32, #tpu.memory_space<vmem>>, vector<1x8x128xf32>
      %253 = vector.shape_cast %252 : vector<1x8x128xf32> to vector<8x128xf32>
      %254 = arith.mulf %253, %166 : vector<8x128xf32>
      %255 = arith.addf %251, %254 : vector<8x128xf32>
      %c149 = arith.constant 149 : index
      %c0_134 = arith.constant 0 : index
      %c0_135 = arith.constant 0 : index
      %256 = vector.load %arg1[%c149, %c0_134, %c0_135] : memref<411x8x128xf32, #tpu.memory_space<vmem>>, vector<1x8x128xf32>
      %257 = vector.shape_cast %256 : vector<1x8x128xf32> to vector<8x128xf32>
      %258 = arith.mulf %257, %187 : vector<8x128xf32>
      %259 = arith.addf %255, %258 : vector<8x128xf32>
      %c165 = arith.constant 165 : index
      %c0_136 = arith.constant 0 : index
      %c0_137 = arith.constant 0 : index
      %260 = vector.load %arg1[%c165, %c0_136, %c0_137] : memref<411x8x128xf32, #tpu.memory_space<vmem>>, vector<1x8x128xf32>
      %261 = vector.shape_cast %260 : vector<1x8x128xf32> to vector<8x128xf32>
      %262 = arith.mulf %261, %208 : vector<8x128xf32>
      %263 = arith.addf %259, %262 : vector<8x128xf32>
      %c181 = arith.constant 181 : index
      %c0_138 = arith.constant 0 : index
      %c0_139 = arith.constant 0 : index
      %264 = vector.load %arg1[%c181, %c0_138, %c0_139] : memref<411x8x128xf32, #tpu.memory_space<vmem>>, vector<1x8x128xf32>
      %265 = vector.shape_cast %264 : vector<1x8x128xf32> to vector<8x128xf32>
      %266 = arith.mulf %265, %229 : vector<8x128xf32>
      %267 = arith.addf %263, %266 : vector<8x128xf32>
      %cst_140 = arith.constant 1.000000e-01 : f32
      %268 = vector.broadcast %cst_140 : f32 to vector<8x128xf32>
      %269 = arith.mulf %268, %267 : vector<8x128xf32>
      %270 = arith.maximumf %267, %269 : vector<8x128xf32>
      %c198 = arith.constant 198 : index
      %c0_141 = arith.constant 0 : index
      %c0_142 = arith.constant 0 : index
      %271 = vector.load %arg1[%c198, %c0_141, %c0_142] : memref<411x8x128xf32, #tpu.memory_space<vmem>>, vector<1x8x128xf32>
      %272 = vector.shape_cast %271 : vector<1x8x128xf32> to vector<8x128xf32>
      %c54 = arith.constant 54 : index
      %c0_143 = arith.constant 0 : index
      %c0_144 = arith.constant 0 : index
      %273 = vector.load %arg1[%c54, %c0_143, %c0_144] : memref<411x8x128xf32, #tpu.memory_space<vmem>>, vector<1x8x128xf32>
      %274 = vector.shape_cast %273 : vector<1x8x128xf32> to vector<8x128xf32>
      %275 = arith.mulf %274, %61 : vector<8x128xf32>
      %276 = arith.addf %272, %275 : vector<8x128xf32>
      %c70 = arith.constant 70 : index
      %c0_145 = arith.constant 0 : index
      %c0_146 = arith.constant 0 : index
      %277 = vector.load %arg1[%c70, %c0_145, %c0_146] : memref<411x8x128xf32, #tpu.memory_space<vmem>>, vector<1x8x128xf32>
      %278 = vector.shape_cast %277 : vector<1x8x128xf32> to vector<8x128xf32>
      %279 = arith.mulf %278, %82 : vector<8x128xf32>
      %280 = arith.addf %276, %279 : vector<8x128xf32>
      %c86 = arith.constant 86 : index
      %c0_147 = arith.constant 0 : index
      %c0_148 = arith.constant 0 : index
      %281 = vector.load %arg1[%c86, %c0_147, %c0_148] : memref<411x8x128xf32, #tpu.memory_space<vmem>>, vector<1x8x128xf32>
      %282 = vector.shape_cast %281 : vector<1x8x128xf32> to vector<8x128xf32>
      %283 = arith.mulf %282, %103 : vector<8x128xf32>
      %284 = arith.addf %280, %283 : vector<8x128xf32>
      %c102 = arith.constant 102 : index
      %c0_149 = arith.constant 0 : index
      %c0_150 = arith.constant 0 : index
      %285 = vector.load %arg1[%c102, %c0_149, %c0_150] : memref<411x8x128xf32, #tpu.memory_space<vmem>>, vector<1x8x128xf32>
      %286 = vector.shape_cast %285 : vector<1x8x128xf32> to vector<8x128xf32>
      %287 = arith.mulf %286, %124 : vector<8x128xf32>
      %288 = arith.addf %284, %287 : vector<8x128xf32>
      %c118 = arith.constant 118 : index
      %c0_151 = arith.constant 0 : index
      %c0_152 = arith.constant 0 : index
      %289 = vector.load %arg1[%c118, %c0_151, %c0_152] : memref<411x8x128xf32, #tpu.memory_space<vmem>>, vector<1x8x128xf32>
      %290 = vector.shape_cast %289 : vector<1x8x128xf32> to vector<8x128xf32>
      %291 = arith.mulf %290, %145 : vector<8x128xf32>
      %292 = arith.addf %288, %291 : vector<8x128xf32>
      %c134 = arith.constant 134 : index
      %c0_153 = arith.constant 0 : index
      %c0_154 = arith.constant 0 : index
      %293 = vector.load %arg1[%c134, %c0_153, %c0_154] : memref<411x8x128xf32, #tpu.memory_space<vmem>>, vector<1x8x128xf32>
      %294 = vector.shape_cast %293 : vector<1x8x128xf32> to vector<8x128xf32>
      %295 = arith.mulf %294, %166 : vector<8x128xf32>
      %296 = arith.addf %292, %295 : vector<8x128xf32>
      %c150 = arith.constant 150 : index
      %c0_155 = arith.constant 0 : index
      %c0_156 = arith.constant 0 : index
      %297 = vector.load %arg1[%c150, %c0_155, %c0_156] : memref<411x8x128xf32, #tpu.memory_space<vmem>>, vector<1x8x128xf32>
      %298 = vector.shape_cast %297 : vector<1x8x128xf32> to vector<8x128xf32>
      %299 = arith.mulf %298, %187 : vector<8x128xf32>
      %300 = arith.addf %296, %299 : vector<8x128xf32>
      %c166 = arith.constant 166 : index
      %c0_157 = arith.constant 0 : index
      %c0_158 = arith.constant 0 : index
      %301 = vector.load %arg1[%c166, %c0_157, %c0_158] : memref<411x8x128xf32, #tpu.memory_space<vmem>>, vector<1x8x128xf32>
      %302 = vector.shape_cast %301 : vector<1x8x128xf32> to vector<8x128xf32>
      %303 = arith.mulf %302, %208 : vector<8x128xf32>
      %304 = arith.addf %300, %303 : vector<8x128xf32>
      %c182 = arith.constant 182 : index
      %c0_159 = arith.constant 0 : index
      %c0_160 = arith.constant 0 : index
      %305 = vector.load %arg1[%c182, %c0_159, %c0_160] : memref<411x8x128xf32, #tpu.memory_space<vmem>>, vector<1x8x128xf32>
      %306 = vector.shape_cast %305 : vector<1x8x128xf32> to vector<8x128xf32>
      %307 = arith.mulf %306, %229 : vector<8x128xf32>
      %308 = arith.addf %304, %307 : vector<8x128xf32>
      %cst_161 = arith.constant 1.000000e-01 : f32
      %309 = vector.broadcast %cst_161 : f32 to vector<8x128xf32>
      %310 = arith.mulf %309, %308 : vector<8x128xf32>
      %311 = arith.maximumf %308, %310 : vector<8x128xf32>
      %c199 = arith.constant 199 : index
      %c0_162 = arith.constant 0 : index
      %c0_163 = arith.constant 0 : index
      %312 = vector.load %arg1[%c199, %c0_162, %c0_163] : memref<411x8x128xf32, #tpu.memory_space<vmem>>, vector<1x8x128xf32>
      %313 = vector.shape_cast %312 : vector<1x8x128xf32> to vector<8x128xf32>
      %c55 = arith.constant 55 : index
      %c0_164 = arith.constant 0 : index
      %c0_165 = arith.constant 0 : index
      %314 = vector.load %arg1[%c55, %c0_164, %c0_165] : memref<411x8x128xf32, #tpu.memory_space<vmem>>, vector<1x8x128xf32>
      %315 = vector.shape_cast %314 : vector<1x8x128xf32> to vector<8x128xf32>
      %316 = arith.mulf %315, %61 : vector<8x128xf32>
      %317 = arith.addf %313, %316 : vector<8x128xf32>
      %c71 = arith.constant 71 : index
      %c0_166 = arith.constant 0 : index
      %c0_167 = arith.constant 0 : index
      %318 = vector.load %arg1[%c71, %c0_166, %c0_167] : memref<411x8x128xf32, #tpu.memory_space<vmem>>, vector<1x8x128xf32>
      %319 = vector.shape_cast %318 : vector<1x8x128xf32> to vector<8x128xf32>
      %320 = arith.mulf %319, %82 : vector<8x128xf32>
      %321 = arith.addf %317, %320 : vector<8x128xf32>
      %c87 = arith.constant 87 : index
      %c0_168 = arith.constant 0 : index
      %c0_169 = arith.constant 0 : index
      %322 = vector.load %arg1[%c87, %c0_168, %c0_169] : memref<411x8x128xf32, #tpu.memory_space<vmem>>, vector<1x8x128xf32>
      %323 = vector.shape_cast %322 : vector<1x8x128xf32> to vector<8x128xf32>
      %324 = arith.mulf %323, %103 : vector<8x128xf32>
      %325 = arith.addf %321, %324 : vector<8x128xf32>
      %c103 = arith.constant 103 : index
      %c0_170 = arith.constant 0 : index
      %c0_171 = arith.constant 0 : index
      %326 = vector.load %arg1[%c103, %c0_170, %c0_171] : memref<411x8x128xf32, #tpu.memory_space<vmem>>, vector<1x8x128xf32>
      %327 = vector.shape_cast %326 : vector<1x8x128xf32> to vector<8x128xf32>
      %328 = arith.mulf %327, %124 : vector<8x128xf32>
      %329 = arith.addf %325, %328 : vector<8x128xf32>
      %c119 = arith.constant 119 : index
      %c0_172 = arith.constant 0 : index
      %c0_173 = arith.constant 0 : index
      %330 = vector.load %arg1[%c119, %c0_172, %c0_173] : memref<411x8x128xf32, #tpu.memory_space<vmem>>, vector<1x8x128xf32>
      %331 = vector.shape_cast %330 : vector<1x8x128xf32> to vector<8x128xf32>
      %332 = arith.mulf %331, %145 : vector<8x128xf32>
      %333 = arith.addf %329, %332 : vector<8x128xf32>
      %c135 = arith.constant 135 : index
      %c0_174 = arith.constant 0 : index
      %c0_175 = arith.constant 0 : index
      %334 = vector.load %arg1[%c135, %c0_174, %c0_175] : memref<411x8x128xf32, #tpu.memory_space<vmem>>, vector<1x8x128xf32>
      %335 = vector.shape_cast %334 : vector<1x8x128xf32> to vector<8x128xf32>
      %336 = arith.mulf %335, %166 : vector<8x128xf32>
      %337 = arith.addf %333, %336 : vector<8x128xf32>
      %c151 = arith.constant 151 : index
      %c0_176 = arith.constant 0 : index
      %c0_177 = arith.constant 0 : index
      %338 = vector.load %arg1[%c151, %c0_176, %c0_177] : memref<411x8x128xf32, #tpu.memory_space<vmem>>, vector<1x8x128xf32>
      %339 = vector.shape_cast %338 : vector<1x8x128xf32> to vector<8x128xf32>
      %340 = arith.mulf %339, %187 : vector<8x128xf32>
      %341 = arith.addf %337, %340 : vector<8x128xf32>
      %c167 = arith.constant 167 : index
      %c0_178 = arith.constant 0 : index
      %c0_179 = arith.constant 0 : index
      %342 = vector.load %arg1[%c167, %c0_178, %c0_179] : memref<411x8x128xf32, #tpu.memory_space<vmem>>, vector<1x8x128xf32>
      %343 = vector.shape_cast %342 : vector<1x8x128xf32> to vector<8x128xf32>
      %344 = arith.mulf %343, %208 : vector<8x128xf32>
      %345 = arith.addf %341, %344 : vector<8x128xf32>
      %c183 = arith.constant 183 : index
      %c0_180 = arith.constant 0 : index
      %c0_181 = arith.constant 0 : index
      %346 = vector.load %arg1[%c183, %c0_180, %c0_181] : memref<411x8x128xf32, #tpu.memory_space<vmem>>, vector<1x8x128xf32>
      %347 = vector.shape_cast %346 : vector<1x8x128xf32> to vector<8x128xf32>
      %348 = arith.mulf %347, %229 : vector<8x128xf32>
      %349 = arith.addf %345, %348 : vector<8x128xf32>
      %cst_182 = arith.constant 1.000000e-01 : f32
      %350 = vector.broadcast %cst_182 : f32 to vector<8x128xf32>
      %351 = arith.mulf %350, %349 : vector<8x128xf32>
      %352 = arith.maximumf %349, %351 : vector<8x128xf32>
      %c200 = arith.constant 200 : index
      %c0_183 = arith.constant 0 : index
      %c0_184 = arith.constant 0 : index
      %353 = vector.load %arg1[%c200, %c0_183, %c0_184] : memref<411x8x128xf32, #tpu.memory_space<vmem>>, vector<1x8x128xf32>
      %354 = vector.shape_cast %353 : vector<1x8x128xf32> to vector<8x128xf32>
      %c56 = arith.constant 56 : index
      %c0_185 = arith.constant 0 : index
      %c0_186 = arith.constant 0 : index
      %355 = vector.load %arg1[%c56, %c0_185, %c0_186] : memref<411x8x128xf32, #tpu.memory_space<vmem>>, vector<1x8x128xf32>
      %356 = vector.shape_cast %355 : vector<1x8x128xf32> to vector<8x128xf32>
      %357 = arith.mulf %356, %61 : vector<8x128xf32>
      %358 = arith.addf %354, %357 : vector<8x128xf32>
      %c72 = arith.constant 72 : index
      %c0_187 = arith.constant 0 : index
      %c0_188 = arith.constant 0 : index
      %359 = vector.load %arg1[%c72, %c0_187, %c0_188] : memref<411x8x128xf32, #tpu.memory_space<vmem>>, vector<1x8x128xf32>
      %360 = vector.shape_cast %359 : vector<1x8x128xf32> to vector<8x128xf32>
      %361 = arith.mulf %360, %82 : vector<8x128xf32>
      %362 = arith.addf %358, %361 : vector<8x128xf32>
      %c88 = arith.constant 88 : index
      %c0_189 = arith.constant 0 : index
      %c0_190 = arith.constant 0 : index
      %363 = vector.load %arg1[%c88, %c0_189, %c0_190] : memref<411x8x128xf32, #tpu.memory_space<vmem>>, vector<1x8x128xf32>
      %364 = vector.shape_cast %363 : vector<1x8x128xf32> to vector<8x128xf32>
      %365 = arith.mulf %364, %103 : vector<8x128xf32>
      %366 = arith.addf %362, %365 : vector<8x128xf32>
      %c104 = arith.constant 104 : index
      %c0_191 = arith.constant 0 : index
      %c0_192 = arith.constant 0 : index
      %367 = vector.load %arg1[%c104, %c0_191, %c0_192] : memref<411x8x128xf32, #tpu.memory_space<vmem>>, vector<1x8x128xf32>
      %368 = vector.shape_cast %367 : vector<1x8x128xf32> to vector<8x128xf32>
      %369 = arith.mulf %368, %124 : vector<8x128xf32>
      %370 = arith.addf %366, %369 : vector<8x128xf32>
      %c120 = arith.constant 120 : index
      %c0_193 = arith.constant 0 : index
      %c0_194 = arith.constant 0 : index
      %371 = vector.load %arg1[%c120, %c0_193, %c0_194] : memref<411x8x128xf32, #tpu.memory_space<vmem>>, vector<1x8x128xf32>
      %372 = vector.shape_cast %371 : vector<1x8x128xf32> to vector<8x128xf32>
      %373 = arith.mulf %372, %145 : vector<8x128xf32>
      %374 = arith.addf %370, %373 : vector<8x128xf32>
      %c136 = arith.constant 136 : index
      %c0_195 = arith.constant 0 : index
      %c0_196 = arith.constant 0 : index
      %375 = vector.load %arg1[%c136, %c0_195, %c0_196] : memref<411x8x128xf32, #tpu.memory_space<vmem>>, vector<1x8x128xf32>
      %376 = vector.shape_cast %375 : vector<1x8x128xf32> to vector<8x128xf32>
      %377 = arith.mulf %376, %166 : vector<8x128xf32>
      %378 = arith.addf %374, %377 : vector<8x128xf32>
      %c152 = arith.constant 152 : index
      %c0_197 = arith.constant 0 : index
      %c0_198 = arith.constant 0 : index
      %379 = vector.load %arg1[%c152, %c0_197, %c0_198] : memref<411x8x128xf32, #tpu.memory_space<vmem>>, vector<1x8x128xf32>
      %380 = vector.shape_cast %379 : vector<1x8x128xf32> to vector<8x128xf32>
      %381 = arith.mulf %380, %187 : vector<8x128xf32>
      %382 = arith.addf %378, %381 : vector<8x128xf32>
      %c168 = arith.constant 168 : index
      %c0_199 = arith.constant 0 : index
      %c0_200 = arith.constant 0 : index
      %383 = vector.load %arg1[%c168, %c0_199, %c0_200] : memref<411x8x128xf32, #tpu.memory_space<vmem>>, vector<1x8x128xf32>
      %384 = vector.shape_cast %383 : vector<1x8x128xf32> to vector<8x128xf32>
      %385 = arith.mulf %384, %208 : vector<8x128xf32>
      %386 = arith.addf %382, %385 : vector<8x128xf32>
      %c184 = arith.constant 184 : index
      %c0_201 = arith.constant 0 : index
      %c0_202 = arith.constant 0 : index
      %387 = vector.load %arg1[%c184, %c0_201, %c0_202] : memref<411x8x128xf32, #tpu.memory_space<vmem>>, vector<1x8x128xf32>
      %388 = vector.shape_cast %387 : vector<1x8x128xf32> to vector<8x128xf32>
      %389 = arith.mulf %388, %229 : vector<8x128xf32>
      %390 = arith.addf %386, %389 : vector<8x128xf32>
      %cst_203 = arith.constant 1.000000e-01 : f32
      %391 = vector.broadcast %cst_203 : f32 to vector<8x128xf32>
      %392 = arith.mulf %391, %390 : vector<8x128xf32>
      %393 = arith.maximumf %390, %392 : vector<8x128xf32>
      %c201 = arith.constant 201 : index
      %c0_204 = arith.constant 0 : index
      %c0_205 = arith.constant 0 : index
      %394 = vector.load %arg1[%c201, %c0_204, %c0_205] : memref<411x8x128xf32, #tpu.memory_space<vmem>>, vector<1x8x128xf32>
      %395 = vector.shape_cast %394 : vector<1x8x128xf32> to vector<8x128xf32>
      %c57 = arith.constant 57 : index
      %c0_206 = arith.constant 0 : index
      %c0_207 = arith.constant 0 : index
      %396 = vector.load %arg1[%c57, %c0_206, %c0_207] : memref<411x8x128xf32, #tpu.memory_space<vmem>>, vector<1x8x128xf32>
      %397 = vector.shape_cast %396 : vector<1x8x128xf32> to vector<8x128xf32>
      %398 = arith.mulf %397, %61 : vector<8x128xf32>
      %399 = arith.addf %395, %398 : vector<8x128xf32>
      %c73 = arith.constant 73 : index
      %c0_208 = arith.constant 0 : index
      %c0_209 = arith.constant 0 : index
      %400 = vector.load %arg1[%c73, %c0_208, %c0_209] : memref<411x8x128xf32, #tpu.memory_space<vmem>>, vector<1x8x128xf32>
      %401 = vector.shape_cast %400 : vector<1x8x128xf32> to vector<8x128xf32>
      %402 = arith.mulf %401, %82 : vector<8x128xf32>
      %403 = arith.addf %399, %402 : vector<8x128xf32>
      %c89 = arith.constant 89 : index
      %c0_210 = arith.constant 0 : index
      %c0_211 = arith.constant 0 : index
      %404 = vector.load %arg1[%c89, %c0_210, %c0_211] : memref<411x8x128xf32, #tpu.memory_space<vmem>>, vector<1x8x128xf32>
      %405 = vector.shape_cast %404 : vector<1x8x128xf32> to vector<8x128xf32>
      %406 = arith.mulf %405, %103 : vector<8x128xf32>
      %407 = arith.addf %403, %406 : vector<8x128xf32>
      %c105 = arith.constant 105 : index
      %c0_212 = arith.constant 0 : index
      %c0_213 = arith.constant 0 : index
      %408 = vector.load %arg1[%c105, %c0_212, %c0_213] : memref<411x8x128xf32, #tpu.memory_space<vmem>>, vector<1x8x128xf32>
      %409 = vector.shape_cast %408 : vector<1x8x128xf32> to vector<8x128xf32>
      %410 = arith.mulf %409, %124 : vector<8x128xf32>
      %411 = arith.addf %407, %410 : vector<8x128xf32>
      %c121 = arith.constant 121 : index
      %c0_214 = arith.constant 0 : index
      %c0_215 = arith.constant 0 : index
      %412 = vector.load %arg1[%c121, %c0_214, %c0_215] : memref<411x8x128xf32, #tpu.memory_space<vmem>>, vector<1x8x128xf32>
      %413 = vector.shape_cast %412 : vector<1x8x128xf32> to vector<8x128xf32>
      %414 = arith.mulf %413, %145 : vector<8x128xf32>
      %415 = arith.addf %411, %414 : vector<8x128xf32>
      %c137 = arith.constant 137 : index
      %c0_216 = arith.constant 0 : index
      %c0_217 = arith.constant 0 : index
      %416 = vector.load %arg1[%c137, %c0_216, %c0_217] : memref<411x8x128xf32, #tpu.memory_space<vmem>>, vector<1x8x128xf32>
      %417 = vector.shape_cast %416 : vector<1x8x128xf32> to vector<8x128xf32>
      %418 = arith.mulf %417, %166 : vector<8x128xf32>
      %419 = arith.addf %415, %418 : vector<8x128xf32>
      %c153 = arith.constant 153 : index
      %c0_218 = arith.constant 0 : index
      %c0_219 = arith.constant 0 : index
      %420 = vector.load %arg1[%c153, %c0_218, %c0_219] : memref<411x8x128xf32, #tpu.memory_space<vmem>>, vector<1x8x128xf32>
      %421 = vector.shape_cast %420 : vector<1x8x128xf32> to vector<8x128xf32>
      %422 = arith.mulf %421, %187 : vector<8x128xf32>
      %423 = arith.addf %419, %422 : vector<8x128xf32>
      %c169 = arith.constant 169 : index
      %c0_220 = arith.constant 0 : index
      %c0_221 = arith.constant 0 : index
      %424 = vector.load %arg1[%c169, %c0_220, %c0_221] : memref<411x8x128xf32, #tpu.memory_space<vmem>>, vector<1x8x128xf32>
      %425 = vector.shape_cast %424 : vector<1x8x128xf32> to vector<8x128xf32>
      %426 = arith.mulf %425, %208 : vector<8x128xf32>
      %427 = arith.addf %423, %426 : vector<8x128xf32>
      %c185 = arith.constant 185 : index
      %c0_222 = arith.constant 0 : index
      %c0_223 = arith.constant 0 : index
      %428 = vector.load %arg1[%c185, %c0_222, %c0_223] : memref<411x8x128xf32, #tpu.memory_space<vmem>>, vector<1x8x128xf32>
      %429 = vector.shape_cast %428 : vector<1x8x128xf32> to vector<8x128xf32>
      %430 = arith.mulf %429, %229 : vector<8x128xf32>
      %431 = arith.addf %427, %430 : vector<8x128xf32>
      %cst_224 = arith.constant 1.000000e-01 : f32
      %432 = vector.broadcast %cst_224 : f32 to vector<8x128xf32>
      %433 = arith.mulf %432, %431 : vector<8x128xf32>
      %434 = arith.maximumf %431, %433 : vector<8x128xf32>
      %c202 = arith.constant 202 : index
      %c0_225 = arith.constant 0 : index
      %c0_226 = arith.constant 0 : index
      %435 = vector.load %arg1[%c202, %c0_225, %c0_226] : memref<411x8x128xf32, #tpu.memory_space<vmem>>, vector<1x8x128xf32>
      %436 = vector.shape_cast %435 : vector<1x8x128xf32> to vector<8x128xf32>
      %c58 = arith.constant 58 : index
      %c0_227 = arith.constant 0 : index
      %c0_228 = arith.constant 0 : index
      %437 = vector.load %arg1[%c58, %c0_227, %c0_228] : memref<411x8x128xf32, #tpu.memory_space<vmem>>, vector<1x8x128xf32>
      %438 = vector.shape_cast %437 : vector<1x8x128xf32> to vector<8x128xf32>
      %439 = arith.mulf %438, %61 : vector<8x128xf32>
      %440 = arith.addf %436, %439 : vector<8x128xf32>
      %c74 = arith.constant 74 : index
      %c0_229 = arith.constant 0 : index
      %c0_230 = arith.constant 0 : index
      %441 = vector.load %arg1[%c74, %c0_229, %c0_230] : memref<411x8x128xf32, #tpu.memory_space<vmem>>, vector<1x8x128xf32>
      %442 = vector.shape_cast %441 : vector<1x8x128xf32> to vector<8x128xf32>
      %443 = arith.mulf %442, %82 : vector<8x128xf32>
      %444 = arith.addf %440, %443 : vector<8x128xf32>
      %c90 = arith.constant 90 : index
      %c0_231 = arith.constant 0 : index
      %c0_232 = arith.constant 0 : index
      %445 = vector.load %arg1[%c90, %c0_231, %c0_232] : memref<411x8x128xf32, #tpu.memory_space<vmem>>, vector<1x8x128xf32>
      %446 = vector.shape_cast %445 : vector<1x8x128xf32> to vector<8x128xf32>
      %447 = arith.mulf %446, %103 : vector<8x128xf32>
      %448 = arith.addf %444, %447 : vector<8x128xf32>
      %c106 = arith.constant 106 : index
      %c0_233 = arith.constant 0 : index
      %c0_234 = arith.constant 0 : index
      %449 = vector.load %arg1[%c106, %c0_233, %c0_234] : memref<411x8x128xf32, #tpu.memory_space<vmem>>, vector<1x8x128xf32>
      %450 = vector.shape_cast %449 : vector<1x8x128xf32> to vector<8x128xf32>
      %451 = arith.mulf %450, %124 : vector<8x128xf32>
      %452 = arith.addf %448, %451 : vector<8x128xf32>
      %c122 = arith.constant 122 : index
      %c0_235 = arith.constant 0 : index
      %c0_236 = arith.constant 0 : index
      %453 = vector.load %arg1[%c122, %c0_235, %c0_236] : memref<411x8x128xf32, #tpu.memory_space<vmem>>, vector<1x8x128xf32>
      %454 = vector.shape_cast %453 : vector<1x8x128xf32> to vector<8x128xf32>
      %455 = arith.mulf %454, %145 : vector<8x128xf32>
      %456 = arith.addf %452, %455 : vector<8x128xf32>
      %c138 = arith.constant 138 : index
      %c0_237 = arith.constant 0 : index
      %c0_238 = arith.constant 0 : index
      %457 = vector.load %arg1[%c138, %c0_237, %c0_238] : memref<411x8x128xf32, #tpu.memory_space<vmem>>, vector<1x8x128xf32>
      %458 = vector.shape_cast %457 : vector<1x8x128xf32> to vector<8x128xf32>
      %459 = arith.mulf %458, %166 : vector<8x128xf32>
      %460 = arith.addf %456, %459 : vector<8x128xf32>
      %c154 = arith.constant 154 : index
      %c0_239 = arith.constant 0 : index
      %c0_240 = arith.constant 0 : index
      %461 = vector.load %arg1[%c154, %c0_239, %c0_240] : memref<411x8x128xf32, #tpu.memory_space<vmem>>, vector<1x8x128xf32>
      %462 = vector.shape_cast %461 : vector<1x8x128xf32> to vector<8x128xf32>
      %463 = arith.mulf %462, %187 : vector<8x128xf32>
      %464 = arith.addf %460, %463 : vector<8x128xf32>
      %c170 = arith.constant 170 : index
      %c0_241 = arith.constant 0 : index
      %c0_242 = arith.constant 0 : index
      %465 = vector.load %arg1[%c170, %c0_241, %c0_242] : memref<411x8x128xf32, #tpu.memory_space<vmem>>, vector<1x8x128xf32>
      %466 = vector.shape_cast %465 : vector<1x8x128xf32> to vector<8x128xf32>
      %467 = arith.mulf %466, %208 : vector<8x128xf32>
      %468 = arith.addf %464, %467 : vector<8x128xf32>
      %c186 = arith.constant 186 : index
      %c0_243 = arith.constant 0 : index
      %c0_244 = arith.constant 0 : index
      %469 = vector.load %arg1[%c186, %c0_243, %c0_244] : memref<411x8x128xf32, #tpu.memory_space<vmem>>, vector<1x8x128xf32>
      %470 = vector.shape_cast %469 : vector<1x8x128xf32> to vector<8x128xf32>
      %471 = arith.mulf %470, %229 : vector<8x128xf32>
      %472 = arith.addf %468, %471 : vector<8x128xf32>
      %cst_245 = arith.constant 1.000000e-01 : f32
      %473 = vector.broadcast %cst_245 : f32 to vector<8x128xf32>
      %474 = arith.mulf %473, %472 : vector<8x128xf32>
      %475 = arith.maximumf %472, %474 : vector<8x128xf32>
      %c203 = arith.constant 203 : index
      %c0_246 = arith.constant 0 : index
      %c0_247 = arith.constant 0 : index
      %476 = vector.load %arg1[%c203, %c0_246, %c0_247] : memref<411x8x128xf32, #tpu.memory_space<vmem>>, vector<1x8x128xf32>
      %477 = vector.shape_cast %476 : vector<1x8x128xf32> to vector<8x128xf32>
      %c59 = arith.constant 59 : index
      %c0_248 = arith.constant 0 : index
      %c0_249 = arith.constant 0 : index
      %478 = vector.load %arg1[%c59, %c0_248, %c0_249] : memref<411x8x128xf32, #tpu.memory_space<vmem>>, vector<1x8x128xf32>
      %479 = vector.shape_cast %478 : vector<1x8x128xf32> to vector<8x128xf32>
      %480 = arith.mulf %479, %61 : vector<8x128xf32>
      %481 = arith.addf %477, %480 : vector<8x128xf32>
      %c75 = arith.constant 75 : index
      %c0_250 = arith.constant 0 : index
      %c0_251 = arith.constant 0 : index
      %482 = vector.load %arg1[%c75, %c0_250, %c0_251] : memref<411x8x128xf32, #tpu.memory_space<vmem>>, vector<1x8x128xf32>
      %483 = vector.shape_cast %482 : vector<1x8x128xf32> to vector<8x128xf32>
      %484 = arith.mulf %483, %82 : vector<8x128xf32>
      %485 = arith.addf %481, %484 : vector<8x128xf32>
      %c91 = arith.constant 91 : index
      %c0_252 = arith.constant 0 : index
      %c0_253 = arith.constant 0 : index
      %486 = vector.load %arg1[%c91, %c0_252, %c0_253] : memref<411x8x128xf32, #tpu.memory_space<vmem>>, vector<1x8x128xf32>
      %487 = vector.shape_cast %486 : vector<1x8x128xf32> to vector<8x128xf32>
      %488 = arith.mulf %487, %103 : vector<8x128xf32>
      %489 = arith.addf %485, %488 : vector<8x128xf32>
      %c107 = arith.constant 107 : index
      %c0_254 = arith.constant 0 : index
      %c0_255 = arith.constant 0 : index
      %490 = vector.load %arg1[%c107, %c0_254, %c0_255] : memref<411x8x128xf32, #tpu.memory_space<vmem>>, vector<1x8x128xf32>
      %491 = vector.shape_cast %490 : vector<1x8x128xf32> to vector<8x128xf32>
      %492 = arith.mulf %491, %124 : vector<8x128xf32>
      %493 = arith.addf %489, %492 : vector<8x128xf32>
      %c123 = arith.constant 123 : index
      %c0_256 = arith.constant 0 : index
      %c0_257 = arith.constant 0 : index
      %494 = vector.load %arg1[%c123, %c0_256, %c0_257] : memref<411x8x128xf32, #tpu.memory_space<vmem>>, vector<1x8x128xf32>
      %495 = vector.shape_cast %494 : vector<1x8x128xf32> to vector<8x128xf32>
      %496 = arith.mulf %495, %145 : vector<8x128xf32>
      %497 = arith.addf %493, %496 : vector<8x128xf32>
      %c139 = arith.constant 139 : index
      %c0_258 = arith.constant 0 : index
      %c0_259 = arith.constant 0 : index
      %498 = vector.load %arg1[%c139, %c0_258, %c0_259] : memref<411x8x128xf32, #tpu.memory_space<vmem>>, vector<1x8x128xf32>
      %499 = vector.shape_cast %498 : vector<1x8x128xf32> to vector<8x128xf32>
      %500 = arith.mulf %499, %166 : vector<8x128xf32>
      %501 = arith.addf %497, %500 : vector<8x128xf32>
      %c155 = arith.constant 155 : index
      %c0_260 = arith.constant 0 : index
      %c0_261 = arith.constant 0 : index
      %502 = vector.load %arg1[%c155, %c0_260, %c0_261] : memref<411x8x128xf32, #tpu.memory_space<vmem>>, vector<1x8x128xf32>
      %503 = vector.shape_cast %502 : vector<1x8x128xf32> to vector<8x128xf32>
      %504 = arith.mulf %503, %187 : vector<8x128xf32>
      %505 = arith.addf %501, %504 : vector<8x128xf32>
      %c171 = arith.constant 171 : index
      %c0_262 = arith.constant 0 : index
      %c0_263 = arith.constant 0 : index
      %506 = vector.load %arg1[%c171, %c0_262, %c0_263] : memref<411x8x128xf32, #tpu.memory_space<vmem>>, vector<1x8x128xf32>
      %507 = vector.shape_cast %506 : vector<1x8x128xf32> to vector<8x128xf32>
      %508 = arith.mulf %507, %208 : vector<8x128xf32>
      %509 = arith.addf %505, %508 : vector<8x128xf32>
      %c187 = arith.constant 187 : index
      %c0_264 = arith.constant 0 : index
      %c0_265 = arith.constant 0 : index
      %510 = vector.load %arg1[%c187, %c0_264, %c0_265] : memref<411x8x128xf32, #tpu.memory_space<vmem>>, vector<1x8x128xf32>
      %511 = vector.shape_cast %510 : vector<1x8x128xf32> to vector<8x128xf32>
      %512 = arith.mulf %511, %229 : vector<8x128xf32>
      %513 = arith.addf %509, %512 : vector<8x128xf32>
      %cst_266 = arith.constant 1.000000e-01 : f32
      %514 = vector.broadcast %cst_266 : f32 to vector<8x128xf32>
      %515 = arith.mulf %514, %513 : vector<8x128xf32>
      %516 = arith.maximumf %513, %515 : vector<8x128xf32>
      %c204 = arith.constant 204 : index
      %c0_267 = arith.constant 0 : index
      %c0_268 = arith.constant 0 : index
      %517 = vector.load %arg1[%c204, %c0_267, %c0_268] : memref<411x8x128xf32, #tpu.memory_space<vmem>>, vector<1x8x128xf32>
      %518 = vector.shape_cast %517 : vector<1x8x128xf32> to vector<8x128xf32>
      %c60 = arith.constant 60 : index
      %c0_269 = arith.constant 0 : index
      %c0_270 = arith.constant 0 : index
      %519 = vector.load %arg1[%c60, %c0_269, %c0_270] : memref<411x8x128xf32, #tpu.memory_space<vmem>>, vector<1x8x128xf32>
      %520 = vector.shape_cast %519 : vector<1x8x128xf32> to vector<8x128xf32>
      %521 = arith.mulf %520, %61 : vector<8x128xf32>
      %522 = arith.addf %518, %521 : vector<8x128xf32>
      %c76 = arith.constant 76 : index
      %c0_271 = arith.constant 0 : index
      %c0_272 = arith.constant 0 : index
      %523 = vector.load %arg1[%c76, %c0_271, %c0_272] : memref<411x8x128xf32, #tpu.memory_space<vmem>>, vector<1x8x128xf32>
      %524 = vector.shape_cast %523 : vector<1x8x128xf32> to vector<8x128xf32>
      %525 = arith.mulf %524, %82 : vector<8x128xf32>
      %526 = arith.addf %522, %525 : vector<8x128xf32>
      %c92 = arith.constant 92 : index
      %c0_273 = arith.constant 0 : index
      %c0_274 = arith.constant 0 : index
      %527 = vector.load %arg1[%c92, %c0_273, %c0_274] : memref<411x8x128xf32, #tpu.memory_space<vmem>>, vector<1x8x128xf32>
      %528 = vector.shape_cast %527 : vector<1x8x128xf32> to vector<8x128xf32>
      %529 = arith.mulf %528, %103 : vector<8x128xf32>
      %530 = arith.addf %526, %529 : vector<8x128xf32>
      %c108 = arith.constant 108 : index
      %c0_275 = arith.constant 0 : index
      %c0_276 = arith.constant 0 : index
      %531 = vector.load %arg1[%c108, %c0_275, %c0_276] : memref<411x8x128xf32, #tpu.memory_space<vmem>>, vector<1x8x128xf32>
      %532 = vector.shape_cast %531 : vector<1x8x128xf32> to vector<8x128xf32>
      %533 = arith.mulf %532, %124 : vector<8x128xf32>
      %534 = arith.addf %530, %533 : vector<8x128xf32>
      %c124 = arith.constant 124 : index
      %c0_277 = arith.constant 0 : index
      %c0_278 = arith.constant 0 : index
      %535 = vector.load %arg1[%c124, %c0_277, %c0_278] : memref<411x8x128xf32, #tpu.memory_space<vmem>>, vector<1x8x128xf32>
      %536 = vector.shape_cast %535 : vector<1x8x128xf32> to vector<8x128xf32>
      %537 = arith.mulf %536, %145 : vector<8x128xf32>
      %538 = arith.addf %534, %537 : vector<8x128xf32>
      %c140 = arith.constant 140 : index
      %c0_279 = arith.constant 0 : index
      %c0_280 = arith.constant 0 : index
      %539 = vector.load %arg1[%c140, %c0_279, %c0_280] : memref<411x8x128xf32, #tpu.memory_space<vmem>>, vector<1x8x128xf32>
      %540 = vector.shape_cast %539 : vector<1x8x128xf32> to vector<8x128xf32>
      %541 = arith.mulf %540, %166 : vector<8x128xf32>
      %542 = arith.addf %538, %541 : vector<8x128xf32>
      %c156 = arith.constant 156 : index
      %c0_281 = arith.constant 0 : index
      %c0_282 = arith.constant 0 : index
      %543 = vector.load %arg1[%c156, %c0_281, %c0_282] : memref<411x8x128xf32, #tpu.memory_space<vmem>>, vector<1x8x128xf32>
      %544 = vector.shape_cast %543 : vector<1x8x128xf32> to vector<8x128xf32>
      %545 = arith.mulf %544, %187 : vector<8x128xf32>
      %546 = arith.addf %542, %545 : vector<8x128xf32>
      %c172 = arith.constant 172 : index
      %c0_283 = arith.constant 0 : index
      %c0_284 = arith.constant 0 : index
      %547 = vector.load %arg1[%c172, %c0_283, %c0_284] : memref<411x8x128xf32, #tpu.memory_space<vmem>>, vector<1x8x128xf32>
      %548 = vector.shape_cast %547 : vector<1x8x128xf32> to vector<8x128xf32>
      %549 = arith.mulf %548, %208 : vector<8x128xf32>
      %550 = arith.addf %546, %549 : vector<8x128xf32>
      %c188 = arith.constant 188 : index
      %c0_285 = arith.constant 0 : index
      %c0_286 = arith.constant 0 : index
      %551 = vector.load %arg1[%c188, %c0_285, %c0_286] : memref<411x8x128xf32, #tpu.memory_space<vmem>>, vector<1x8x128xf32>
      %552 = vector.shape_cast %551 : vector<1x8x128xf32> to vector<8x128xf32>
      %553 = arith.mulf %552, %229 : vector<8x128xf32>
      %554 = arith.addf %550, %553 : vector<8x128xf32>
      %cst_287 = arith.constant 1.000000e-01 : f32
      %555 = vector.broadcast %cst_287 : f32 to vector<8x128xf32>
      %556 = arith.mulf %555, %554 : vector<8x128xf32>
      %557 = arith.maximumf %554, %556 : vector<8x128xf32>
      %c205 = arith.constant 205 : index
      %c0_288 = arith.constant 0 : index
      %c0_289 = arith.constant 0 : index
      %558 = vector.load %arg1[%c205, %c0_288, %c0_289] : memref<411x8x128xf32, #tpu.memory_space<vmem>>, vector<1x8x128xf32>
      %559 = vector.shape_cast %558 : vector<1x8x128xf32> to vector<8x128xf32>
      %c61 = arith.constant 61 : index
      %c0_290 = arith.constant 0 : index
      %c0_291 = arith.constant 0 : index
      %560 = vector.load %arg1[%c61, %c0_290, %c0_291] : memref<411x8x128xf32, #tpu.memory_space<vmem>>, vector<1x8x128xf32>
      %561 = vector.shape_cast %560 : vector<1x8x128xf32> to vector<8x128xf32>
      %562 = arith.mulf %561, %61 : vector<8x128xf32>
      %563 = arith.addf %559, %562 : vector<8x128xf32>
      %c77 = arith.constant 77 : index
      %c0_292 = arith.constant 0 : index
      %c0_293 = arith.constant 0 : index
      %564 = vector.load %arg1[%c77, %c0_292, %c0_293] : memref<411x8x128xf32, #tpu.memory_space<vmem>>, vector<1x8x128xf32>
      %565 = vector.shape_cast %564 : vector<1x8x128xf32> to vector<8x128xf32>
      %566 = arith.mulf %565, %82 : vector<8x128xf32>
      %567 = arith.addf %563, %566 : vector<8x128xf32>
      %c93 = arith.constant 93 : index
      %c0_294 = arith.constant 0 : index
      %c0_295 = arith.constant 0 : index
      %568 = vector.load %arg1[%c93, %c0_294, %c0_295] : memref<411x8x128xf32, #tpu.memory_space<vmem>>, vector<1x8x128xf32>
      %569 = vector.shape_cast %568 : vector<1x8x128xf32> to vector<8x128xf32>
      %570 = arith.mulf %569, %103 : vector<8x128xf32>
      %571 = arith.addf %567, %570 : vector<8x128xf32>
      %c109 = arith.constant 109 : index
      %c0_296 = arith.constant 0 : index
      %c0_297 = arith.constant 0 : index
      %572 = vector.load %arg1[%c109, %c0_296, %c0_297] : memref<411x8x128xf32, #tpu.memory_space<vmem>>, vector<1x8x128xf32>
      %573 = vector.shape_cast %572 : vector<1x8x128xf32> to vector<8x128xf32>
      %574 = arith.mulf %573, %124 : vector<8x128xf32>
      %575 = arith.addf %571, %574 : vector<8x128xf32>
      %c125 = arith.constant 125 : index
      %c0_298 = arith.constant 0 : index
      %c0_299 = arith.constant 0 : index
      %576 = vector.load %arg1[%c125, %c0_298, %c0_299] : memref<411x8x128xf32, #tpu.memory_space<vmem>>, vector<1x8x128xf32>
      %577 = vector.shape_cast %576 : vector<1x8x128xf32> to vector<8x128xf32>
      %578 = arith.mulf %577, %145 : vector<8x128xf32>
      %579 = arith.addf %575, %578 : vector<8x128xf32>
      %c141 = arith.constant 141 : index
      %c0_300 = arith.constant 0 : index
      %c0_301 = arith.constant 0 : index
      %580 = vector.load %arg1[%c141, %c0_300, %c0_301] : memref<411x8x128xf32, #tpu.memory_space<vmem>>, vector<1x8x128xf32>
      %581 = vector.shape_cast %580 : vector<1x8x128xf32> to vector<8x128xf32>
      %582 = arith.mulf %581, %166 : vector<8x128xf32>
      %583 = arith.addf %579, %582 : vector<8x128xf32>
      %c157 = arith.constant 157 : index
      %c0_302 = arith.constant 0 : index
      %c0_303 = arith.constant 0 : index
      %584 = vector.load %arg1[%c157, %c0_302, %c0_303] : memref<411x8x128xf32, #tpu.memory_space<vmem>>, vector<1x8x128xf32>
      %585 = vector.shape_cast %584 : vector<1x8x128xf32> to vector<8x128xf32>
      %586 = arith.mulf %585, %187 : vector<8x128xf32>
      %587 = arith.addf %583, %586 : vector<8x128xf32>
      %c173 = arith.constant 173 : index
      %c0_304 = arith.constant 0 : index
      %c0_305 = arith.constant 0 : index
      %588 = vector.load %arg1[%c173, %c0_304, %c0_305] : memref<411x8x128xf32, #tpu.memory_space<vmem>>, vector<1x8x128xf32>
      %589 = vector.shape_cast %588 : vector<1x8x128xf32> to vector<8x128xf32>
      %590 = arith.mulf %589, %208 : vector<8x128xf32>
      %591 = arith.addf %587, %590 : vector<8x128xf32>
      %c189 = arith.constant 189 : index
      %c0_306 = arith.constant 0 : index
      %c0_307 = arith.constant 0 : index
      %592 = vector.load %arg1[%c189, %c0_306, %c0_307] : memref<411x8x128xf32, #tpu.memory_space<vmem>>, vector<1x8x128xf32>
      %593 = vector.shape_cast %592 : vector<1x8x128xf32> to vector<8x128xf32>
      %594 = arith.mulf %593, %229 : vector<8x128xf32>
      %595 = arith.addf %591, %594 : vector<8x128xf32>
      %cst_308 = arith.constant 1.000000e-01 : f32
      %596 = vector.broadcast %cst_308 : f32 to vector<8x128xf32>
      %597 = arith.mulf %596, %595 : vector<8x128xf32>
      %598 = arith.maximumf %595, %597 : vector<8x128xf32>
      %c206 = arith.constant 206 : index
      %c0_309 = arith.constant 0 : index
      %c0_310 = arith.constant 0 : index
      %599 = vector.load %arg1[%c206, %c0_309, %c0_310] : memref<411x8x128xf32, #tpu.memory_space<vmem>>, vector<1x8x128xf32>
      %600 = vector.shape_cast %599 : vector<1x8x128xf32> to vector<8x128xf32>
      %c62 = arith.constant 62 : index
      %c0_311 = arith.constant 0 : index
      %c0_312 = arith.constant 0 : index
      %601 = vector.load %arg1[%c62, %c0_311, %c0_312] : memref<411x8x128xf32, #tpu.memory_space<vmem>>, vector<1x8x128xf32>
      %602 = vector.shape_cast %601 : vector<1x8x128xf32> to vector<8x128xf32>
      %603 = arith.mulf %602, %61 : vector<8x128xf32>
      %604 = arith.addf %600, %603 : vector<8x128xf32>
      %c78 = arith.constant 78 : index
      %c0_313 = arith.constant 0 : index
      %c0_314 = arith.constant 0 : index
      %605 = vector.load %arg1[%c78, %c0_313, %c0_314] : memref<411x8x128xf32, #tpu.memory_space<vmem>>, vector<1x8x128xf32>
      %606 = vector.shape_cast %605 : vector<1x8x128xf32> to vector<8x128xf32>
      %607 = arith.mulf %606, %82 : vector<8x128xf32>
      %608 = arith.addf %604, %607 : vector<8x128xf32>
      %c94 = arith.constant 94 : index
      %c0_315 = arith.constant 0 : index
      %c0_316 = arith.constant 0 : index
      %609 = vector.load %arg1[%c94, %c0_315, %c0_316] : memref<411x8x128xf32, #tpu.memory_space<vmem>>, vector<1x8x128xf32>
      %610 = vector.shape_cast %609 : vector<1x8x128xf32> to vector<8x128xf32>
      %611 = arith.mulf %610, %103 : vector<8x128xf32>
      %612 = arith.addf %608, %611 : vector<8x128xf32>
      %c110 = arith.constant 110 : index
      %c0_317 = arith.constant 0 : index
      %c0_318 = arith.constant 0 : index
      %613 = vector.load %arg1[%c110, %c0_317, %c0_318] : memref<411x8x128xf32, #tpu.memory_space<vmem>>, vector<1x8x128xf32>
      %614 = vector.shape_cast %613 : vector<1x8x128xf32> to vector<8x128xf32>
      %615 = arith.mulf %614, %124 : vector<8x128xf32>
      %616 = arith.addf %612, %615 : vector<8x128xf32>
      %c126 = arith.constant 126 : index
      %c0_319 = arith.constant 0 : index
      %c0_320 = arith.constant 0 : index
      %617 = vector.load %arg1[%c126, %c0_319, %c0_320] : memref<411x8x128xf32, #tpu.memory_space<vmem>>, vector<1x8x128xf32>
      %618 = vector.shape_cast %617 : vector<1x8x128xf32> to vector<8x128xf32>
      %619 = arith.mulf %618, %145 : vector<8x128xf32>
      %620 = arith.addf %616, %619 : vector<8x128xf32>
      %c142 = arith.constant 142 : index
      %c0_321 = arith.constant 0 : index
      %c0_322 = arith.constant 0 : index
      %621 = vector.load %arg1[%c142, %c0_321, %c0_322] : memref<411x8x128xf32, #tpu.memory_space<vmem>>, vector<1x8x128xf32>
      %622 = vector.shape_cast %621 : vector<1x8x128xf32> to vector<8x128xf32>
      %623 = arith.mulf %622, %166 : vector<8x128xf32>
      %624 = arith.addf %620, %623 : vector<8x128xf32>
      %c158 = arith.constant 158 : index
      %c0_323 = arith.constant 0 : index
      %c0_324 = arith.constant 0 : index
      %625 = vector.load %arg1[%c158, %c0_323, %c0_324] : memref<411x8x128xf32, #tpu.memory_space<vmem>>, vector<1x8x128xf32>
      %626 = vector.shape_cast %625 : vector<1x8x128xf32> to vector<8x128xf32>
      %627 = arith.mulf %626, %187 : vector<8x128xf32>
      %628 = arith.addf %624, %627 : vector<8x128xf32>
      %c174 = arith.constant 174 : index
      %c0_325 = arith.constant 0 : index
      %c0_326 = arith.constant 0 : index
      %629 = vector.load %arg1[%c174, %c0_325, %c0_326] : memref<411x8x128xf32, #tpu.memory_space<vmem>>, vector<1x8x128xf32>
      %630 = vector.shape_cast %629 : vector<1x8x128xf32> to vector<8x128xf32>
      %631 = arith.mulf %630, %208 : vector<8x128xf32>
      %632 = arith.addf %628, %631 : vector<8x128xf32>
      %c190 = arith.constant 190 : index
      %c0_327 = arith.constant 0 : index
      %c0_328 = arith.constant 0 : index
      %633 = vector.load %arg1[%c190, %c0_327, %c0_328] : memref<411x8x128xf32, #tpu.memory_space<vmem>>, vector<1x8x128xf32>
      %634 = vector.shape_cast %633 : vector<1x8x128xf32> to vector<8x128xf32>
      %635 = arith.mulf %634, %229 : vector<8x128xf32>
      %636 = arith.addf %632, %635 : vector<8x128xf32>
      %cst_329 = arith.constant 1.000000e-01 : f32
      %637 = vector.broadcast %cst_329 : f32 to vector<8x128xf32>
      %638 = arith.mulf %637, %636 : vector<8x128xf32>
      %639 = arith.maximumf %636, %638 : vector<8x128xf32>
      %c207 = arith.constant 207 : index
      %c0_330 = arith.constant 0 : index
      %c0_331 = arith.constant 0 : index
      %640 = vector.load %arg1[%c207, %c0_330, %c0_331] : memref<411x8x128xf32, #tpu.memory_space<vmem>>, vector<1x8x128xf32>
      %641 = vector.shape_cast %640 : vector<1x8x128xf32> to vector<8x128xf32>
      %c63 = arith.constant 63 : index
      %c0_332 = arith.constant 0 : index
      %c0_333 = arith.constant 0 : index
      %642 = vector.load %arg1[%c63, %c0_332, %c0_333] : memref<411x8x128xf32, #tpu.memory_space<vmem>>, vector<1x8x128xf32>
      %643 = vector.shape_cast %642 : vector<1x8x128xf32> to vector<8x128xf32>
      %644 = arith.mulf %643, %61 : vector<8x128xf32>
      %645 = arith.addf %641, %644 : vector<8x128xf32>
      %c79 = arith.constant 79 : index
      %c0_334 = arith.constant 0 : index
      %c0_335 = arith.constant 0 : index
      %646 = vector.load %arg1[%c79, %c0_334, %c0_335] : memref<411x8x128xf32, #tpu.memory_space<vmem>>, vector<1x8x128xf32>
      %647 = vector.shape_cast %646 : vector<1x8x128xf32> to vector<8x128xf32>
      %648 = arith.mulf %647, %82 : vector<8x128xf32>
      %649 = arith.addf %645, %648 : vector<8x128xf32>
      %c95 = arith.constant 95 : index
      %c0_336 = arith.constant 0 : index
      %c0_337 = arith.constant 0 : index
      %650 = vector.load %arg1[%c95, %c0_336, %c0_337] : memref<411x8x128xf32, #tpu.memory_space<vmem>>, vector<1x8x128xf32>
      %651 = vector.shape_cast %650 : vector<1x8x128xf32> to vector<8x128xf32>
      %652 = arith.mulf %651, %103 : vector<8x128xf32>
      %653 = arith.addf %649, %652 : vector<8x128xf32>
      %c111 = arith.constant 111 : index
      %c0_338 = arith.constant 0 : index
      %c0_339 = arith.constant 0 : index
      %654 = vector.load %arg1[%c111, %c0_338, %c0_339] : memref<411x8x128xf32, #tpu.memory_space<vmem>>, vector<1x8x128xf32>
      %655 = vector.shape_cast %654 : vector<1x8x128xf32> to vector<8x128xf32>
      %656 = arith.mulf %655, %124 : vector<8x128xf32>
      %657 = arith.addf %653, %656 : vector<8x128xf32>
      %c127 = arith.constant 127 : index
      %c0_340 = arith.constant 0 : index
      %c0_341 = arith.constant 0 : index
      %658 = vector.load %arg1[%c127, %c0_340, %c0_341] : memref<411x8x128xf32, #tpu.memory_space<vmem>>, vector<1x8x128xf32>
      %659 = vector.shape_cast %658 : vector<1x8x128xf32> to vector<8x128xf32>
      %660 = arith.mulf %659, %145 : vector<8x128xf32>
      %661 = arith.addf %657, %660 : vector<8x128xf32>
      %c143 = arith.constant 143 : index
      %c0_342 = arith.constant 0 : index
      %c0_343 = arith.constant 0 : index
      %662 = vector.load %arg1[%c143, %c0_342, %c0_343] : memref<411x8x128xf32, #tpu.memory_space<vmem>>, vector<1x8x128xf32>
      %663 = vector.shape_cast %662 : vector<1x8x128xf32> to vector<8x128xf32>
      %664 = arith.mulf %663, %166 : vector<8x128xf32>
      %665 = arith.addf %661, %664 : vector<8x128xf32>
      %c159 = arith.constant 159 : index
      %c0_344 = arith.constant 0 : index
      %c0_345 = arith.constant 0 : index
      %666 = vector.load %arg1[%c159, %c0_344, %c0_345] : memref<411x8x128xf32, #tpu.memory_space<vmem>>, vector<1x8x128xf32>
      %667 = vector.shape_cast %666 : vector<1x8x128xf32> to vector<8x128xf32>
      %668 = arith.mulf %667, %187 : vector<8x128xf32>
      %669 = arith.addf %665, %668 : vector<8x128xf32>
      %c175 = arith.constant 175 : index
      %c0_346 = arith.constant 0 : index
      %c0_347 = arith.constant 0 : index
      %670 = vector.load %arg1[%c175, %c0_346, %c0_347] : memref<411x8x128xf32, #tpu.memory_space<vmem>>, vector<1x8x128xf32>
      %671 = vector.shape_cast %670 : vector<1x8x128xf32> to vector<8x128xf32>
      %672 = arith.mulf %671, %208 : vector<8x128xf32>
      %673 = arith.addf %669, %672 : vector<8x128xf32>
      %c191 = arith.constant 191 : index
      %c0_348 = arith.constant 0 : index
      %c0_349 = arith.constant 0 : index
      %674 = vector.load %arg1[%c191, %c0_348, %c0_349] : memref<411x8x128xf32, #tpu.memory_space<vmem>>, vector<1x8x128xf32>
      %675 = vector.shape_cast %674 : vector<1x8x128xf32> to vector<8x128xf32>
      %676 = arith.mulf %675, %229 : vector<8x128xf32>
      %677 = arith.addf %673, %676 : vector<8x128xf32>
      %cst_350 = arith.constant 1.000000e-01 : f32
      %678 = vector.broadcast %cst_350 : f32 to vector<8x128xf32>
      %679 = arith.mulf %678, %677 : vector<8x128xf32>
      %680 = arith.maximumf %677, %679 : vector<8x128xf32>
      %c208 = arith.constant 208 : index
      %c0_351 = arith.constant 0 : index
      %c0_352 = arith.constant 0 : index
      %681 = vector.load %arg1[%c208, %c0_351, %c0_352] : memref<411x8x128xf32, #tpu.memory_space<vmem>>, vector<1x8x128xf32>
      %682 = vector.shape_cast %681 : vector<1x8x128xf32> to vector<8x128xf32>
      %c64 = arith.constant 64 : index
      %c0_353 = arith.constant 0 : index
      %c0_354 = arith.constant 0 : index
      %683 = vector.load %arg1[%c64, %c0_353, %c0_354] : memref<411x8x128xf32, #tpu.memory_space<vmem>>, vector<1x8x128xf32>
      %684 = vector.shape_cast %683 : vector<1x8x128xf32> to vector<8x128xf32>
      %685 = arith.mulf %684, %61 : vector<8x128xf32>
      %686 = arith.addf %682, %685 : vector<8x128xf32>
      %c80 = arith.constant 80 : index
      %c0_355 = arith.constant 0 : index
      %c0_356 = arith.constant 0 : index
      %687 = vector.load %arg1[%c80, %c0_355, %c0_356] : memref<411x8x128xf32, #tpu.memory_space<vmem>>, vector<1x8x128xf32>
      %688 = vector.shape_cast %687 : vector<1x8x128xf32> to vector<8x128xf32>
      %689 = arith.mulf %688, %82 : vector<8x128xf32>
      %690 = arith.addf %686, %689 : vector<8x128xf32>
      %c96 = arith.constant 96 : index
      %c0_357 = arith.constant 0 : index
      %c0_358 = arith.constant 0 : index
      %691 = vector.load %arg1[%c96, %c0_357, %c0_358] : memref<411x8x128xf32, #tpu.memory_space<vmem>>, vector<1x8x128xf32>
      %692 = vector.shape_cast %691 : vector<1x8x128xf32> to vector<8x128xf32>
      %693 = arith.mulf %692, %103 : vector<8x128xf32>
      %694 = arith.addf %690, %693 : vector<8x128xf32>
      %c112 = arith.constant 112 : index
      %c0_359 = arith.constant 0 : index
      %c0_360 = arith.constant 0 : index
      %695 = vector.load %arg1[%c112, %c0_359, %c0_360] : memref<411x8x128xf32, #tpu.memory_space<vmem>>, vector<1x8x128xf32>
      %696 = vector.shape_cast %695 : vector<1x8x128xf32> to vector<8x128xf32>
      %697 = arith.mulf %696, %124 : vector<8x128xf32>
      %698 = arith.addf %694, %697 : vector<8x128xf32>
      %c128 = arith.constant 128 : index
      %c0_361 = arith.constant 0 : index
      %c0_362 = arith.constant 0 : index
      %699 = vector.load %arg1[%c128, %c0_361, %c0_362] : memref<411x8x128xf32, #tpu.memory_space<vmem>>, vector<1x8x128xf32>
      %700 = vector.shape_cast %699 : vector<1x8x128xf32> to vector<8x128xf32>
      %701 = arith.mulf %700, %145 : vector<8x128xf32>
      %702 = arith.addf %698, %701 : vector<8x128xf32>
      %c144 = arith.constant 144 : index
      %c0_363 = arith.constant 0 : index
      %c0_364 = arith.constant 0 : index
      %703 = vector.load %arg1[%c144, %c0_363, %c0_364] : memref<411x8x128xf32, #tpu.memory_space<vmem>>, vector<1x8x128xf32>
      %704 = vector.shape_cast %703 : vector<1x8x128xf32> to vector<8x128xf32>
      %705 = arith.mulf %704, %166 : vector<8x128xf32>
      %706 = arith.addf %702, %705 : vector<8x128xf32>
      %c160 = arith.constant 160 : index
      %c0_365 = arith.constant 0 : index
      %c0_366 = arith.constant 0 : index
      %707 = vector.load %arg1[%c160, %c0_365, %c0_366] : memref<411x8x128xf32, #tpu.memory_space<vmem>>, vector<1x8x128xf32>
      %708 = vector.shape_cast %707 : vector<1x8x128xf32> to vector<8x128xf32>
      %709 = arith.mulf %708, %187 : vector<8x128xf32>
      %710 = arith.addf %706, %709 : vector<8x128xf32>
      %c176 = arith.constant 176 : index
      %c0_367 = arith.constant 0 : index
      %c0_368 = arith.constant 0 : index
      %711 = vector.load %arg1[%c176, %c0_367, %c0_368] : memref<411x8x128xf32, #tpu.memory_space<vmem>>, vector<1x8x128xf32>
      %712 = vector.shape_cast %711 : vector<1x8x128xf32> to vector<8x128xf32>
      %713 = arith.mulf %712, %208 : vector<8x128xf32>
      %714 = arith.addf %710, %713 : vector<8x128xf32>
      %c192 = arith.constant 192 : index
      %c0_369 = arith.constant 0 : index
      %c0_370 = arith.constant 0 : index
      %715 = vector.load %arg1[%c192, %c0_369, %c0_370] : memref<411x8x128xf32, #tpu.memory_space<vmem>>, vector<1x8x128xf32>
      %716 = vector.shape_cast %715 : vector<1x8x128xf32> to vector<8x128xf32>
      %717 = arith.mulf %716, %229 : vector<8x128xf32>
      %718 = arith.addf %714, %717 : vector<8x128xf32>
      %cst_371 = arith.constant 1.000000e-01 : f32
      %719 = vector.broadcast %cst_371 : f32 to vector<8x128xf32>
      %720 = arith.mulf %719, %718 : vector<8x128xf32>
      %721 = arith.maximumf %718, %720 : vector<8x128xf32>
      %c209 = arith.constant 209 : index
      %c0_372 = arith.constant 0 : index
      %c0_373 = arith.constant 0 : index
      %722 = vector.load %arg1[%c209, %c0_372, %c0_373] : memref<411x8x128xf32, #tpu.memory_space<vmem>>, vector<1x8x128xf32>
      %723 = vector.shape_cast %722 : vector<1x8x128xf32> to vector<8x128xf32>
      %c65 = arith.constant 65 : index
      %c0_374 = arith.constant 0 : index
      %c0_375 = arith.constant 0 : index
      %724 = vector.load %arg1[%c65, %c0_374, %c0_375] : memref<411x8x128xf32, #tpu.memory_space<vmem>>, vector<1x8x128xf32>
      %725 = vector.shape_cast %724 : vector<1x8x128xf32> to vector<8x128xf32>
      %726 = arith.mulf %725, %61 : vector<8x128xf32>
      %727 = arith.addf %723, %726 : vector<8x128xf32>
      %c81 = arith.constant 81 : index
      %c0_376 = arith.constant 0 : index
      %c0_377 = arith.constant 0 : index
      %728 = vector.load %arg1[%c81, %c0_376, %c0_377] : memref<411x8x128xf32, #tpu.memory_space<vmem>>, vector<1x8x128xf32>
      %729 = vector.shape_cast %728 : vector<1x8x128xf32> to vector<8x128xf32>
      %730 = arith.mulf %729, %82 : vector<8x128xf32>
      %731 = arith.addf %727, %730 : vector<8x128xf32>
      %c97 = arith.constant 97 : index
      %c0_378 = arith.constant 0 : index
      %c0_379 = arith.constant 0 : index
      %732 = vector.load %arg1[%c97, %c0_378, %c0_379] : memref<411x8x128xf32, #tpu.memory_space<vmem>>, vector<1x8x128xf32>
      %733 = vector.shape_cast %732 : vector<1x8x128xf32> to vector<8x128xf32>
      %734 = arith.mulf %733, %103 : vector<8x128xf32>
      %735 = arith.addf %731, %734 : vector<8x128xf32>
      %c113 = arith.constant 113 : index
      %c0_380 = arith.constant 0 : index
      %c0_381 = arith.constant 0 : index
      %736 = vector.load %arg1[%c113, %c0_380, %c0_381] : memref<411x8x128xf32, #tpu.memory_space<vmem>>, vector<1x8x128xf32>
      %737 = vector.shape_cast %736 : vector<1x8x128xf32> to vector<8x128xf32>
      %738 = arith.mulf %737, %124 : vector<8x128xf32>
      %739 = arith.addf %735, %738 : vector<8x128xf32>
      %c129 = arith.constant 129 : index
      %c0_382 = arith.constant 0 : index
      %c0_383 = arith.constant 0 : index
      %740 = vector.load %arg1[%c129, %c0_382, %c0_383] : memref<411x8x128xf32, #tpu.memory_space<vmem>>, vector<1x8x128xf32>
      %741 = vector.shape_cast %740 : vector<1x8x128xf32> to vector<8x128xf32>
      %742 = arith.mulf %741, %145 : vector<8x128xf32>
      %743 = arith.addf %739, %742 : vector<8x128xf32>
      %c145 = arith.constant 145 : index
      %c0_384 = arith.constant 0 : index
      %c0_385 = arith.constant 0 : index
      %744 = vector.load %arg1[%c145, %c0_384, %c0_385] : memref<411x8x128xf32, #tpu.memory_space<vmem>>, vector<1x8x128xf32>
      %745 = vector.shape_cast %744 : vector<1x8x128xf32> to vector<8x128xf32>
      %746 = arith.mulf %745, %166 : vector<8x128xf32>
      %747 = arith.addf %743, %746 : vector<8x128xf32>
      %c161 = arith.constant 161 : index
      %c0_386 = arith.constant 0 : index
      %c0_387 = arith.constant 0 : index
      %748 = vector.load %arg1[%c161, %c0_386, %c0_387] : memref<411x8x128xf32, #tpu.memory_space<vmem>>, vector<1x8x128xf32>
      %749 = vector.shape_cast %748 : vector<1x8x128xf32> to vector<8x128xf32>
      %750 = arith.mulf %749, %187 : vector<8x128xf32>
      %751 = arith.addf %747, %750 : vector<8x128xf32>
      %c177 = arith.constant 177 : index
      %c0_388 = arith.constant 0 : index
      %c0_389 = arith.constant 0 : index
      %752 = vector.load %arg1[%c177, %c0_388, %c0_389] : memref<411x8x128xf32, #tpu.memory_space<vmem>>, vector<1x8x128xf32>
      %753 = vector.shape_cast %752 : vector<1x8x128xf32> to vector<8x128xf32>
      %754 = arith.mulf %753, %208 : vector<8x128xf32>
      %755 = arith.addf %751, %754 : vector<8x128xf32>
      %c193 = arith.constant 193 : index
      %c0_390 = arith.constant 0 : index
      %c0_391 = arith.constant 0 : index
      %756 = vector.load %arg1[%c193, %c0_390, %c0_391] : memref<411x8x128xf32, #tpu.memory_space<vmem>>, vector<1x8x128xf32>
      %757 = vector.shape_cast %756 : vector<1x8x128xf32> to vector<8x128xf32>
      %758 = arith.mulf %757, %229 : vector<8x128xf32>
      %759 = arith.addf %755, %758 : vector<8x128xf32>
      %cst_392 = arith.constant 1.000000e-01 : f32
      %760 = vector.broadcast %cst_392 : f32 to vector<8x128xf32>
      %761 = arith.mulf %760, %759 : vector<8x128xf32>
      %762 = arith.maximumf %759, %761 : vector<8x128xf32>
      %c210 = arith.constant 210 : index
      %c0_393 = arith.constant 0 : index
      %c0_394 = arith.constant 0 : index
      %763 = vector.load %arg1[%c210, %c0_393, %c0_394] : memref<411x8x128xf32, #tpu.memory_space<vmem>>, vector<1x8x128xf32>
      %764 = vector.shape_cast %763 : vector<1x8x128xf32> to vector<8x128xf32>
      %c66 = arith.constant 66 : index
      %c0_395 = arith.constant 0 : index
      %c0_396 = arith.constant 0 : index
      %765 = vector.load %arg1[%c66, %c0_395, %c0_396] : memref<411x8x128xf32, #tpu.memory_space<vmem>>, vector<1x8x128xf32>
      %766 = vector.shape_cast %765 : vector<1x8x128xf32> to vector<8x128xf32>
      %767 = arith.mulf %766, %61 : vector<8x128xf32>
      %768 = arith.addf %764, %767 : vector<8x128xf32>
      %c82 = arith.constant 82 : index
      %c0_397 = arith.constant 0 : index
      %c0_398 = arith.constant 0 : index
      %769 = vector.load %arg1[%c82, %c0_397, %c0_398] : memref<411x8x128xf32, #tpu.memory_space<vmem>>, vector<1x8x128xf32>
      %770 = vector.shape_cast %769 : vector<1x8x128xf32> to vector<8x128xf32>
      %771 = arith.mulf %770, %82 : vector<8x128xf32>
      %772 = arith.addf %768, %771 : vector<8x128xf32>
      %c98 = arith.constant 98 : index
      %c0_399 = arith.constant 0 : index
      %c0_400 = arith.constant 0 : index
      %773 = vector.load %arg1[%c98, %c0_399, %c0_400] : memref<411x8x128xf32, #tpu.memory_space<vmem>>, vector<1x8x128xf32>
      %774 = vector.shape_cast %773 : vector<1x8x128xf32> to vector<8x128xf32>
      %775 = arith.mulf %774, %103 : vector<8x128xf32>
      %776 = arith.addf %772, %775 : vector<8x128xf32>
      %c114 = arith.constant 114 : index
      %c0_401 = arith.constant 0 : index
      %c0_402 = arith.constant 0 : index
      %777 = vector.load %arg1[%c114, %c0_401, %c0_402] : memref<411x8x128xf32, #tpu.memory_space<vmem>>, vector<1x8x128xf32>
      %778 = vector.shape_cast %777 : vector<1x8x128xf32> to vector<8x128xf32>
      %779 = arith.mulf %778, %124 : vector<8x128xf32>
      %780 = arith.addf %776, %779 : vector<8x128xf32>
      %c130 = arith.constant 130 : index
      %c0_403 = arith.constant 0 : index
      %c0_404 = arith.constant 0 : index
      %781 = vector.load %arg1[%c130, %c0_403, %c0_404] : memref<411x8x128xf32, #tpu.memory_space<vmem>>, vector<1x8x128xf32>
      %782 = vector.shape_cast %781 : vector<1x8x128xf32> to vector<8x128xf32>
      %783 = arith.mulf %782, %145 : vector<8x128xf32>
      %784 = arith.addf %780, %783 : vector<8x128xf32>
      %c146 = arith.constant 146 : index
      %c0_405 = arith.constant 0 : index
      %c0_406 = arith.constant 0 : index
      %785 = vector.load %arg1[%c146, %c0_405, %c0_406] : memref<411x8x128xf32, #tpu.memory_space<vmem>>, vector<1x8x128xf32>
      %786 = vector.shape_cast %785 : vector<1x8x128xf32> to vector<8x128xf32>
      %787 = arith.mulf %786, %166 : vector<8x128xf32>
      %788 = arith.addf %784, %787 : vector<8x128xf32>
      %c162 = arith.constant 162 : index
      %c0_407 = arith.constant 0 : index
      %c0_408 = arith.constant 0 : index
      %789 = vector.load %arg1[%c162, %c0_407, %c0_408] : memref<411x8x128xf32, #tpu.memory_space<vmem>>, vector<1x8x128xf32>
      %790 = vector.shape_cast %789 : vector<1x8x128xf32> to vector<8x128xf32>
      %791 = arith.mulf %790, %187 : vector<8x128xf32>
      %792 = arith.addf %788, %791 : vector<8x128xf32>
      %c178 = arith.constant 178 : index
      %c0_409 = arith.constant 0 : index
      %c0_410 = arith.constant 0 : index
      %793 = vector.load %arg1[%c178, %c0_409, %c0_410] : memref<411x8x128xf32, #tpu.memory_space<vmem>>, vector<1x8x128xf32>
      %794 = vector.shape_cast %793 : vector<1x8x128xf32> to vector<8x128xf32>
      %795 = arith.mulf %794, %208 : vector<8x128xf32>
      %796 = arith.addf %792, %795 : vector<8x128xf32>
      %c194 = arith.constant 194 : index
      %c0_411 = arith.constant 0 : index
      %c0_412 = arith.constant 0 : index
      %797 = vector.load %arg1[%c194, %c0_411, %c0_412] : memref<411x8x128xf32, #tpu.memory_space<vmem>>, vector<1x8x128xf32>
      %798 = vector.shape_cast %797 : vector<1x8x128xf32> to vector<8x128xf32>
      %799 = arith.mulf %798, %229 : vector<8x128xf32>
      %800 = arith.addf %796, %799 : vector<8x128xf32>
      %cst_413 = arith.constant 1.000000e-01 : f32
      %801 = vector.broadcast %cst_413 : f32 to vector<8x128xf32>
      %802 = arith.mulf %801, %800 : vector<8x128xf32>
      %803 = arith.maximumf %800, %802 : vector<8x128xf32>
      %c211 = arith.constant 211 : index
      %c0_414 = arith.constant 0 : index
      %c0_415 = arith.constant 0 : index
      %804 = vector.load %arg1[%c211, %c0_414, %c0_415] : memref<411x8x128xf32, #tpu.memory_space<vmem>>, vector<1x8x128xf32>
      %805 = vector.shape_cast %804 : vector<1x8x128xf32> to vector<8x128xf32>
      %c67 = arith.constant 67 : index
      %c0_416 = arith.constant 0 : index
      %c0_417 = arith.constant 0 : index
      %806 = vector.load %arg1[%c67, %c0_416, %c0_417] : memref<411x8x128xf32, #tpu.memory_space<vmem>>, vector<1x8x128xf32>
      %807 = vector.shape_cast %806 : vector<1x8x128xf32> to vector<8x128xf32>
      %808 = arith.mulf %807, %61 : vector<8x128xf32>
      %809 = arith.addf %805, %808 : vector<8x128xf32>
      %c83 = arith.constant 83 : index
      %c0_418 = arith.constant 0 : index
      %c0_419 = arith.constant 0 : index
      %810 = vector.load %arg1[%c83, %c0_418, %c0_419] : memref<411x8x128xf32, #tpu.memory_space<vmem>>, vector<1x8x128xf32>
      %811 = vector.shape_cast %810 : vector<1x8x128xf32> to vector<8x128xf32>
      %812 = arith.mulf %811, %82 : vector<8x128xf32>
      %813 = arith.addf %809, %812 : vector<8x128xf32>
      %c99 = arith.constant 99 : index
      %c0_420 = arith.constant 0 : index
      %c0_421 = arith.constant 0 : index
      %814 = vector.load %arg1[%c99, %c0_420, %c0_421] : memref<411x8x128xf32, #tpu.memory_space<vmem>>, vector<1x8x128xf32>
      %815 = vector.shape_cast %814 : vector<1x8x128xf32> to vector<8x128xf32>
      %816 = arith.mulf %815, %103 : vector<8x128xf32>
      %817 = arith.addf %813, %816 : vector<8x128xf32>
      %c115 = arith.constant 115 : index
      %c0_422 = arith.constant 0 : index
      %c0_423 = arith.constant 0 : index
      %818 = vector.load %arg1[%c115, %c0_422, %c0_423] : memref<411x8x128xf32, #tpu.memory_space<vmem>>, vector<1x8x128xf32>
      %819 = vector.shape_cast %818 : vector<1x8x128xf32> to vector<8x128xf32>
      %820 = arith.mulf %819, %124 : vector<8x128xf32>
      %821 = arith.addf %817, %820 : vector<8x128xf32>
      %c131 = arith.constant 131 : index
      %c0_424 = arith.constant 0 : index
      %c0_425 = arith.constant 0 : index
      %822 = vector.load %arg1[%c131, %c0_424, %c0_425] : memref<411x8x128xf32, #tpu.memory_space<vmem>>, vector<1x8x128xf32>
      %823 = vector.shape_cast %822 : vector<1x8x128xf32> to vector<8x128xf32>
      %824 = arith.mulf %823, %145 : vector<8x128xf32>
      %825 = arith.addf %821, %824 : vector<8x128xf32>
      %c147 = arith.constant 147 : index
      %c0_426 = arith.constant 0 : index
      %c0_427 = arith.constant 0 : index
      %826 = vector.load %arg1[%c147, %c0_426, %c0_427] : memref<411x8x128xf32, #tpu.memory_space<vmem>>, vector<1x8x128xf32>
      %827 = vector.shape_cast %826 : vector<1x8x128xf32> to vector<8x128xf32>
      %828 = arith.mulf %827, %166 : vector<8x128xf32>
      %829 = arith.addf %825, %828 : vector<8x128xf32>
      %c163 = arith.constant 163 : index
      %c0_428 = arith.constant 0 : index
      %c0_429 = arith.constant 0 : index
      %830 = vector.load %arg1[%c163, %c0_428, %c0_429] : memref<411x8x128xf32, #tpu.memory_space<vmem>>, vector<1x8x128xf32>
      %831 = vector.shape_cast %830 : vector<1x8x128xf32> to vector<8x128xf32>
      %832 = arith.mulf %831, %187 : vector<8x128xf32>
      %833 = arith.addf %829, %832 : vector<8x128xf32>
      %c179 = arith.constant 179 : index
      %c0_430 = arith.constant 0 : index
      %c0_431 = arith.constant 0 : index
      %834 = vector.load %arg1[%c179, %c0_430, %c0_431] : memref<411x8x128xf32, #tpu.memory_space<vmem>>, vector<1x8x128xf32>
      %835 = vector.shape_cast %834 : vector<1x8x128xf32> to vector<8x128xf32>
      %836 = arith.mulf %835, %208 : vector<8x128xf32>
      %837 = arith.addf %833, %836 : vector<8x128xf32>
      %c195 = arith.constant 195 : index
      %c0_432 = arith.constant 0 : index
      %c0_433 = arith.constant 0 : index
      %838 = vector.load %arg1[%c195, %c0_432, %c0_433] : memref<411x8x128xf32, #tpu.memory_space<vmem>>, vector<1x8x128xf32>
      %839 = vector.shape_cast %838 : vector<1x8x128xf32> to vector<8x128xf32>
      %840 = arith.mulf %839, %229 : vector<8x128xf32>
      %841 = arith.addf %837, %840 : vector<8x128xf32>
      %cst_434 = arith.constant 1.000000e-01 : f32
      %842 = vector.broadcast %cst_434 : f32 to vector<8x128xf32>
      %843 = arith.mulf %842, %841 : vector<8x128xf32>
      %844 = arith.maximumf %841, %843 : vector<8x128xf32>
      %c212 = arith.constant 212 : index
      %c0_435 = arith.constant 0 : index
      %c0_436 = arith.constant 0 : index
      %845 = vector.load %arg1[%c212, %c0_435, %c0_436] : memref<411x8x128xf32, #tpu.memory_space<vmem>>, vector<1x8x128xf32>
      %846 = vector.shape_cast %845 : vector<1x8x128xf32> to vector<8x128xf32>
      %c68 = arith.constant 68 : index
      %c0_437 = arith.constant 0 : index
      %c0_438 = arith.constant 0 : index
      %847 = vector.load %arg1[%c68, %c0_437, %c0_438] : memref<411x8x128xf32, #tpu.memory_space<vmem>>, vector<1x8x128xf32>
      %848 = vector.shape_cast %847 : vector<1x8x128xf32> to vector<8x128xf32>
      %849 = arith.mulf %848, %61 : vector<8x128xf32>
      %850 = arith.addf %846, %849 : vector<8x128xf32>
      %c84 = arith.constant 84 : index
      %c0_439 = arith.constant 0 : index
      %c0_440 = arith.constant 0 : index
      %851 = vector.load %arg1[%c84, %c0_439, %c0_440] : memref<411x8x128xf32, #tpu.memory_space<vmem>>, vector<1x8x128xf32>
      %852 = vector.shape_cast %851 : vector<1x8x128xf32> to vector<8x128xf32>
      %853 = arith.mulf %852, %82 : vector<8x128xf32>
      %854 = arith.addf %850, %853 : vector<8x128xf32>
      %c100 = arith.constant 100 : index
      %c0_441 = arith.constant 0 : index
      %c0_442 = arith.constant 0 : index
      %855 = vector.load %arg1[%c100, %c0_441, %c0_442] : memref<411x8x128xf32, #tpu.memory_space<vmem>>, vector<1x8x128xf32>
      %856 = vector.shape_cast %855 : vector<1x8x128xf32> to vector<8x128xf32>
      %857 = arith.mulf %856, %103 : vector<8x128xf32>
      %858 = arith.addf %854, %857 : vector<8x128xf32>
      %c116 = arith.constant 116 : index
      %c0_443 = arith.constant 0 : index
      %c0_444 = arith.constant 0 : index
      %859 = vector.load %arg1[%c116, %c0_443, %c0_444] : memref<411x8x128xf32, #tpu.memory_space<vmem>>, vector<1x8x128xf32>
      %860 = vector.shape_cast %859 : vector<1x8x128xf32> to vector<8x128xf32>
      %861 = arith.mulf %860, %124 : vector<8x128xf32>
      %862 = arith.addf %858, %861 : vector<8x128xf32>
      %c132 = arith.constant 132 : index
      %c0_445 = arith.constant 0 : index
      %c0_446 = arith.constant 0 : index
      %863 = vector.load %arg1[%c132, %c0_445, %c0_446] : memref<411x8x128xf32, #tpu.memory_space<vmem>>, vector<1x8x128xf32>
      %864 = vector.shape_cast %863 : vector<1x8x128xf32> to vector<8x128xf32>
      %865 = arith.mulf %864, %145 : vector<8x128xf32>
      %866 = arith.addf %862, %865 : vector<8x128xf32>
      %c148 = arith.constant 148 : index
      %c0_447 = arith.constant 0 : index
      %c0_448 = arith.constant 0 : index
      %867 = vector.load %arg1[%c148, %c0_447, %c0_448] : memref<411x8x128xf32, #tpu.memory_space<vmem>>, vector<1x8x128xf32>
      %868 = vector.shape_cast %867 : vector<1x8x128xf32> to vector<8x128xf32>
      %869 = arith.mulf %868, %166 : vector<8x128xf32>
      %870 = arith.addf %866, %869 : vector<8x128xf32>
      %c164 = arith.constant 164 : index
      %c0_449 = arith.constant 0 : index
      %c0_450 = arith.constant 0 : index
      %871 = vector.load %arg1[%c164, %c0_449, %c0_450] : memref<411x8x128xf32, #tpu.memory_space<vmem>>, vector<1x8x128xf32>
      %872 = vector.shape_cast %871 : vector<1x8x128xf32> to vector<8x128xf32>
      %873 = arith.mulf %872, %187 : vector<8x128xf32>
      %874 = arith.addf %870, %873 : vector<8x128xf32>
      %c180 = arith.constant 180 : index
      %c0_451 = arith.constant 0 : index
      %c0_452 = arith.constant 0 : index
      %875 = vector.load %arg1[%c180, %c0_451, %c0_452] : memref<411x8x128xf32, #tpu.memory_space<vmem>>, vector<1x8x128xf32>
      %876 = vector.shape_cast %875 : vector<1x8x128xf32> to vector<8x128xf32>
      %877 = arith.mulf %876, %208 : vector<8x128xf32>
      %878 = arith.addf %874, %877 : vector<8x128xf32>
      %c196 = arith.constant 196 : index
      %c0_453 = arith.constant 0 : index
      %c0_454 = arith.constant 0 : index
      %879 = vector.load %arg1[%c196, %c0_453, %c0_454] : memref<411x8x128xf32, #tpu.memory_space<vmem>>, vector<1x8x128xf32>
      %880 = vector.shape_cast %879 : vector<1x8x128xf32> to vector<8x128xf32>
      %881 = arith.mulf %880, %229 : vector<8x128xf32>
      %882 = arith.addf %878, %881 : vector<8x128xf32>
      %cst_455 = arith.constant 1.000000e-01 : f32
      %883 = vector.broadcast %cst_455 : f32 to vector<8x128xf32>
      %884 = arith.mulf %883, %882 : vector<8x128xf32>
      %885 = arith.maximumf %882, %884 : vector<8x128xf32>
      %c357 = arith.constant 357 : index
      %c0_456 = arith.constant 0 : index
      %c0_457 = arith.constant 0 : index
      %886 = vector.load %arg1[%c357, %c0_456, %c0_457] : memref<411x8x128xf32, #tpu.memory_space<vmem>>, vector<1x8x128xf32>
      %887 = vector.shape_cast %886 : vector<1x8x128xf32> to vector<8x128xf32>
      %c213 = arith.constant 213 : index
      %c0_458 = arith.constant 0 : index
      %c0_459 = arith.constant 0 : index
      %888 = vector.load %arg1[%c213, %c0_458, %c0_459] : memref<411x8x128xf32, #tpu.memory_space<vmem>>, vector<1x8x128xf32>
      %889 = vector.shape_cast %888 : vector<1x8x128xf32> to vector<8x128xf32>
      %890 = arith.mulf %889, %270 : vector<8x128xf32>
      %891 = arith.addf %887, %890 : vector<8x128xf32>
      %c222 = arith.constant 222 : index
      %c0_460 = arith.constant 0 : index
      %c0_461 = arith.constant 0 : index
      %892 = vector.load %arg1[%c222, %c0_460, %c0_461] : memref<411x8x128xf32, #tpu.memory_space<vmem>>, vector<1x8x128xf32>
      %893 = vector.shape_cast %892 : vector<1x8x128xf32> to vector<8x128xf32>
      %894 = arith.mulf %893, %311 : vector<8x128xf32>
      %895 = arith.addf %891, %894 : vector<8x128xf32>
      %c231 = arith.constant 231 : index
      %c0_462 = arith.constant 0 : index
      %c0_463 = arith.constant 0 : index
      %896 = vector.load %arg1[%c231, %c0_462, %c0_463] : memref<411x8x128xf32, #tpu.memory_space<vmem>>, vector<1x8x128xf32>
      %897 = vector.shape_cast %896 : vector<1x8x128xf32> to vector<8x128xf32>
      %898 = arith.mulf %897, %352 : vector<8x128xf32>
      %899 = arith.addf %895, %898 : vector<8x128xf32>
      %c240 = arith.constant 240 : index
      %c0_464 = arith.constant 0 : index
      %c0_465 = arith.constant 0 : index
      %900 = vector.load %arg1[%c240, %c0_464, %c0_465] : memref<411x8x128xf32, #tpu.memory_space<vmem>>, vector<1x8x128xf32>
      %901 = vector.shape_cast %900 : vector<1x8x128xf32> to vector<8x128xf32>
      %902 = arith.mulf %901, %393 : vector<8x128xf32>
      %903 = arith.addf %899, %902 : vector<8x128xf32>
      %c249 = arith.constant 249 : index
      %c0_466 = arith.constant 0 : index
      %c0_467 = arith.constant 0 : index
      %904 = vector.load %arg1[%c249, %c0_466, %c0_467] : memref<411x8x128xf32, #tpu.memory_space<vmem>>, vector<1x8x128xf32>
      %905 = vector.shape_cast %904 : vector<1x8x128xf32> to vector<8x128xf32>
      %906 = arith.mulf %905, %434 : vector<8x128xf32>
      %907 = arith.addf %903, %906 : vector<8x128xf32>
      %c258 = arith.constant 258 : index
      %c0_468 = arith.constant 0 : index
      %c0_469 = arith.constant 0 : index
      %908 = vector.load %arg1[%c258, %c0_468, %c0_469] : memref<411x8x128xf32, #tpu.memory_space<vmem>>, vector<1x8x128xf32>
      %909 = vector.shape_cast %908 : vector<1x8x128xf32> to vector<8x128xf32>
      %910 = arith.mulf %909, %475 : vector<8x128xf32>
      %911 = arith.addf %907, %910 : vector<8x128xf32>
      %c267 = arith.constant 267 : index
      %c0_470 = arith.constant 0 : index
      %c0_471 = arith.constant 0 : index
      %912 = vector.load %arg1[%c267, %c0_470, %c0_471] : memref<411x8x128xf32, #tpu.memory_space<vmem>>, vector<1x8x128xf32>
      %913 = vector.shape_cast %912 : vector<1x8x128xf32> to vector<8x128xf32>
      %914 = arith.mulf %913, %516 : vector<8x128xf32>
      %915 = arith.addf %911, %914 : vector<8x128xf32>
      %c276 = arith.constant 276 : index
      %c0_472 = arith.constant 0 : index
      %c0_473 = arith.constant 0 : index
      %916 = vector.load %arg1[%c276, %c0_472, %c0_473] : memref<411x8x128xf32, #tpu.memory_space<vmem>>, vector<1x8x128xf32>
      %917 = vector.shape_cast %916 : vector<1x8x128xf32> to vector<8x128xf32>
      %918 = arith.mulf %917, %557 : vector<8x128xf32>
      %919 = arith.addf %915, %918 : vector<8x128xf32>
      %c285 = arith.constant 285 : index
      %c0_474 = arith.constant 0 : index
      %c0_475 = arith.constant 0 : index
      %920 = vector.load %arg1[%c285, %c0_474, %c0_475] : memref<411x8x128xf32, #tpu.memory_space<vmem>>, vector<1x8x128xf32>
      %921 = vector.shape_cast %920 : vector<1x8x128xf32> to vector<8x128xf32>
      %922 = arith.mulf %921, %598 : vector<8x128xf32>
      %923 = arith.addf %919, %922 : vector<8x128xf32>
      %c294 = arith.constant 294 : index
      %c0_476 = arith.constant 0 : index
      %c0_477 = arith.constant 0 : index
      %924 = vector.load %arg1[%c294, %c0_476, %c0_477] : memref<411x8x128xf32, #tpu.memory_space<vmem>>, vector<1x8x128xf32>
      %925 = vector.shape_cast %924 : vector<1x8x128xf32> to vector<8x128xf32>
      %926 = arith.mulf %925, %639 : vector<8x128xf32>
      %927 = arith.addf %923, %926 : vector<8x128xf32>
      %c303 = arith.constant 303 : index
      %c0_478 = arith.constant 0 : index
      %c0_479 = arith.constant 0 : index
      %928 = vector.load %arg1[%c303, %c0_478, %c0_479] : memref<411x8x128xf32, #tpu.memory_space<vmem>>, vector<1x8x128xf32>
      %929 = vector.shape_cast %928 : vector<1x8x128xf32> to vector<8x128xf32>
      %930 = arith.mulf %929, %680 : vector<8x128xf32>
      %931 = arith.addf %927, %930 : vector<8x128xf32>
      %c312 = arith.constant 312 : index
      %c0_480 = arith.constant 0 : index
      %c0_481 = arith.constant 0 : index
      %932 = vector.load %arg1[%c312, %c0_480, %c0_481] : memref<411x8x128xf32, #tpu.memory_space<vmem>>, vector<1x8x128xf32>
      %933 = vector.shape_cast %932 : vector<1x8x128xf32> to vector<8x128xf32>
      %934 = arith.mulf %933, %721 : vector<8x128xf32>
      %935 = arith.addf %931, %934 : vector<8x128xf32>
      %c321 = arith.constant 321 : index
      %c0_482 = arith.constant 0 : index
      %c0_483 = arith.constant 0 : index
      %936 = vector.load %arg1[%c321, %c0_482, %c0_483] : memref<411x8x128xf32, #tpu.memory_space<vmem>>, vector<1x8x128xf32>
      %937 = vector.shape_cast %936 : vector<1x8x128xf32> to vector<8x128xf32>
      %938 = arith.mulf %937, %762 : vector<8x128xf32>
      %939 = arith.addf %935, %938 : vector<8x128xf32>
      %c330 = arith.constant 330 : index
      %c0_484 = arith.constant 0 : index
      %c0_485 = arith.constant 0 : index
      %940 = vector.load %arg1[%c330, %c0_484, %c0_485] : memref<411x8x128xf32, #tpu.memory_space<vmem>>, vector<1x8x128xf32>
      %941 = vector.shape_cast %940 : vector<1x8x128xf32> to vector<8x128xf32>
      %942 = arith.mulf %941, %803 : vector<8x128xf32>
      %943 = arith.addf %939, %942 : vector<8x128xf32>
      %c339 = arith.constant 339 : index
      %c0_486 = arith.constant 0 : index
      %c0_487 = arith.constant 0 : index
      %944 = vector.load %arg1[%c339, %c0_486, %c0_487] : memref<411x8x128xf32, #tpu.memory_space<vmem>>, vector<1x8x128xf32>
      %945 = vector.shape_cast %944 : vector<1x8x128xf32> to vector<8x128xf32>
      %946 = arith.mulf %945, %844 : vector<8x128xf32>
      %947 = arith.addf %943, %946 : vector<8x128xf32>
      %c348 = arith.constant 348 : index
      %c0_488 = arith.constant 0 : index
      %c0_489 = arith.constant 0 : index
      %948 = vector.load %arg1[%c348, %c0_488, %c0_489] : memref<411x8x128xf32, #tpu.memory_space<vmem>>, vector<1x8x128xf32>
      %949 = vector.shape_cast %948 : vector<1x8x128xf32> to vector<8x128xf32>
      %950 = arith.mulf %949, %885 : vector<8x128xf32>
      %951 = arith.addf %947, %950 : vector<8x128xf32>
      %cst_490 = arith.constant 1.000000e-01 : f32
      %952 = vector.broadcast %cst_490 : f32 to vector<8x128xf32>
      %953 = arith.mulf %952, %951 : vector<8x128xf32>
      %954 = arith.maximumf %951, %953 : vector<8x128xf32>
      %c358 = arith.constant 358 : index
      %c0_491 = arith.constant 0 : index
      %c0_492 = arith.constant 0 : index
      %955 = vector.load %arg1[%c358, %c0_491, %c0_492] : memref<411x8x128xf32, #tpu.memory_space<vmem>>, vector<1x8x128xf32>
      %956 = vector.shape_cast %955 : vector<1x8x128xf32> to vector<8x128xf32>
      %c214 = arith.constant 214 : index
      %c0_493 = arith.constant 0 : index
      %c0_494 = arith.constant 0 : index
      %957 = vector.load %arg1[%c214, %c0_493, %c0_494] : memref<411x8x128xf32, #tpu.memory_space<vmem>>, vector<1x8x128xf32>
      %958 = vector.shape_cast %957 : vector<1x8x128xf32> to vector<8x128xf32>
      %959 = arith.mulf %958, %270 : vector<8x128xf32>
      %960 = arith.addf %956, %959 : vector<8x128xf32>
      %c223 = arith.constant 223 : index
      %c0_495 = arith.constant 0 : index
      %c0_496 = arith.constant 0 : index
      %961 = vector.load %arg1[%c223, %c0_495, %c0_496] : memref<411x8x128xf32, #tpu.memory_space<vmem>>, vector<1x8x128xf32>
      %962 = vector.shape_cast %961 : vector<1x8x128xf32> to vector<8x128xf32>
      %963 = arith.mulf %962, %311 : vector<8x128xf32>
      %964 = arith.addf %960, %963 : vector<8x128xf32>
      %c232 = arith.constant 232 : index
      %c0_497 = arith.constant 0 : index
      %c0_498 = arith.constant 0 : index
      %965 = vector.load %arg1[%c232, %c0_497, %c0_498] : memref<411x8x128xf32, #tpu.memory_space<vmem>>, vector<1x8x128xf32>
      %966 = vector.shape_cast %965 : vector<1x8x128xf32> to vector<8x128xf32>
      %967 = arith.mulf %966, %352 : vector<8x128xf32>
      %968 = arith.addf %964, %967 : vector<8x128xf32>
      %c241 = arith.constant 241 : index
      %c0_499 = arith.constant 0 : index
      %c0_500 = arith.constant 0 : index
      %969 = vector.load %arg1[%c241, %c0_499, %c0_500] : memref<411x8x128xf32, #tpu.memory_space<vmem>>, vector<1x8x128xf32>
      %970 = vector.shape_cast %969 : vector<1x8x128xf32> to vector<8x128xf32>
      %971 = arith.mulf %970, %393 : vector<8x128xf32>
      %972 = arith.addf %968, %971 : vector<8x128xf32>
      %c250 = arith.constant 250 : index
      %c0_501 = arith.constant 0 : index
      %c0_502 = arith.constant 0 : index
      %973 = vector.load %arg1[%c250, %c0_501, %c0_502] : memref<411x8x128xf32, #tpu.memory_space<vmem>>, vector<1x8x128xf32>
      %974 = vector.shape_cast %973 : vector<1x8x128xf32> to vector<8x128xf32>
      %975 = arith.mulf %974, %434 : vector<8x128xf32>
      %976 = arith.addf %972, %975 : vector<8x128xf32>
      %c259 = arith.constant 259 : index
      %c0_503 = arith.constant 0 : index
      %c0_504 = arith.constant 0 : index
      %977 = vector.load %arg1[%c259, %c0_503, %c0_504] : memref<411x8x128xf32, #tpu.memory_space<vmem>>, vector<1x8x128xf32>
      %978 = vector.shape_cast %977 : vector<1x8x128xf32> to vector<8x128xf32>
      %979 = arith.mulf %978, %475 : vector<8x128xf32>
      %980 = arith.addf %976, %979 : vector<8x128xf32>
      %c268 = arith.constant 268 : index
      %c0_505 = arith.constant 0 : index
      %c0_506 = arith.constant 0 : index
      %981 = vector.load %arg1[%c268, %c0_505, %c0_506] : memref<411x8x128xf32, #tpu.memory_space<vmem>>, vector<1x8x128xf32>
      %982 = vector.shape_cast %981 : vector<1x8x128xf32> to vector<8x128xf32>
      %983 = arith.mulf %982, %516 : vector<8x128xf32>
      %984 = arith.addf %980, %983 : vector<8x128xf32>
      %c277 = arith.constant 277 : index
      %c0_507 = arith.constant 0 : index
      %c0_508 = arith.constant 0 : index
      %985 = vector.load %arg1[%c277, %c0_507, %c0_508] : memref<411x8x128xf32, #tpu.memory_space<vmem>>, vector<1x8x128xf32>
      %986 = vector.shape_cast %985 : vector<1x8x128xf32> to vector<8x128xf32>
      %987 = arith.mulf %986, %557 : vector<8x128xf32>
      %988 = arith.addf %984, %987 : vector<8x128xf32>
      %c286 = arith.constant 286 : index
      %c0_509 = arith.constant 0 : index
      %c0_510 = arith.constant 0 : index
      %989 = vector.load %arg1[%c286, %c0_509, %c0_510] : memref<411x8x128xf32, #tpu.memory_space<vmem>>, vector<1x8x128xf32>
      %990 = vector.shape_cast %989 : vector<1x8x128xf32> to vector<8x128xf32>
      %991 = arith.mulf %990, %598 : vector<8x128xf32>
      %992 = arith.addf %988, %991 : vector<8x128xf32>
      %c295 = arith.constant 295 : index
      %c0_511 = arith.constant 0 : index
      %c0_512 = arith.constant 0 : index
      %993 = vector.load %arg1[%c295, %c0_511, %c0_512] : memref<411x8x128xf32, #tpu.memory_space<vmem>>, vector<1x8x128xf32>
      %994 = vector.shape_cast %993 : vector<1x8x128xf32> to vector<8x128xf32>
      %995 = arith.mulf %994, %639 : vector<8x128xf32>
      %996 = arith.addf %992, %995 : vector<8x128xf32>
      %c304 = arith.constant 304 : index
      %c0_513 = arith.constant 0 : index
      %c0_514 = arith.constant 0 : index
      %997 = vector.load %arg1[%c304, %c0_513, %c0_514] : memref<411x8x128xf32, #tpu.memory_space<vmem>>, vector<1x8x128xf32>
      %998 = vector.shape_cast %997 : vector<1x8x128xf32> to vector<8x128xf32>
      %999 = arith.mulf %998, %680 : vector<8x128xf32>
      %1000 = arith.addf %996, %999 : vector<8x128xf32>
      %c313 = arith.constant 313 : index
      %c0_515 = arith.constant 0 : index
      %c0_516 = arith.constant 0 : index
      %1001 = vector.load %arg1[%c313, %c0_515, %c0_516] : memref<411x8x128xf32, #tpu.memory_space<vmem>>, vector<1x8x128xf32>
      %1002 = vector.shape_cast %1001 : vector<1x8x128xf32> to vector<8x128xf32>
      %1003 = arith.mulf %1002, %721 : vector<8x128xf32>
      %1004 = arith.addf %1000, %1003 : vector<8x128xf32>
      %c322 = arith.constant 322 : index
      %c0_517 = arith.constant 0 : index
      %c0_518 = arith.constant 0 : index
      %1005 = vector.load %arg1[%c322, %c0_517, %c0_518] : memref<411x8x128xf32, #tpu.memory_space<vmem>>, vector<1x8x128xf32>
      %1006 = vector.shape_cast %1005 : vector<1x8x128xf32> to vector<8x128xf32>
      %1007 = arith.mulf %1006, %762 : vector<8x128xf32>
      %1008 = arith.addf %1004, %1007 : vector<8x128xf32>
      %c331 = arith.constant 331 : index
      %c0_519 = arith.constant 0 : index
      %c0_520 = arith.constant 0 : index
      %1009 = vector.load %arg1[%c331, %c0_519, %c0_520] : memref<411x8x128xf32, #tpu.memory_space<vmem>>, vector<1x8x128xf32>
      %1010 = vector.shape_cast %1009 : vector<1x8x128xf32> to vector<8x128xf32>
      %1011 = arith.mulf %1010, %803 : vector<8x128xf32>
      %1012 = arith.addf %1008, %1011 : vector<8x128xf32>
      %c340 = arith.constant 340 : index
      %c0_521 = arith.constant 0 : index
      %c0_522 = arith.constant 0 : index
      %1013 = vector.load %arg1[%c340, %c0_521, %c0_522] : memref<411x8x128xf32, #tpu.memory_space<vmem>>, vector<1x8x128xf32>
      %1014 = vector.shape_cast %1013 : vector<1x8x128xf32> to vector<8x128xf32>
      %1015 = arith.mulf %1014, %844 : vector<8x128xf32>
      %1016 = arith.addf %1012, %1015 : vector<8x128xf32>
      %c349 = arith.constant 349 : index
      %c0_523 = arith.constant 0 : index
      %c0_524 = arith.constant 0 : index
      %1017 = vector.load %arg1[%c349, %c0_523, %c0_524] : memref<411x8x128xf32, #tpu.memory_space<vmem>>, vector<1x8x128xf32>
      %1018 = vector.shape_cast %1017 : vector<1x8x128xf32> to vector<8x128xf32>
      %1019 = arith.mulf %1018, %885 : vector<8x128xf32>
      %1020 = arith.addf %1016, %1019 : vector<8x128xf32>
      %cst_525 = arith.constant 1.000000e-01 : f32
      %1021 = vector.broadcast %cst_525 : f32 to vector<8x128xf32>
      %1022 = arith.mulf %1021, %1020 : vector<8x128xf32>
      %1023 = arith.maximumf %1020, %1022 : vector<8x128xf32>
      %c359 = arith.constant 359 : index
      %c0_526 = arith.constant 0 : index
      %c0_527 = arith.constant 0 : index
      %1024 = vector.load %arg1[%c359, %c0_526, %c0_527] : memref<411x8x128xf32, #tpu.memory_space<vmem>>, vector<1x8x128xf32>
      %1025 = vector.shape_cast %1024 : vector<1x8x128xf32> to vector<8x128xf32>
      %c215 = arith.constant 215 : index
      %c0_528 = arith.constant 0 : index
      %c0_529 = arith.constant 0 : index
      %1026 = vector.load %arg1[%c215, %c0_528, %c0_529] : memref<411x8x128xf32, #tpu.memory_space<vmem>>, vector<1x8x128xf32>
      %1027 = vector.shape_cast %1026 : vector<1x8x128xf32> to vector<8x128xf32>
      %1028 = arith.mulf %1027, %270 : vector<8x128xf32>
      %1029 = arith.addf %1025, %1028 : vector<8x128xf32>
      %c224 = arith.constant 224 : index
      %c0_530 = arith.constant 0 : index
      %c0_531 = arith.constant 0 : index
      %1030 = vector.load %arg1[%c224, %c0_530, %c0_531] : memref<411x8x128xf32, #tpu.memory_space<vmem>>, vector<1x8x128xf32>
      %1031 = vector.shape_cast %1030 : vector<1x8x128xf32> to vector<8x128xf32>
      %1032 = arith.mulf %1031, %311 : vector<8x128xf32>
      %1033 = arith.addf %1029, %1032 : vector<8x128xf32>
      %c233 = arith.constant 233 : index
      %c0_532 = arith.constant 0 : index
      %c0_533 = arith.constant 0 : index
      %1034 = vector.load %arg1[%c233, %c0_532, %c0_533] : memref<411x8x128xf32, #tpu.memory_space<vmem>>, vector<1x8x128xf32>
      %1035 = vector.shape_cast %1034 : vector<1x8x128xf32> to vector<8x128xf32>
      %1036 = arith.mulf %1035, %352 : vector<8x128xf32>
      %1037 = arith.addf %1033, %1036 : vector<8x128xf32>
      %c242 = arith.constant 242 : index
      %c0_534 = arith.constant 0 : index
      %c0_535 = arith.constant 0 : index
      %1038 = vector.load %arg1[%c242, %c0_534, %c0_535] : memref<411x8x128xf32, #tpu.memory_space<vmem>>, vector<1x8x128xf32>
      %1039 = vector.shape_cast %1038 : vector<1x8x128xf32> to vector<8x128xf32>
      %1040 = arith.mulf %1039, %393 : vector<8x128xf32>
      %1041 = arith.addf %1037, %1040 : vector<8x128xf32>
      %c251 = arith.constant 251 : index
      %c0_536 = arith.constant 0 : index
      %c0_537 = arith.constant 0 : index
      %1042 = vector.load %arg1[%c251, %c0_536, %c0_537] : memref<411x8x128xf32, #tpu.memory_space<vmem>>, vector<1x8x128xf32>
      %1043 = vector.shape_cast %1042 : vector<1x8x128xf32> to vector<8x128xf32>
      %1044 = arith.mulf %1043, %434 : vector<8x128xf32>
      %1045 = arith.addf %1041, %1044 : vector<8x128xf32>
      %c260 = arith.constant 260 : index
      %c0_538 = arith.constant 0 : index
      %c0_539 = arith.constant 0 : index
      %1046 = vector.load %arg1[%c260, %c0_538, %c0_539] : memref<411x8x128xf32, #tpu.memory_space<vmem>>, vector<1x8x128xf32>
      %1047 = vector.shape_cast %1046 : vector<1x8x128xf32> to vector<8x128xf32>
      %1048 = arith.mulf %1047, %475 : vector<8x128xf32>
      %1049 = arith.addf %1045, %1048 : vector<8x128xf32>
      %c269 = arith.constant 269 : index
      %c0_540 = arith.constant 0 : index
      %c0_541 = arith.constant 0 : index
      %1050 = vector.load %arg1[%c269, %c0_540, %c0_541] : memref<411x8x128xf32, #tpu.memory_space<vmem>>, vector<1x8x128xf32>
      %1051 = vector.shape_cast %1050 : vector<1x8x128xf32> to vector<8x128xf32>
      %1052 = arith.mulf %1051, %516 : vector<8x128xf32>
      %1053 = arith.addf %1049, %1052 : vector<8x128xf32>
      %c278 = arith.constant 278 : index
      %c0_542 = arith.constant 0 : index
      %c0_543 = arith.constant 0 : index
      %1054 = vector.load %arg1[%c278, %c0_542, %c0_543] : memref<411x8x128xf32, #tpu.memory_space<vmem>>, vector<1x8x128xf32>
      %1055 = vector.shape_cast %1054 : vector<1x8x128xf32> to vector<8x128xf32>
      %1056 = arith.mulf %1055, %557 : vector<8x128xf32>
      %1057 = arith.addf %1053, %1056 : vector<8x128xf32>
      %c287 = arith.constant 287 : index
      %c0_544 = arith.constant 0 : index
      %c0_545 = arith.constant 0 : index
      %1058 = vector.load %arg1[%c287, %c0_544, %c0_545] : memref<411x8x128xf32, #tpu.memory_space<vmem>>, vector<1x8x128xf32>
      %1059 = vector.shape_cast %1058 : vector<1x8x128xf32> to vector<8x128xf32>
      %1060 = arith.mulf %1059, %598 : vector<8x128xf32>
      %1061 = arith.addf %1057, %1060 : vector<8x128xf32>
      %c296 = arith.constant 296 : index
      %c0_546 = arith.constant 0 : index
      %c0_547 = arith.constant 0 : index
      %1062 = vector.load %arg1[%c296, %c0_546, %c0_547] : memref<411x8x128xf32, #tpu.memory_space<vmem>>, vector<1x8x128xf32>
      %1063 = vector.shape_cast %1062 : vector<1x8x128xf32> to vector<8x128xf32>
      %1064 = arith.mulf %1063, %639 : vector<8x128xf32>
      %1065 = arith.addf %1061, %1064 : vector<8x128xf32>
      %c305 = arith.constant 305 : index
      %c0_548 = arith.constant 0 : index
      %c0_549 = arith.constant 0 : index
      %1066 = vector.load %arg1[%c305, %c0_548, %c0_549] : memref<411x8x128xf32, #tpu.memory_space<vmem>>, vector<1x8x128xf32>
      %1067 = vector.shape_cast %1066 : vector<1x8x128xf32> to vector<8x128xf32>
      %1068 = arith.mulf %1067, %680 : vector<8x128xf32>
      %1069 = arith.addf %1065, %1068 : vector<8x128xf32>
      %c314 = arith.constant 314 : index
      %c0_550 = arith.constant 0 : index
      %c0_551 = arith.constant 0 : index
      %1070 = vector.load %arg1[%c314, %c0_550, %c0_551] : memref<411x8x128xf32, #tpu.memory_space<vmem>>, vector<1x8x128xf32>
      %1071 = vector.shape_cast %1070 : vector<1x8x128xf32> to vector<8x128xf32>
      %1072 = arith.mulf %1071, %721 : vector<8x128xf32>
      %1073 = arith.addf %1069, %1072 : vector<8x128xf32>
      %c323 = arith.constant 323 : index
      %c0_552 = arith.constant 0 : index
      %c0_553 = arith.constant 0 : index
      %1074 = vector.load %arg1[%c323, %c0_552, %c0_553] : memref<411x8x128xf32, #tpu.memory_space<vmem>>, vector<1x8x128xf32>
      %1075 = vector.shape_cast %1074 : vector<1x8x128xf32> to vector<8x128xf32>
      %1076 = arith.mulf %1075, %762 : vector<8x128xf32>
      %1077 = arith.addf %1073, %1076 : vector<8x128xf32>
      %c332 = arith.constant 332 : index
      %c0_554 = arith.constant 0 : index
      %c0_555 = arith.constant 0 : index
      %1078 = vector.load %arg1[%c332, %c0_554, %c0_555] : memref<411x8x128xf32, #tpu.memory_space<vmem>>, vector<1x8x128xf32>
      %1079 = vector.shape_cast %1078 : vector<1x8x128xf32> to vector<8x128xf32>
      %1080 = arith.mulf %1079, %803 : vector<8x128xf32>
      %1081 = arith.addf %1077, %1080 : vector<8x128xf32>
      %c341 = arith.constant 341 : index
      %c0_556 = arith.constant 0 : index
      %c0_557 = arith.constant 0 : index
      %1082 = vector.load %arg1[%c341, %c0_556, %c0_557] : memref<411x8x128xf32, #tpu.memory_space<vmem>>, vector<1x8x128xf32>
      %1083 = vector.shape_cast %1082 : vector<1x8x128xf32> to vector<8x128xf32>
      %1084 = arith.mulf %1083, %844 : vector<8x128xf32>
      %1085 = arith.addf %1081, %1084 : vector<8x128xf32>
      %c350 = arith.constant 350 : index
      %c0_558 = arith.constant 0 : index
      %c0_559 = arith.constant 0 : index
      %1086 = vector.load %arg1[%c350, %c0_558, %c0_559] : memref<411x8x128xf32, #tpu.memory_space<vmem>>, vector<1x8x128xf32>
      %1087 = vector.shape_cast %1086 : vector<1x8x128xf32> to vector<8x128xf32>
      %1088 = arith.mulf %1087, %885 : vector<8x128xf32>
      %1089 = arith.addf %1085, %1088 : vector<8x128xf32>
      %cst_560 = arith.constant 1.000000e-01 : f32
      %1090 = vector.broadcast %cst_560 : f32 to vector<8x128xf32>
      %1091 = arith.mulf %1090, %1089 : vector<8x128xf32>
      %1092 = arith.maximumf %1089, %1091 : vector<8x128xf32>
      %c360 = arith.constant 360 : index
      %c0_561 = arith.constant 0 : index
      %c0_562 = arith.constant 0 : index
      %1093 = vector.load %arg1[%c360, %c0_561, %c0_562] : memref<411x8x128xf32, #tpu.memory_space<vmem>>, vector<1x8x128xf32>
      %1094 = vector.shape_cast %1093 : vector<1x8x128xf32> to vector<8x128xf32>
      %c216 = arith.constant 216 : index
      %c0_563 = arith.constant 0 : index
      %c0_564 = arith.constant 0 : index
      %1095 = vector.load %arg1[%c216, %c0_563, %c0_564] : memref<411x8x128xf32, #tpu.memory_space<vmem>>, vector<1x8x128xf32>
      %1096 = vector.shape_cast %1095 : vector<1x8x128xf32> to vector<8x128xf32>
      %1097 = arith.mulf %1096, %270 : vector<8x128xf32>
      %1098 = arith.addf %1094, %1097 : vector<8x128xf32>
      %c225 = arith.constant 225 : index
      %c0_565 = arith.constant 0 : index
      %c0_566 = arith.constant 0 : index
      %1099 = vector.load %arg1[%c225, %c0_565, %c0_566] : memref<411x8x128xf32, #tpu.memory_space<vmem>>, vector<1x8x128xf32>
      %1100 = vector.shape_cast %1099 : vector<1x8x128xf32> to vector<8x128xf32>
      %1101 = arith.mulf %1100, %311 : vector<8x128xf32>
      %1102 = arith.addf %1098, %1101 : vector<8x128xf32>
      %c234 = arith.constant 234 : index
      %c0_567 = arith.constant 0 : index
      %c0_568 = arith.constant 0 : index
      %1103 = vector.load %arg1[%c234, %c0_567, %c0_568] : memref<411x8x128xf32, #tpu.memory_space<vmem>>, vector<1x8x128xf32>
      %1104 = vector.shape_cast %1103 : vector<1x8x128xf32> to vector<8x128xf32>
      %1105 = arith.mulf %1104, %352 : vector<8x128xf32>
      %1106 = arith.addf %1102, %1105 : vector<8x128xf32>
      %c243 = arith.constant 243 : index
      %c0_569 = arith.constant 0 : index
      %c0_570 = arith.constant 0 : index
      %1107 = vector.load %arg1[%c243, %c0_569, %c0_570] : memref<411x8x128xf32, #tpu.memory_space<vmem>>, vector<1x8x128xf32>
      %1108 = vector.shape_cast %1107 : vector<1x8x128xf32> to vector<8x128xf32>
      %1109 = arith.mulf %1108, %393 : vector<8x128xf32>
      %1110 = arith.addf %1106, %1109 : vector<8x128xf32>
      %c252 = arith.constant 252 : index
      %c0_571 = arith.constant 0 : index
      %c0_572 = arith.constant 0 : index
      %1111 = vector.load %arg1[%c252, %c0_571, %c0_572] : memref<411x8x128xf32, #tpu.memory_space<vmem>>, vector<1x8x128xf32>
      %1112 = vector.shape_cast %1111 : vector<1x8x128xf32> to vector<8x128xf32>
      %1113 = arith.mulf %1112, %434 : vector<8x128xf32>
      %1114 = arith.addf %1110, %1113 : vector<8x128xf32>
      %c261 = arith.constant 261 : index
      %c0_573 = arith.constant 0 : index
      %c0_574 = arith.constant 0 : index
      %1115 = vector.load %arg1[%c261, %c0_573, %c0_574] : memref<411x8x128xf32, #tpu.memory_space<vmem>>, vector<1x8x128xf32>
      %1116 = vector.shape_cast %1115 : vector<1x8x128xf32> to vector<8x128xf32>
      %1117 = arith.mulf %1116, %475 : vector<8x128xf32>
      %1118 = arith.addf %1114, %1117 : vector<8x128xf32>
      %c270 = arith.constant 270 : index
      %c0_575 = arith.constant 0 : index
      %c0_576 = arith.constant 0 : index
      %1119 = vector.load %arg1[%c270, %c0_575, %c0_576] : memref<411x8x128xf32, #tpu.memory_space<vmem>>, vector<1x8x128xf32>
      %1120 = vector.shape_cast %1119 : vector<1x8x128xf32> to vector<8x128xf32>
      %1121 = arith.mulf %1120, %516 : vector<8x128xf32>
      %1122 = arith.addf %1118, %1121 : vector<8x128xf32>
      %c279 = arith.constant 279 : index
      %c0_577 = arith.constant 0 : index
      %c0_578 = arith.constant 0 : index
      %1123 = vector.load %arg1[%c279, %c0_577, %c0_578] : memref<411x8x128xf32, #tpu.memory_space<vmem>>, vector<1x8x128xf32>
      %1124 = vector.shape_cast %1123 : vector<1x8x128xf32> to vector<8x128xf32>
      %1125 = arith.mulf %1124, %557 : vector<8x128xf32>
      %1126 = arith.addf %1122, %1125 : vector<8x128xf32>
      %c288 = arith.constant 288 : index
      %c0_579 = arith.constant 0 : index
      %c0_580 = arith.constant 0 : index
      %1127 = vector.load %arg1[%c288, %c0_579, %c0_580] : memref<411x8x128xf32, #tpu.memory_space<vmem>>, vector<1x8x128xf32>
      %1128 = vector.shape_cast %1127 : vector<1x8x128xf32> to vector<8x128xf32>
      %1129 = arith.mulf %1128, %598 : vector<8x128xf32>
      %1130 = arith.addf %1126, %1129 : vector<8x128xf32>
      %c297 = arith.constant 297 : index
      %c0_581 = arith.constant 0 : index
      %c0_582 = arith.constant 0 : index
      %1131 = vector.load %arg1[%c297, %c0_581, %c0_582] : memref<411x8x128xf32, #tpu.memory_space<vmem>>, vector<1x8x128xf32>
      %1132 = vector.shape_cast %1131 : vector<1x8x128xf32> to vector<8x128xf32>
      %1133 = arith.mulf %1132, %639 : vector<8x128xf32>
      %1134 = arith.addf %1130, %1133 : vector<8x128xf32>
      %c306 = arith.constant 306 : index
      %c0_583 = arith.constant 0 : index
      %c0_584 = arith.constant 0 : index
      %1135 = vector.load %arg1[%c306, %c0_583, %c0_584] : memref<411x8x128xf32, #tpu.memory_space<vmem>>, vector<1x8x128xf32>
      %1136 = vector.shape_cast %1135 : vector<1x8x128xf32> to vector<8x128xf32>
      %1137 = arith.mulf %1136, %680 : vector<8x128xf32>
      %1138 = arith.addf %1134, %1137 : vector<8x128xf32>
      %c315 = arith.constant 315 : index
      %c0_585 = arith.constant 0 : index
      %c0_586 = arith.constant 0 : index
      %1139 = vector.load %arg1[%c315, %c0_585, %c0_586] : memref<411x8x128xf32, #tpu.memory_space<vmem>>, vector<1x8x128xf32>
      %1140 = vector.shape_cast %1139 : vector<1x8x128xf32> to vector<8x128xf32>
      %1141 = arith.mulf %1140, %721 : vector<8x128xf32>
      %1142 = arith.addf %1138, %1141 : vector<8x128xf32>
      %c324 = arith.constant 324 : index
      %c0_587 = arith.constant 0 : index
      %c0_588 = arith.constant 0 : index
      %1143 = vector.load %arg1[%c324, %c0_587, %c0_588] : memref<411x8x128xf32, #tpu.memory_space<vmem>>, vector<1x8x128xf32>
      %1144 = vector.shape_cast %1143 : vector<1x8x128xf32> to vector<8x128xf32>
      %1145 = arith.mulf %1144, %762 : vector<8x128xf32>
      %1146 = arith.addf %1142, %1145 : vector<8x128xf32>
      %c333 = arith.constant 333 : index
      %c0_589 = arith.constant 0 : index
      %c0_590 = arith.constant 0 : index
      %1147 = vector.load %arg1[%c333, %c0_589, %c0_590] : memref<411x8x128xf32, #tpu.memory_space<vmem>>, vector<1x8x128xf32>
      %1148 = vector.shape_cast %1147 : vector<1x8x128xf32> to vector<8x128xf32>
      %1149 = arith.mulf %1148, %803 : vector<8x128xf32>
      %1150 = arith.addf %1146, %1149 : vector<8x128xf32>
      %c342 = arith.constant 342 : index
      %c0_591 = arith.constant 0 : index
      %c0_592 = arith.constant 0 : index
      %1151 = vector.load %arg1[%c342, %c0_591, %c0_592] : memref<411x8x128xf32, #tpu.memory_space<vmem>>, vector<1x8x128xf32>
      %1152 = vector.shape_cast %1151 : vector<1x8x128xf32> to vector<8x128xf32>
      %1153 = arith.mulf %1152, %844 : vector<8x128xf32>
      %1154 = arith.addf %1150, %1153 : vector<8x128xf32>
      %c351 = arith.constant 351 : index
      %c0_593 = arith.constant 0 : index
      %c0_594 = arith.constant 0 : index
      %1155 = vector.load %arg1[%c351, %c0_593, %c0_594] : memref<411x8x128xf32, #tpu.memory_space<vmem>>, vector<1x8x128xf32>
      %1156 = vector.shape_cast %1155 : vector<1x8x128xf32> to vector<8x128xf32>
      %1157 = arith.mulf %1156, %885 : vector<8x128xf32>
      %1158 = arith.addf %1154, %1157 : vector<8x128xf32>
      %cst_595 = arith.constant 1.000000e-01 : f32
      %1159 = vector.broadcast %cst_595 : f32 to vector<8x128xf32>
      %1160 = arith.mulf %1159, %1158 : vector<8x128xf32>
      %1161 = arith.maximumf %1158, %1160 : vector<8x128xf32>
      %c361 = arith.constant 361 : index
      %c0_596 = arith.constant 0 : index
      %c0_597 = arith.constant 0 : index
      %1162 = vector.load %arg1[%c361, %c0_596, %c0_597] : memref<411x8x128xf32, #tpu.memory_space<vmem>>, vector<1x8x128xf32>
      %1163 = vector.shape_cast %1162 : vector<1x8x128xf32> to vector<8x128xf32>
      %c217 = arith.constant 217 : index
      %c0_598 = arith.constant 0 : index
      %c0_599 = arith.constant 0 : index
      %1164 = vector.load %arg1[%c217, %c0_598, %c0_599] : memref<411x8x128xf32, #tpu.memory_space<vmem>>, vector<1x8x128xf32>
      %1165 = vector.shape_cast %1164 : vector<1x8x128xf32> to vector<8x128xf32>
      %1166 = arith.mulf %1165, %270 : vector<8x128xf32>
      %1167 = arith.addf %1163, %1166 : vector<8x128xf32>
      %c226 = arith.constant 226 : index
      %c0_600 = arith.constant 0 : index
      %c0_601 = arith.constant 0 : index
      %1168 = vector.load %arg1[%c226, %c0_600, %c0_601] : memref<411x8x128xf32, #tpu.memory_space<vmem>>, vector<1x8x128xf32>
      %1169 = vector.shape_cast %1168 : vector<1x8x128xf32> to vector<8x128xf32>
      %1170 = arith.mulf %1169, %311 : vector<8x128xf32>
      %1171 = arith.addf %1167, %1170 : vector<8x128xf32>
      %c235 = arith.constant 235 : index
      %c0_602 = arith.constant 0 : index
      %c0_603 = arith.constant 0 : index
      %1172 = vector.load %arg1[%c235, %c0_602, %c0_603] : memref<411x8x128xf32, #tpu.memory_space<vmem>>, vector<1x8x128xf32>
      %1173 = vector.shape_cast %1172 : vector<1x8x128xf32> to vector<8x128xf32>
      %1174 = arith.mulf %1173, %352 : vector<8x128xf32>
      %1175 = arith.addf %1171, %1174 : vector<8x128xf32>
      %c244 = arith.constant 244 : index
      %c0_604 = arith.constant 0 : index
      %c0_605 = arith.constant 0 : index
      %1176 = vector.load %arg1[%c244, %c0_604, %c0_605] : memref<411x8x128xf32, #tpu.memory_space<vmem>>, vector<1x8x128xf32>
      %1177 = vector.shape_cast %1176 : vector<1x8x128xf32> to vector<8x128xf32>
      %1178 = arith.mulf %1177, %393 : vector<8x128xf32>
      %1179 = arith.addf %1175, %1178 : vector<8x128xf32>
      %c253 = arith.constant 253 : index
      %c0_606 = arith.constant 0 : index
      %c0_607 = arith.constant 0 : index
      %1180 = vector.load %arg1[%c253, %c0_606, %c0_607] : memref<411x8x128xf32, #tpu.memory_space<vmem>>, vector<1x8x128xf32>
      %1181 = vector.shape_cast %1180 : vector<1x8x128xf32> to vector<8x128xf32>
      %1182 = arith.mulf %1181, %434 : vector<8x128xf32>
      %1183 = arith.addf %1179, %1182 : vector<8x128xf32>
      %c262 = arith.constant 262 : index
      %c0_608 = arith.constant 0 : index
      %c0_609 = arith.constant 0 : index
      %1184 = vector.load %arg1[%c262, %c0_608, %c0_609] : memref<411x8x128xf32, #tpu.memory_space<vmem>>, vector<1x8x128xf32>
      %1185 = vector.shape_cast %1184 : vector<1x8x128xf32> to vector<8x128xf32>
      %1186 = arith.mulf %1185, %475 : vector<8x128xf32>
      %1187 = arith.addf %1183, %1186 : vector<8x128xf32>
      %c271 = arith.constant 271 : index
      %c0_610 = arith.constant 0 : index
      %c0_611 = arith.constant 0 : index
      %1188 = vector.load %arg1[%c271, %c0_610, %c0_611] : memref<411x8x128xf32, #tpu.memory_space<vmem>>, vector<1x8x128xf32>
      %1189 = vector.shape_cast %1188 : vector<1x8x128xf32> to vector<8x128xf32>
      %1190 = arith.mulf %1189, %516 : vector<8x128xf32>
      %1191 = arith.addf %1187, %1190 : vector<8x128xf32>
      %c280 = arith.constant 280 : index
      %c0_612 = arith.constant 0 : index
      %c0_613 = arith.constant 0 : index
      %1192 = vector.load %arg1[%c280, %c0_612, %c0_613] : memref<411x8x128xf32, #tpu.memory_space<vmem>>, vector<1x8x128xf32>
      %1193 = vector.shape_cast %1192 : vector<1x8x128xf32> to vector<8x128xf32>
      %1194 = arith.mulf %1193, %557 : vector<8x128xf32>
      %1195 = arith.addf %1191, %1194 : vector<8x128xf32>
      %c289 = arith.constant 289 : index
      %c0_614 = arith.constant 0 : index
      %c0_615 = arith.constant 0 : index
      %1196 = vector.load %arg1[%c289, %c0_614, %c0_615] : memref<411x8x128xf32, #tpu.memory_space<vmem>>, vector<1x8x128xf32>
      %1197 = vector.shape_cast %1196 : vector<1x8x128xf32> to vector<8x128xf32>
      %1198 = arith.mulf %1197, %598 : vector<8x128xf32>
      %1199 = arith.addf %1195, %1198 : vector<8x128xf32>
      %c298 = arith.constant 298 : index
      %c0_616 = arith.constant 0 : index
      %c0_617 = arith.constant 0 : index
      %1200 = vector.load %arg1[%c298, %c0_616, %c0_617] : memref<411x8x128xf32, #tpu.memory_space<vmem>>, vector<1x8x128xf32>
      %1201 = vector.shape_cast %1200 : vector<1x8x128xf32> to vector<8x128xf32>
      %1202 = arith.mulf %1201, %639 : vector<8x128xf32>
      %1203 = arith.addf %1199, %1202 : vector<8x128xf32>
      %c307 = arith.constant 307 : index
      %c0_618 = arith.constant 0 : index
      %c0_619 = arith.constant 0 : index
      %1204 = vector.load %arg1[%c307, %c0_618, %c0_619] : memref<411x8x128xf32, #tpu.memory_space<vmem>>, vector<1x8x128xf32>
      %1205 = vector.shape_cast %1204 : vector<1x8x128xf32> to vector<8x128xf32>
      %1206 = arith.mulf %1205, %680 : vector<8x128xf32>
      %1207 = arith.addf %1203, %1206 : vector<8x128xf32>
      %c316 = arith.constant 316 : index
      %c0_620 = arith.constant 0 : index
      %c0_621 = arith.constant 0 : index
      %1208 = vector.load %arg1[%c316, %c0_620, %c0_621] : memref<411x8x128xf32, #tpu.memory_space<vmem>>, vector<1x8x128xf32>
      %1209 = vector.shape_cast %1208 : vector<1x8x128xf32> to vector<8x128xf32>
      %1210 = arith.mulf %1209, %721 : vector<8x128xf32>
      %1211 = arith.addf %1207, %1210 : vector<8x128xf32>
      %c325 = arith.constant 325 : index
      %c0_622 = arith.constant 0 : index
      %c0_623 = arith.constant 0 : index
      %1212 = vector.load %arg1[%c325, %c0_622, %c0_623] : memref<411x8x128xf32, #tpu.memory_space<vmem>>, vector<1x8x128xf32>
      %1213 = vector.shape_cast %1212 : vector<1x8x128xf32> to vector<8x128xf32>
      %1214 = arith.mulf %1213, %762 : vector<8x128xf32>
      %1215 = arith.addf %1211, %1214 : vector<8x128xf32>
      %c334 = arith.constant 334 : index
      %c0_624 = arith.constant 0 : index
      %c0_625 = arith.constant 0 : index
      %1216 = vector.load %arg1[%c334, %c0_624, %c0_625] : memref<411x8x128xf32, #tpu.memory_space<vmem>>, vector<1x8x128xf32>
      %1217 = vector.shape_cast %1216 : vector<1x8x128xf32> to vector<8x128xf32>
      %1218 = arith.mulf %1217, %803 : vector<8x128xf32>
      %1219 = arith.addf %1215, %1218 : vector<8x128xf32>
      %c343 = arith.constant 343 : index
      %c0_626 = arith.constant 0 : index
      %c0_627 = arith.constant 0 : index
      %1220 = vector.load %arg1[%c343, %c0_626, %c0_627] : memref<411x8x128xf32, #tpu.memory_space<vmem>>, vector<1x8x128xf32>
      %1221 = vector.shape_cast %1220 : vector<1x8x128xf32> to vector<8x128xf32>
      %1222 = arith.mulf %1221, %844 : vector<8x128xf32>
      %1223 = arith.addf %1219, %1222 : vector<8x128xf32>
      %c352 = arith.constant 352 : index
      %c0_628 = arith.constant 0 : index
      %c0_629 = arith.constant 0 : index
      %1224 = vector.load %arg1[%c352, %c0_628, %c0_629] : memref<411x8x128xf32, #tpu.memory_space<vmem>>, vector<1x8x128xf32>
      %1225 = vector.shape_cast %1224 : vector<1x8x128xf32> to vector<8x128xf32>
      %1226 = arith.mulf %1225, %885 : vector<8x128xf32>
      %1227 = arith.addf %1223, %1226 : vector<8x128xf32>
      %cst_630 = arith.constant 1.000000e-01 : f32
      %1228 = vector.broadcast %cst_630 : f32 to vector<8x128xf32>
      %1229 = arith.mulf %1228, %1227 : vector<8x128xf32>
      %1230 = arith.maximumf %1227, %1229 : vector<8x128xf32>
      %c362 = arith.constant 362 : index
      %c0_631 = arith.constant 0 : index
      %c0_632 = arith.constant 0 : index
      %1231 = vector.load %arg1[%c362, %c0_631, %c0_632] : memref<411x8x128xf32, #tpu.memory_space<vmem>>, vector<1x8x128xf32>
      %1232 = vector.shape_cast %1231 : vector<1x8x128xf32> to vector<8x128xf32>
      %c218 = arith.constant 218 : index
      %c0_633 = arith.constant 0 : index
      %c0_634 = arith.constant 0 : index
      %1233 = vector.load %arg1[%c218, %c0_633, %c0_634] : memref<411x8x128xf32, #tpu.memory_space<vmem>>, vector<1x8x128xf32>
      %1234 = vector.shape_cast %1233 : vector<1x8x128xf32> to vector<8x128xf32>
      %1235 = arith.mulf %1234, %270 : vector<8x128xf32>
      %1236 = arith.addf %1232, %1235 : vector<8x128xf32>
      %c227 = arith.constant 227 : index
      %c0_635 = arith.constant 0 : index
      %c0_636 = arith.constant 0 : index
      %1237 = vector.load %arg1[%c227, %c0_635, %c0_636] : memref<411x8x128xf32, #tpu.memory_space<vmem>>, vector<1x8x128xf32>
      %1238 = vector.shape_cast %1237 : vector<1x8x128xf32> to vector<8x128xf32>
      %1239 = arith.mulf %1238, %311 : vector<8x128xf32>
      %1240 = arith.addf %1236, %1239 : vector<8x128xf32>
      %c236 = arith.constant 236 : index
      %c0_637 = arith.constant 0 : index
      %c0_638 = arith.constant 0 : index
      %1241 = vector.load %arg1[%c236, %c0_637, %c0_638] : memref<411x8x128xf32, #tpu.memory_space<vmem>>, vector<1x8x128xf32>
      %1242 = vector.shape_cast %1241 : vector<1x8x128xf32> to vector<8x128xf32>
      %1243 = arith.mulf %1242, %352 : vector<8x128xf32>
      %1244 = arith.addf %1240, %1243 : vector<8x128xf32>
      %c245 = arith.constant 245 : index
      %c0_639 = arith.constant 0 : index
      %c0_640 = arith.constant 0 : index
      %1245 = vector.load %arg1[%c245, %c0_639, %c0_640] : memref<411x8x128xf32, #tpu.memory_space<vmem>>, vector<1x8x128xf32>
      %1246 = vector.shape_cast %1245 : vector<1x8x128xf32> to vector<8x128xf32>
      %1247 = arith.mulf %1246, %393 : vector<8x128xf32>
      %1248 = arith.addf %1244, %1247 : vector<8x128xf32>
      %c254 = arith.constant 254 : index
      %c0_641 = arith.constant 0 : index
      %c0_642 = arith.constant 0 : index
      %1249 = vector.load %arg1[%c254, %c0_641, %c0_642] : memref<411x8x128xf32, #tpu.memory_space<vmem>>, vector<1x8x128xf32>
      %1250 = vector.shape_cast %1249 : vector<1x8x128xf32> to vector<8x128xf32>
      %1251 = arith.mulf %1250, %434 : vector<8x128xf32>
      %1252 = arith.addf %1248, %1251 : vector<8x128xf32>
      %c263 = arith.constant 263 : index
      %c0_643 = arith.constant 0 : index
      %c0_644 = arith.constant 0 : index
      %1253 = vector.load %arg1[%c263, %c0_643, %c0_644] : memref<411x8x128xf32, #tpu.memory_space<vmem>>, vector<1x8x128xf32>
      %1254 = vector.shape_cast %1253 : vector<1x8x128xf32> to vector<8x128xf32>
      %1255 = arith.mulf %1254, %475 : vector<8x128xf32>
      %1256 = arith.addf %1252, %1255 : vector<8x128xf32>
      %c272 = arith.constant 272 : index
      %c0_645 = arith.constant 0 : index
      %c0_646 = arith.constant 0 : index
      %1257 = vector.load %arg1[%c272, %c0_645, %c0_646] : memref<411x8x128xf32, #tpu.memory_space<vmem>>, vector<1x8x128xf32>
      %1258 = vector.shape_cast %1257 : vector<1x8x128xf32> to vector<8x128xf32>
      %1259 = arith.mulf %1258, %516 : vector<8x128xf32>
      %1260 = arith.addf %1256, %1259 : vector<8x128xf32>
      %c281 = arith.constant 281 : index
      %c0_647 = arith.constant 0 : index
      %c0_648 = arith.constant 0 : index
      %1261 = vector.load %arg1[%c281, %c0_647, %c0_648] : memref<411x8x128xf32, #tpu.memory_space<vmem>>, vector<1x8x128xf32>
      %1262 = vector.shape_cast %1261 : vector<1x8x128xf32> to vector<8x128xf32>
      %1263 = arith.mulf %1262, %557 : vector<8x128xf32>
      %1264 = arith.addf %1260, %1263 : vector<8x128xf32>
      %c290 = arith.constant 290 : index
      %c0_649 = arith.constant 0 : index
      %c0_650 = arith.constant 0 : index
      %1265 = vector.load %arg1[%c290, %c0_649, %c0_650] : memref<411x8x128xf32, #tpu.memory_space<vmem>>, vector<1x8x128xf32>
      %1266 = vector.shape_cast %1265 : vector<1x8x128xf32> to vector<8x128xf32>
      %1267 = arith.mulf %1266, %598 : vector<8x128xf32>
      %1268 = arith.addf %1264, %1267 : vector<8x128xf32>
      %c299 = arith.constant 299 : index
      %c0_651 = arith.constant 0 : index
      %c0_652 = arith.constant 0 : index
      %1269 = vector.load %arg1[%c299, %c0_651, %c0_652] : memref<411x8x128xf32, #tpu.memory_space<vmem>>, vector<1x8x128xf32>
      %1270 = vector.shape_cast %1269 : vector<1x8x128xf32> to vector<8x128xf32>
      %1271 = arith.mulf %1270, %639 : vector<8x128xf32>
      %1272 = arith.addf %1268, %1271 : vector<8x128xf32>
      %c308 = arith.constant 308 : index
      %c0_653 = arith.constant 0 : index
      %c0_654 = arith.constant 0 : index
      %1273 = vector.load %arg1[%c308, %c0_653, %c0_654] : memref<411x8x128xf32, #tpu.memory_space<vmem>>, vector<1x8x128xf32>
      %1274 = vector.shape_cast %1273 : vector<1x8x128xf32> to vector<8x128xf32>
      %1275 = arith.mulf %1274, %680 : vector<8x128xf32>
      %1276 = arith.addf %1272, %1275 : vector<8x128xf32>
      %c317 = arith.constant 317 : index
      %c0_655 = arith.constant 0 : index
      %c0_656 = arith.constant 0 : index
      %1277 = vector.load %arg1[%c317, %c0_655, %c0_656] : memref<411x8x128xf32, #tpu.memory_space<vmem>>, vector<1x8x128xf32>
      %1278 = vector.shape_cast %1277 : vector<1x8x128xf32> to vector<8x128xf32>
      %1279 = arith.mulf %1278, %721 : vector<8x128xf32>
      %1280 = arith.addf %1276, %1279 : vector<8x128xf32>
      %c326 = arith.constant 326 : index
      %c0_657 = arith.constant 0 : index
      %c0_658 = arith.constant 0 : index
      %1281 = vector.load %arg1[%c326, %c0_657, %c0_658] : memref<411x8x128xf32, #tpu.memory_space<vmem>>, vector<1x8x128xf32>
      %1282 = vector.shape_cast %1281 : vector<1x8x128xf32> to vector<8x128xf32>
      %1283 = arith.mulf %1282, %762 : vector<8x128xf32>
      %1284 = arith.addf %1280, %1283 : vector<8x128xf32>
      %c335 = arith.constant 335 : index
      %c0_659 = arith.constant 0 : index
      %c0_660 = arith.constant 0 : index
      %1285 = vector.load %arg1[%c335, %c0_659, %c0_660] : memref<411x8x128xf32, #tpu.memory_space<vmem>>, vector<1x8x128xf32>
      %1286 = vector.shape_cast %1285 : vector<1x8x128xf32> to vector<8x128xf32>
      %1287 = arith.mulf %1286, %803 : vector<8x128xf32>
      %1288 = arith.addf %1284, %1287 : vector<8x128xf32>
      %c344 = arith.constant 344 : index
      %c0_661 = arith.constant 0 : index
      %c0_662 = arith.constant 0 : index
      %1289 = vector.load %arg1[%c344, %c0_661, %c0_662] : memref<411x8x128xf32, #tpu.memory_space<vmem>>, vector<1x8x128xf32>
      %1290 = vector.shape_cast %1289 : vector<1x8x128xf32> to vector<8x128xf32>
      %1291 = arith.mulf %1290, %844 : vector<8x128xf32>
      %1292 = arith.addf %1288, %1291 : vector<8x128xf32>
      %c353 = arith.constant 353 : index
      %c0_663 = arith.constant 0 : index
      %c0_664 = arith.constant 0 : index
      %1293 = vector.load %arg1[%c353, %c0_663, %c0_664] : memref<411x8x128xf32, #tpu.memory_space<vmem>>, vector<1x8x128xf32>
      %1294 = vector.shape_cast %1293 : vector<1x8x128xf32> to vector<8x128xf32>
      %1295 = arith.mulf %1294, %885 : vector<8x128xf32>
      %1296 = arith.addf %1292, %1295 : vector<8x128xf32>
      %cst_665 = arith.constant 1.000000e-01 : f32
      %1297 = vector.broadcast %cst_665 : f32 to vector<8x128xf32>
      %1298 = arith.mulf %1297, %1296 : vector<8x128xf32>
      %1299 = arith.maximumf %1296, %1298 : vector<8x128xf32>
      %c363 = arith.constant 363 : index
      %c0_666 = arith.constant 0 : index
      %c0_667 = arith.constant 0 : index
      %1300 = vector.load %arg1[%c363, %c0_666, %c0_667] : memref<411x8x128xf32, #tpu.memory_space<vmem>>, vector<1x8x128xf32>
      %1301 = vector.shape_cast %1300 : vector<1x8x128xf32> to vector<8x128xf32>
      %c219 = arith.constant 219 : index
      %c0_668 = arith.constant 0 : index
      %c0_669 = arith.constant 0 : index
      %1302 = vector.load %arg1[%c219, %c0_668, %c0_669] : memref<411x8x128xf32, #tpu.memory_space<vmem>>, vector<1x8x128xf32>
      %1303 = vector.shape_cast %1302 : vector<1x8x128xf32> to vector<8x128xf32>
      %1304 = arith.mulf %1303, %270 : vector<8x128xf32>
      %1305 = arith.addf %1301, %1304 : vector<8x128xf32>
      %c228 = arith.constant 228 : index
      %c0_670 = arith.constant 0 : index
      %c0_671 = arith.constant 0 : index
      %1306 = vector.load %arg1[%c228, %c0_670, %c0_671] : memref<411x8x128xf32, #tpu.memory_space<vmem>>, vector<1x8x128xf32>
      %1307 = vector.shape_cast %1306 : vector<1x8x128xf32> to vector<8x128xf32>
      %1308 = arith.mulf %1307, %311 : vector<8x128xf32>
      %1309 = arith.addf %1305, %1308 : vector<8x128xf32>
      %c237 = arith.constant 237 : index
      %c0_672 = arith.constant 0 : index
      %c0_673 = arith.constant 0 : index
      %1310 = vector.load %arg1[%c237, %c0_672, %c0_673] : memref<411x8x128xf32, #tpu.memory_space<vmem>>, vector<1x8x128xf32>
      %1311 = vector.shape_cast %1310 : vector<1x8x128xf32> to vector<8x128xf32>
      %1312 = arith.mulf %1311, %352 : vector<8x128xf32>
      %1313 = arith.addf %1309, %1312 : vector<8x128xf32>
      %c246 = arith.constant 246 : index
      %c0_674 = arith.constant 0 : index
      %c0_675 = arith.constant 0 : index
      %1314 = vector.load %arg1[%c246, %c0_674, %c0_675] : memref<411x8x128xf32, #tpu.memory_space<vmem>>, vector<1x8x128xf32>
      %1315 = vector.shape_cast %1314 : vector<1x8x128xf32> to vector<8x128xf32>
      %1316 = arith.mulf %1315, %393 : vector<8x128xf32>
      %1317 = arith.addf %1313, %1316 : vector<8x128xf32>
      %c255 = arith.constant 255 : index
      %c0_676 = arith.constant 0 : index
      %c0_677 = arith.constant 0 : index
      %1318 = vector.load %arg1[%c255, %c0_676, %c0_677] : memref<411x8x128xf32, #tpu.memory_space<vmem>>, vector<1x8x128xf32>
      %1319 = vector.shape_cast %1318 : vector<1x8x128xf32> to vector<8x128xf32>
      %1320 = arith.mulf %1319, %434 : vector<8x128xf32>
      %1321 = arith.addf %1317, %1320 : vector<8x128xf32>
      %c264 = arith.constant 264 : index
      %c0_678 = arith.constant 0 : index
      %c0_679 = arith.constant 0 : index
      %1322 = vector.load %arg1[%c264, %c0_678, %c0_679] : memref<411x8x128xf32, #tpu.memory_space<vmem>>, vector<1x8x128xf32>
      %1323 = vector.shape_cast %1322 : vector<1x8x128xf32> to vector<8x128xf32>
      %1324 = arith.mulf %1323, %475 : vector<8x128xf32>
      %1325 = arith.addf %1321, %1324 : vector<8x128xf32>
      %c273 = arith.constant 273 : index
      %c0_680 = arith.constant 0 : index
      %c0_681 = arith.constant 0 : index
      %1326 = vector.load %arg1[%c273, %c0_680, %c0_681] : memref<411x8x128xf32, #tpu.memory_space<vmem>>, vector<1x8x128xf32>
      %1327 = vector.shape_cast %1326 : vector<1x8x128xf32> to vector<8x128xf32>
      %1328 = arith.mulf %1327, %516 : vector<8x128xf32>
      %1329 = arith.addf %1325, %1328 : vector<8x128xf32>
      %c282 = arith.constant 282 : index
      %c0_682 = arith.constant 0 : index
      %c0_683 = arith.constant 0 : index
      %1330 = vector.load %arg1[%c282, %c0_682, %c0_683] : memref<411x8x128xf32, #tpu.memory_space<vmem>>, vector<1x8x128xf32>
      %1331 = vector.shape_cast %1330 : vector<1x8x128xf32> to vector<8x128xf32>
      %1332 = arith.mulf %1331, %557 : vector<8x128xf32>
      %1333 = arith.addf %1329, %1332 : vector<8x128xf32>
      %c291 = arith.constant 291 : index
      %c0_684 = arith.constant 0 : index
      %c0_685 = arith.constant 0 : index
      %1334 = vector.load %arg1[%c291, %c0_684, %c0_685] : memref<411x8x128xf32, #tpu.memory_space<vmem>>, vector<1x8x128xf32>
      %1335 = vector.shape_cast %1334 : vector<1x8x128xf32> to vector<8x128xf32>
      %1336 = arith.mulf %1335, %598 : vector<8x128xf32>
      %1337 = arith.addf %1333, %1336 : vector<8x128xf32>
      %c300 = arith.constant 300 : index
      %c0_686 = arith.constant 0 : index
      %c0_687 = arith.constant 0 : index
      %1338 = vector.load %arg1[%c300, %c0_686, %c0_687] : memref<411x8x128xf32, #tpu.memory_space<vmem>>, vector<1x8x128xf32>
      %1339 = vector.shape_cast %1338 : vector<1x8x128xf32> to vector<8x128xf32>
      %1340 = arith.mulf %1339, %639 : vector<8x128xf32>
      %1341 = arith.addf %1337, %1340 : vector<8x128xf32>
      %c309 = arith.constant 309 : index
      %c0_688 = arith.constant 0 : index
      %c0_689 = arith.constant 0 : index
      %1342 = vector.load %arg1[%c309, %c0_688, %c0_689] : memref<411x8x128xf32, #tpu.memory_space<vmem>>, vector<1x8x128xf32>
      %1343 = vector.shape_cast %1342 : vector<1x8x128xf32> to vector<8x128xf32>
      %1344 = arith.mulf %1343, %680 : vector<8x128xf32>
      %1345 = arith.addf %1341, %1344 : vector<8x128xf32>
      %c318 = arith.constant 318 : index
      %c0_690 = arith.constant 0 : index
      %c0_691 = arith.constant 0 : index
      %1346 = vector.load %arg1[%c318, %c0_690, %c0_691] : memref<411x8x128xf32, #tpu.memory_space<vmem>>, vector<1x8x128xf32>
      %1347 = vector.shape_cast %1346 : vector<1x8x128xf32> to vector<8x128xf32>
      %1348 = arith.mulf %1347, %721 : vector<8x128xf32>
      %1349 = arith.addf %1345, %1348 : vector<8x128xf32>
      %c327 = arith.constant 327 : index
      %c0_692 = arith.constant 0 : index
      %c0_693 = arith.constant 0 : index
      %1350 = vector.load %arg1[%c327, %c0_692, %c0_693] : memref<411x8x128xf32, #tpu.memory_space<vmem>>, vector<1x8x128xf32>
      %1351 = vector.shape_cast %1350 : vector<1x8x128xf32> to vector<8x128xf32>
      %1352 = arith.mulf %1351, %762 : vector<8x128xf32>
      %1353 = arith.addf %1349, %1352 : vector<8x128xf32>
      %c336 = arith.constant 336 : index
      %c0_694 = arith.constant 0 : index
      %c0_695 = arith.constant 0 : index
      %1354 = vector.load %arg1[%c336, %c0_694, %c0_695] : memref<411x8x128xf32, #tpu.memory_space<vmem>>, vector<1x8x128xf32>
      %1355 = vector.shape_cast %1354 : vector<1x8x128xf32> to vector<8x128xf32>
      %1356 = arith.mulf %1355, %803 : vector<8x128xf32>
      %1357 = arith.addf %1353, %1356 : vector<8x128xf32>
      %c345 = arith.constant 345 : index
      %c0_696 = arith.constant 0 : index
      %c0_697 = arith.constant 0 : index
      %1358 = vector.load %arg1[%c345, %c0_696, %c0_697] : memref<411x8x128xf32, #tpu.memory_space<vmem>>, vector<1x8x128xf32>
      %1359 = vector.shape_cast %1358 : vector<1x8x128xf32> to vector<8x128xf32>
      %1360 = arith.mulf %1359, %844 : vector<8x128xf32>
      %1361 = arith.addf %1357, %1360 : vector<8x128xf32>
      %c354 = arith.constant 354 : index
      %c0_698 = arith.constant 0 : index
      %c0_699 = arith.constant 0 : index
      %1362 = vector.load %arg1[%c354, %c0_698, %c0_699] : memref<411x8x128xf32, #tpu.memory_space<vmem>>, vector<1x8x128xf32>
      %1363 = vector.shape_cast %1362 : vector<1x8x128xf32> to vector<8x128xf32>
      %1364 = arith.mulf %1363, %885 : vector<8x128xf32>
      %1365 = arith.addf %1361, %1364 : vector<8x128xf32>
      %cst_700 = arith.constant 1.000000e-01 : f32
      %1366 = vector.broadcast %cst_700 : f32 to vector<8x128xf32>
      %1367 = arith.mulf %1366, %1365 : vector<8x128xf32>
      %1368 = arith.maximumf %1365, %1367 : vector<8x128xf32>
      %c364 = arith.constant 364 : index
      %c0_701 = arith.constant 0 : index
      %c0_702 = arith.constant 0 : index
      %1369 = vector.load %arg1[%c364, %c0_701, %c0_702] : memref<411x8x128xf32, #tpu.memory_space<vmem>>, vector<1x8x128xf32>
      %1370 = vector.shape_cast %1369 : vector<1x8x128xf32> to vector<8x128xf32>
      %c220 = arith.constant 220 : index
      %c0_703 = arith.constant 0 : index
      %c0_704 = arith.constant 0 : index
      %1371 = vector.load %arg1[%c220, %c0_703, %c0_704] : memref<411x8x128xf32, #tpu.memory_space<vmem>>, vector<1x8x128xf32>
      %1372 = vector.shape_cast %1371 : vector<1x8x128xf32> to vector<8x128xf32>
      %1373 = arith.mulf %1372, %270 : vector<8x128xf32>
      %1374 = arith.addf %1370, %1373 : vector<8x128xf32>
      %c229 = arith.constant 229 : index
      %c0_705 = arith.constant 0 : index
      %c0_706 = arith.constant 0 : index
      %1375 = vector.load %arg1[%c229, %c0_705, %c0_706] : memref<411x8x128xf32, #tpu.memory_space<vmem>>, vector<1x8x128xf32>
      %1376 = vector.shape_cast %1375 : vector<1x8x128xf32> to vector<8x128xf32>
      %1377 = arith.mulf %1376, %311 : vector<8x128xf32>
      %1378 = arith.addf %1374, %1377 : vector<8x128xf32>
      %c238 = arith.constant 238 : index
      %c0_707 = arith.constant 0 : index
      %c0_708 = arith.constant 0 : index
      %1379 = vector.load %arg1[%c238, %c0_707, %c0_708] : memref<411x8x128xf32, #tpu.memory_space<vmem>>, vector<1x8x128xf32>
      %1380 = vector.shape_cast %1379 : vector<1x8x128xf32> to vector<8x128xf32>
      %1381 = arith.mulf %1380, %352 : vector<8x128xf32>
      %1382 = arith.addf %1378, %1381 : vector<8x128xf32>
      %c247 = arith.constant 247 : index
      %c0_709 = arith.constant 0 : index
      %c0_710 = arith.constant 0 : index
      %1383 = vector.load %arg1[%c247, %c0_709, %c0_710] : memref<411x8x128xf32, #tpu.memory_space<vmem>>, vector<1x8x128xf32>
      %1384 = vector.shape_cast %1383 : vector<1x8x128xf32> to vector<8x128xf32>
      %1385 = arith.mulf %1384, %393 : vector<8x128xf32>
      %1386 = arith.addf %1382, %1385 : vector<8x128xf32>
      %c256 = arith.constant 256 : index
      %c0_711 = arith.constant 0 : index
      %c0_712 = arith.constant 0 : index
      %1387 = vector.load %arg1[%c256, %c0_711, %c0_712] : memref<411x8x128xf32, #tpu.memory_space<vmem>>, vector<1x8x128xf32>
      %1388 = vector.shape_cast %1387 : vector<1x8x128xf32> to vector<8x128xf32>
      %1389 = arith.mulf %1388, %434 : vector<8x128xf32>
      %1390 = arith.addf %1386, %1389 : vector<8x128xf32>
      %c265 = arith.constant 265 : index
      %c0_713 = arith.constant 0 : index
      %c0_714 = arith.constant 0 : index
      %1391 = vector.load %arg1[%c265, %c0_713, %c0_714] : memref<411x8x128xf32, #tpu.memory_space<vmem>>, vector<1x8x128xf32>
      %1392 = vector.shape_cast %1391 : vector<1x8x128xf32> to vector<8x128xf32>
      %1393 = arith.mulf %1392, %475 : vector<8x128xf32>
      %1394 = arith.addf %1390, %1393 : vector<8x128xf32>
      %c274 = arith.constant 274 : index
      %c0_715 = arith.constant 0 : index
      %c0_716 = arith.constant 0 : index
      %1395 = vector.load %arg1[%c274, %c0_715, %c0_716] : memref<411x8x128xf32, #tpu.memory_space<vmem>>, vector<1x8x128xf32>
      %1396 = vector.shape_cast %1395 : vector<1x8x128xf32> to vector<8x128xf32>
      %1397 = arith.mulf %1396, %516 : vector<8x128xf32>
      %1398 = arith.addf %1394, %1397 : vector<8x128xf32>
      %c283 = arith.constant 283 : index
      %c0_717 = arith.constant 0 : index
      %c0_718 = arith.constant 0 : index
      %1399 = vector.load %arg1[%c283, %c0_717, %c0_718] : memref<411x8x128xf32, #tpu.memory_space<vmem>>, vector<1x8x128xf32>
      %1400 = vector.shape_cast %1399 : vector<1x8x128xf32> to vector<8x128xf32>
      %1401 = arith.mulf %1400, %557 : vector<8x128xf32>
      %1402 = arith.addf %1398, %1401 : vector<8x128xf32>
      %c292 = arith.constant 292 : index
      %c0_719 = arith.constant 0 : index
      %c0_720 = arith.constant 0 : index
      %1403 = vector.load %arg1[%c292, %c0_719, %c0_720] : memref<411x8x128xf32, #tpu.memory_space<vmem>>, vector<1x8x128xf32>
      %1404 = vector.shape_cast %1403 : vector<1x8x128xf32> to vector<8x128xf32>
      %1405 = arith.mulf %1404, %598 : vector<8x128xf32>
      %1406 = arith.addf %1402, %1405 : vector<8x128xf32>
      %c301 = arith.constant 301 : index
      %c0_721 = arith.constant 0 : index
      %c0_722 = arith.constant 0 : index
      %1407 = vector.load %arg1[%c301, %c0_721, %c0_722] : memref<411x8x128xf32, #tpu.memory_space<vmem>>, vector<1x8x128xf32>
      %1408 = vector.shape_cast %1407 : vector<1x8x128xf32> to vector<8x128xf32>
      %1409 = arith.mulf %1408, %639 : vector<8x128xf32>
      %1410 = arith.addf %1406, %1409 : vector<8x128xf32>
      %c310 = arith.constant 310 : index
      %c0_723 = arith.constant 0 : index
      %c0_724 = arith.constant 0 : index
      %1411 = vector.load %arg1[%c310, %c0_723, %c0_724] : memref<411x8x128xf32, #tpu.memory_space<vmem>>, vector<1x8x128xf32>
      %1412 = vector.shape_cast %1411 : vector<1x8x128xf32> to vector<8x128xf32>
      %1413 = arith.mulf %1412, %680 : vector<8x128xf32>
      %1414 = arith.addf %1410, %1413 : vector<8x128xf32>
      %c319 = arith.constant 319 : index
      %c0_725 = arith.constant 0 : index
      %c0_726 = arith.constant 0 : index
      %1415 = vector.load %arg1[%c319, %c0_725, %c0_726] : memref<411x8x128xf32, #tpu.memory_space<vmem>>, vector<1x8x128xf32>
      %1416 = vector.shape_cast %1415 : vector<1x8x128xf32> to vector<8x128xf32>
      %1417 = arith.mulf %1416, %721 : vector<8x128xf32>
      %1418 = arith.addf %1414, %1417 : vector<8x128xf32>
      %c328 = arith.constant 328 : index
      %c0_727 = arith.constant 0 : index
      %c0_728 = arith.constant 0 : index
      %1419 = vector.load %arg1[%c328, %c0_727, %c0_728] : memref<411x8x128xf32, #tpu.memory_space<vmem>>, vector<1x8x128xf32>
      %1420 = vector.shape_cast %1419 : vector<1x8x128xf32> to vector<8x128xf32>
      %1421 = arith.mulf %1420, %762 : vector<8x128xf32>
      %1422 = arith.addf %1418, %1421 : vector<8x128xf32>
      %c337 = arith.constant 337 : index
      %c0_729 = arith.constant 0 : index
      %c0_730 = arith.constant 0 : index
      %1423 = vector.load %arg1[%c337, %c0_729, %c0_730] : memref<411x8x128xf32, #tpu.memory_space<vmem>>, vector<1x8x128xf32>
      %1424 = vector.shape_cast %1423 : vector<1x8x128xf32> to vector<8x128xf32>
      %1425 = arith.mulf %1424, %803 : vector<8x128xf32>
      %1426 = arith.addf %1422, %1425 : vector<8x128xf32>
      %c346 = arith.constant 346 : index
      %c0_731 = arith.constant 0 : index
      %c0_732 = arith.constant 0 : index
      %1427 = vector.load %arg1[%c346, %c0_731, %c0_732] : memref<411x8x128xf32, #tpu.memory_space<vmem>>, vector<1x8x128xf32>
      %1428 = vector.shape_cast %1427 : vector<1x8x128xf32> to vector<8x128xf32>
      %1429 = arith.mulf %1428, %844 : vector<8x128xf32>
      %1430 = arith.addf %1426, %1429 : vector<8x128xf32>
      %c355 = arith.constant 355 : index
      %c0_733 = arith.constant 0 : index
      %c0_734 = arith.constant 0 : index
      %1431 = vector.load %arg1[%c355, %c0_733, %c0_734] : memref<411x8x128xf32, #tpu.memory_space<vmem>>, vector<1x8x128xf32>
      %1432 = vector.shape_cast %1431 : vector<1x8x128xf32> to vector<8x128xf32>
      %1433 = arith.mulf %1432, %885 : vector<8x128xf32>
      %1434 = arith.addf %1430, %1433 : vector<8x128xf32>
      %cst_735 = arith.constant 1.000000e-01 : f32
      %1435 = vector.broadcast %cst_735 : f32 to vector<8x128xf32>
      %1436 = arith.mulf %1435, %1434 : vector<8x128xf32>
      %1437 = arith.maximumf %1434, %1436 : vector<8x128xf32>
      %c365 = arith.constant 365 : index
      %c0_736 = arith.constant 0 : index
      %c0_737 = arith.constant 0 : index
      %1438 = vector.load %arg1[%c365, %c0_736, %c0_737] : memref<411x8x128xf32, #tpu.memory_space<vmem>>, vector<1x8x128xf32>
      %1439 = vector.shape_cast %1438 : vector<1x8x128xf32> to vector<8x128xf32>
      %c221 = arith.constant 221 : index
      %c0_738 = arith.constant 0 : index
      %c0_739 = arith.constant 0 : index
      %1440 = vector.load %arg1[%c221, %c0_738, %c0_739] : memref<411x8x128xf32, #tpu.memory_space<vmem>>, vector<1x8x128xf32>
      %1441 = vector.shape_cast %1440 : vector<1x8x128xf32> to vector<8x128xf32>
      %1442 = arith.mulf %1441, %270 : vector<8x128xf32>
      %1443 = arith.addf %1439, %1442 : vector<8x128xf32>
      %c230 = arith.constant 230 : index
      %c0_740 = arith.constant 0 : index
      %c0_741 = arith.constant 0 : index
      %1444 = vector.load %arg1[%c230, %c0_740, %c0_741] : memref<411x8x128xf32, #tpu.memory_space<vmem>>, vector<1x8x128xf32>
      %1445 = vector.shape_cast %1444 : vector<1x8x128xf32> to vector<8x128xf32>
      %1446 = arith.mulf %1445, %311 : vector<8x128xf32>
      %1447 = arith.addf %1443, %1446 : vector<8x128xf32>
      %c239 = arith.constant 239 : index
      %c0_742 = arith.constant 0 : index
      %c0_743 = arith.constant 0 : index
      %1448 = vector.load %arg1[%c239, %c0_742, %c0_743] : memref<411x8x128xf32, #tpu.memory_space<vmem>>, vector<1x8x128xf32>
      %1449 = vector.shape_cast %1448 : vector<1x8x128xf32> to vector<8x128xf32>
      %1450 = arith.mulf %1449, %352 : vector<8x128xf32>
      %1451 = arith.addf %1447, %1450 : vector<8x128xf32>
      %c248 = arith.constant 248 : index
      %c0_744 = arith.constant 0 : index
      %c0_745 = arith.constant 0 : index
      %1452 = vector.load %arg1[%c248, %c0_744, %c0_745] : memref<411x8x128xf32, #tpu.memory_space<vmem>>, vector<1x8x128xf32>
      %1453 = vector.shape_cast %1452 : vector<1x8x128xf32> to vector<8x128xf32>
      %1454 = arith.mulf %1453, %393 : vector<8x128xf32>
      %1455 = arith.addf %1451, %1454 : vector<8x128xf32>
      %c257 = arith.constant 257 : index
      %c0_746 = arith.constant 0 : index
      %c0_747 = arith.constant 0 : index
      %1456 = vector.load %arg1[%c257, %c0_746, %c0_747] : memref<411x8x128xf32, #tpu.memory_space<vmem>>, vector<1x8x128xf32>
      %1457 = vector.shape_cast %1456 : vector<1x8x128xf32> to vector<8x128xf32>
      %1458 = arith.mulf %1457, %434 : vector<8x128xf32>
      %1459 = arith.addf %1455, %1458 : vector<8x128xf32>
      %c266 = arith.constant 266 : index
      %c0_748 = arith.constant 0 : index
      %c0_749 = arith.constant 0 : index
      %1460 = vector.load %arg1[%c266, %c0_748, %c0_749] : memref<411x8x128xf32, #tpu.memory_space<vmem>>, vector<1x8x128xf32>
      %1461 = vector.shape_cast %1460 : vector<1x8x128xf32> to vector<8x128xf32>
      %1462 = arith.mulf %1461, %475 : vector<8x128xf32>
      %1463 = arith.addf %1459, %1462 : vector<8x128xf32>
      %c275 = arith.constant 275 : index
      %c0_750 = arith.constant 0 : index
      %c0_751 = arith.constant 0 : index
      %1464 = vector.load %arg1[%c275, %c0_750, %c0_751] : memref<411x8x128xf32, #tpu.memory_space<vmem>>, vector<1x8x128xf32>
      %1465 = vector.shape_cast %1464 : vector<1x8x128xf32> to vector<8x128xf32>
      %1466 = arith.mulf %1465, %516 : vector<8x128xf32>
      %1467 = arith.addf %1463, %1466 : vector<8x128xf32>
      %c284 = arith.constant 284 : index
      %c0_752 = arith.constant 0 : index
      %c0_753 = arith.constant 0 : index
      %1468 = vector.load %arg1[%c284, %c0_752, %c0_753] : memref<411x8x128xf32, #tpu.memory_space<vmem>>, vector<1x8x128xf32>
      %1469 = vector.shape_cast %1468 : vector<1x8x128xf32> to vector<8x128xf32>
      %1470 = arith.mulf %1469, %557 : vector<8x128xf32>
      %1471 = arith.addf %1467, %1470 : vector<8x128xf32>
      %c293 = arith.constant 293 : index
      %c0_754 = arith.constant 0 : index
      %c0_755 = arith.constant 0 : index
      %1472 = vector.load %arg1[%c293, %c0_754, %c0_755] : memref<411x8x128xf32, #tpu.memory_space<vmem>>, vector<1x8x128xf32>
      %1473 = vector.shape_cast %1472 : vector<1x8x128xf32> to vector<8x128xf32>
      %1474 = arith.mulf %1473, %598 : vector<8x128xf32>
      %1475 = arith.addf %1471, %1474 : vector<8x128xf32>
      %c302 = arith.constant 302 : index
      %c0_756 = arith.constant 0 : index
      %c0_757 = arith.constant 0 : index
      %1476 = vector.load %arg1[%c302, %c0_756, %c0_757] : memref<411x8x128xf32, #tpu.memory_space<vmem>>, vector<1x8x128xf32>
      %1477 = vector.shape_cast %1476 : vector<1x8x128xf32> to vector<8x128xf32>
      %1478 = arith.mulf %1477, %639 : vector<8x128xf32>
      %1479 = arith.addf %1475, %1478 : vector<8x128xf32>
      %c311 = arith.constant 311 : index
      %c0_758 = arith.constant 0 : index
      %c0_759 = arith.constant 0 : index
      %1480 = vector.load %arg1[%c311, %c0_758, %c0_759] : memref<411x8x128xf32, #tpu.memory_space<vmem>>, vector<1x8x128xf32>
      %1481 = vector.shape_cast %1480 : vector<1x8x128xf32> to vector<8x128xf32>
      %1482 = arith.mulf %1481, %680 : vector<8x128xf32>
      %1483 = arith.addf %1479, %1482 : vector<8x128xf32>
      %c320 = arith.constant 320 : index
      %c0_760 = arith.constant 0 : index
      %c0_761 = arith.constant 0 : index
      %1484 = vector.load %arg1[%c320, %c0_760, %c0_761] : memref<411x8x128xf32, #tpu.memory_space<vmem>>, vector<1x8x128xf32>
      %1485 = vector.shape_cast %1484 : vector<1x8x128xf32> to vector<8x128xf32>
      %1486 = arith.mulf %1485, %721 : vector<8x128xf32>
      %1487 = arith.addf %1483, %1486 : vector<8x128xf32>
      %c329 = arith.constant 329 : index
      %c0_762 = arith.constant 0 : index
      %c0_763 = arith.constant 0 : index
      %1488 = vector.load %arg1[%c329, %c0_762, %c0_763] : memref<411x8x128xf32, #tpu.memory_space<vmem>>, vector<1x8x128xf32>
      %1489 = vector.shape_cast %1488 : vector<1x8x128xf32> to vector<8x128xf32>
      %1490 = arith.mulf %1489, %762 : vector<8x128xf32>
      %1491 = arith.addf %1487, %1490 : vector<8x128xf32>
      %c338 = arith.constant 338 : index
      %c0_764 = arith.constant 0 : index
      %c0_765 = arith.constant 0 : index
      %1492 = vector.load %arg1[%c338, %c0_764, %c0_765] : memref<411x8x128xf32, #tpu.memory_space<vmem>>, vector<1x8x128xf32>
      %1493 = vector.shape_cast %1492 : vector<1x8x128xf32> to vector<8x128xf32>
      %1494 = arith.mulf %1493, %803 : vector<8x128xf32>
      %1495 = arith.addf %1491, %1494 : vector<8x128xf32>
      %c347 = arith.constant 347 : index
      %c0_766 = arith.constant 0 : index
      %c0_767 = arith.constant 0 : index
      %1496 = vector.load %arg1[%c347, %c0_766, %c0_767] : memref<411x8x128xf32, #tpu.memory_space<vmem>>, vector<1x8x128xf32>
      %1497 = vector.shape_cast %1496 : vector<1x8x128xf32> to vector<8x128xf32>
      %1498 = arith.mulf %1497, %844 : vector<8x128xf32>
      %1499 = arith.addf %1495, %1498 : vector<8x128xf32>
      %c356 = arith.constant 356 : index
      %c0_768 = arith.constant 0 : index
      %c0_769 = arith.constant 0 : index
      %1500 = vector.load %arg1[%c356, %c0_768, %c0_769] : memref<411x8x128xf32, #tpu.memory_space<vmem>>, vector<1x8x128xf32>
      %1501 = vector.shape_cast %1500 : vector<1x8x128xf32> to vector<8x128xf32>
      %1502 = arith.mulf %1501, %885 : vector<8x128xf32>
      %1503 = arith.addf %1499, %1502 : vector<8x128xf32>
      %cst_770 = arith.constant 1.000000e-01 : f32
      %1504 = vector.broadcast %cst_770 : f32 to vector<8x128xf32>
      %1505 = arith.mulf %1504, %1503 : vector<8x128xf32>
      %1506 = arith.maximumf %1503, %1505 : vector<8x128xf32>
      %c402 = arith.constant 402 : index
      %c0_771 = arith.constant 0 : index
      %c0_772 = arith.constant 0 : index
      %1507 = vector.load %arg1[%c402, %c0_771, %c0_772] : memref<411x8x128xf32, #tpu.memory_space<vmem>>, vector<1x8x128xf32>
      %1508 = vector.shape_cast %1507 : vector<1x8x128xf32> to vector<8x128xf32>
      %c366 = arith.constant 366 : index
      %c0_773 = arith.constant 0 : index
      %c0_774 = arith.constant 0 : index
      %1509 = vector.load %arg1[%c366, %c0_773, %c0_774] : memref<411x8x128xf32, #tpu.memory_space<vmem>>, vector<1x8x128xf32>
      %1510 = vector.shape_cast %1509 : vector<1x8x128xf32> to vector<8x128xf32>
      %1511 = arith.mulf %1510, %954 : vector<8x128xf32>
      %1512 = arith.addf %1508, %1511 : vector<8x128xf32>
      %c370 = arith.constant 370 : index
      %c0_775 = arith.constant 0 : index
      %c0_776 = arith.constant 0 : index
      %1513 = vector.load %arg1[%c370, %c0_775, %c0_776] : memref<411x8x128xf32, #tpu.memory_space<vmem>>, vector<1x8x128xf32>
      %1514 = vector.shape_cast %1513 : vector<1x8x128xf32> to vector<8x128xf32>
      %1515 = arith.mulf %1514, %1023 : vector<8x128xf32>
      %1516 = arith.addf %1512, %1515 : vector<8x128xf32>
      %c374 = arith.constant 374 : index
      %c0_777 = arith.constant 0 : index
      %c0_778 = arith.constant 0 : index
      %1517 = vector.load %arg1[%c374, %c0_777, %c0_778] : memref<411x8x128xf32, #tpu.memory_space<vmem>>, vector<1x8x128xf32>
      %1518 = vector.shape_cast %1517 : vector<1x8x128xf32> to vector<8x128xf32>
      %1519 = arith.mulf %1518, %1092 : vector<8x128xf32>
      %1520 = arith.addf %1516, %1519 : vector<8x128xf32>
      %c378 = arith.constant 378 : index
      %c0_779 = arith.constant 0 : index
      %c0_780 = arith.constant 0 : index
      %1521 = vector.load %arg1[%c378, %c0_779, %c0_780] : memref<411x8x128xf32, #tpu.memory_space<vmem>>, vector<1x8x128xf32>
      %1522 = vector.shape_cast %1521 : vector<1x8x128xf32> to vector<8x128xf32>
      %1523 = arith.mulf %1522, %1161 : vector<8x128xf32>
      %1524 = arith.addf %1520, %1523 : vector<8x128xf32>
      %c382 = arith.constant 382 : index
      %c0_781 = arith.constant 0 : index
      %c0_782 = arith.constant 0 : index
      %1525 = vector.load %arg1[%c382, %c0_781, %c0_782] : memref<411x8x128xf32, #tpu.memory_space<vmem>>, vector<1x8x128xf32>
      %1526 = vector.shape_cast %1525 : vector<1x8x128xf32> to vector<8x128xf32>
      %1527 = arith.mulf %1526, %1230 : vector<8x128xf32>
      %1528 = arith.addf %1524, %1527 : vector<8x128xf32>
      %c386 = arith.constant 386 : index
      %c0_783 = arith.constant 0 : index
      %c0_784 = arith.constant 0 : index
      %1529 = vector.load %arg1[%c386, %c0_783, %c0_784] : memref<411x8x128xf32, #tpu.memory_space<vmem>>, vector<1x8x128xf32>
      %1530 = vector.shape_cast %1529 : vector<1x8x128xf32> to vector<8x128xf32>
      %1531 = arith.mulf %1530, %1299 : vector<8x128xf32>
      %1532 = arith.addf %1528, %1531 : vector<8x128xf32>
      %c390 = arith.constant 390 : index
      %c0_785 = arith.constant 0 : index
      %c0_786 = arith.constant 0 : index
      %1533 = vector.load %arg1[%c390, %c0_785, %c0_786] : memref<411x8x128xf32, #tpu.memory_space<vmem>>, vector<1x8x128xf32>
      %1534 = vector.shape_cast %1533 : vector<1x8x128xf32> to vector<8x128xf32>
      %1535 = arith.mulf %1534, %1368 : vector<8x128xf32>
      %1536 = arith.addf %1532, %1535 : vector<8x128xf32>
      %c394 = arith.constant 394 : index
      %c0_787 = arith.constant 0 : index
      %c0_788 = arith.constant 0 : index
      %1537 = vector.load %arg1[%c394, %c0_787, %c0_788] : memref<411x8x128xf32, #tpu.memory_space<vmem>>, vector<1x8x128xf32>
      %1538 = vector.shape_cast %1537 : vector<1x8x128xf32> to vector<8x128xf32>
      %1539 = arith.mulf %1538, %1437 : vector<8x128xf32>
      %1540 = arith.addf %1536, %1539 : vector<8x128xf32>
      %c398 = arith.constant 398 : index
      %c0_789 = arith.constant 0 : index
      %c0_790 = arith.constant 0 : index
      %1541 = vector.load %arg1[%c398, %c0_789, %c0_790] : memref<411x8x128xf32, #tpu.memory_space<vmem>>, vector<1x8x128xf32>
      %1542 = vector.shape_cast %1541 : vector<1x8x128xf32> to vector<8x128xf32>
      %1543 = arith.mulf %1542, %1506 : vector<8x128xf32>
      %1544 = arith.addf %1540, %1543 : vector<8x128xf32>
      %cst_791 = arith.constant 1.000000e-01 : f32
      %1545 = vector.broadcast %cst_791 : f32 to vector<8x128xf32>
      %1546 = arith.mulf %1545, %1544 : vector<8x128xf32>
      %1547 = arith.maximumf %1544, %1546 : vector<8x128xf32>
      %c403 = arith.constant 403 : index
      %c0_792 = arith.constant 0 : index
      %c0_793 = arith.constant 0 : index
      %1548 = vector.load %arg1[%c403, %c0_792, %c0_793] : memref<411x8x128xf32, #tpu.memory_space<vmem>>, vector<1x8x128xf32>
      %1549 = vector.shape_cast %1548 : vector<1x8x128xf32> to vector<8x128xf32>
      %c367 = arith.constant 367 : index
      %c0_794 = arith.constant 0 : index
      %c0_795 = arith.constant 0 : index
      %1550 = vector.load %arg1[%c367, %c0_794, %c0_795] : memref<411x8x128xf32, #tpu.memory_space<vmem>>, vector<1x8x128xf32>
      %1551 = vector.shape_cast %1550 : vector<1x8x128xf32> to vector<8x128xf32>
      %1552 = arith.mulf %1551, %954 : vector<8x128xf32>
      %1553 = arith.addf %1549, %1552 : vector<8x128xf32>
      %c371 = arith.constant 371 : index
      %c0_796 = arith.constant 0 : index
      %c0_797 = arith.constant 0 : index
      %1554 = vector.load %arg1[%c371, %c0_796, %c0_797] : memref<411x8x128xf32, #tpu.memory_space<vmem>>, vector<1x8x128xf32>
      %1555 = vector.shape_cast %1554 : vector<1x8x128xf32> to vector<8x128xf32>
      %1556 = arith.mulf %1555, %1023 : vector<8x128xf32>
      %1557 = arith.addf %1553, %1556 : vector<8x128xf32>
      %c375 = arith.constant 375 : index
      %c0_798 = arith.constant 0 : index
      %c0_799 = arith.constant 0 : index
      %1558 = vector.load %arg1[%c375, %c0_798, %c0_799] : memref<411x8x128xf32, #tpu.memory_space<vmem>>, vector<1x8x128xf32>
      %1559 = vector.shape_cast %1558 : vector<1x8x128xf32> to vector<8x128xf32>
      %1560 = arith.mulf %1559, %1092 : vector<8x128xf32>
      %1561 = arith.addf %1557, %1560 : vector<8x128xf32>
      %c379 = arith.constant 379 : index
      %c0_800 = arith.constant 0 : index
      %c0_801 = arith.constant 0 : index
      %1562 = vector.load %arg1[%c379, %c0_800, %c0_801] : memref<411x8x128xf32, #tpu.memory_space<vmem>>, vector<1x8x128xf32>
      %1563 = vector.shape_cast %1562 : vector<1x8x128xf32> to vector<8x128xf32>
      %1564 = arith.mulf %1563, %1161 : vector<8x128xf32>
      %1565 = arith.addf %1561, %1564 : vector<8x128xf32>
      %c383 = arith.constant 383 : index
      %c0_802 = arith.constant 0 : index
      %c0_803 = arith.constant 0 : index
      %1566 = vector.load %arg1[%c383, %c0_802, %c0_803] : memref<411x8x128xf32, #tpu.memory_space<vmem>>, vector<1x8x128xf32>
      %1567 = vector.shape_cast %1566 : vector<1x8x128xf32> to vector<8x128xf32>
      %1568 = arith.mulf %1567, %1230 : vector<8x128xf32>
      %1569 = arith.addf %1565, %1568 : vector<8x128xf32>
      %c387 = arith.constant 387 : index
      %c0_804 = arith.constant 0 : index
      %c0_805 = arith.constant 0 : index
      %1570 = vector.load %arg1[%c387, %c0_804, %c0_805] : memref<411x8x128xf32, #tpu.memory_space<vmem>>, vector<1x8x128xf32>
      %1571 = vector.shape_cast %1570 : vector<1x8x128xf32> to vector<8x128xf32>
      %1572 = arith.mulf %1571, %1299 : vector<8x128xf32>
      %1573 = arith.addf %1569, %1572 : vector<8x128xf32>
      %c391 = arith.constant 391 : index
      %c0_806 = arith.constant 0 : index
      %c0_807 = arith.constant 0 : index
      %1574 = vector.load %arg1[%c391, %c0_806, %c0_807] : memref<411x8x128xf32, #tpu.memory_space<vmem>>, vector<1x8x128xf32>
      %1575 = vector.shape_cast %1574 : vector<1x8x128xf32> to vector<8x128xf32>
      %1576 = arith.mulf %1575, %1368 : vector<8x128xf32>
      %1577 = arith.addf %1573, %1576 : vector<8x128xf32>
      %c395 = arith.constant 395 : index
      %c0_808 = arith.constant 0 : index
      %c0_809 = arith.constant 0 : index
      %1578 = vector.load %arg1[%c395, %c0_808, %c0_809] : memref<411x8x128xf32, #tpu.memory_space<vmem>>, vector<1x8x128xf32>
      %1579 = vector.shape_cast %1578 : vector<1x8x128xf32> to vector<8x128xf32>
      %1580 = arith.mulf %1579, %1437 : vector<8x128xf32>
      %1581 = arith.addf %1577, %1580 : vector<8x128xf32>
      %c399 = arith.constant 399 : index
      %c0_810 = arith.constant 0 : index
      %c0_811 = arith.constant 0 : index
      %1582 = vector.load %arg1[%c399, %c0_810, %c0_811] : memref<411x8x128xf32, #tpu.memory_space<vmem>>, vector<1x8x128xf32>
      %1583 = vector.shape_cast %1582 : vector<1x8x128xf32> to vector<8x128xf32>
      %1584 = arith.mulf %1583, %1506 : vector<8x128xf32>
      %1585 = arith.addf %1581, %1584 : vector<8x128xf32>
      %cst_812 = arith.constant 1.000000e-01 : f32
      %1586 = vector.broadcast %cst_812 : f32 to vector<8x128xf32>
      %1587 = arith.mulf %1586, %1585 : vector<8x128xf32>
      %1588 = arith.maximumf %1585, %1587 : vector<8x128xf32>
      %c404 = arith.constant 404 : index
      %c0_813 = arith.constant 0 : index
      %c0_814 = arith.constant 0 : index
      %1589 = vector.load %arg1[%c404, %c0_813, %c0_814] : memref<411x8x128xf32, #tpu.memory_space<vmem>>, vector<1x8x128xf32>
      %1590 = vector.shape_cast %1589 : vector<1x8x128xf32> to vector<8x128xf32>
      %c368 = arith.constant 368 : index
      %c0_815 = arith.constant 0 : index
      %c0_816 = arith.constant 0 : index
      %1591 = vector.load %arg1[%c368, %c0_815, %c0_816] : memref<411x8x128xf32, #tpu.memory_space<vmem>>, vector<1x8x128xf32>
      %1592 = vector.shape_cast %1591 : vector<1x8x128xf32> to vector<8x128xf32>
      %1593 = arith.mulf %1592, %954 : vector<8x128xf32>
      %1594 = arith.addf %1590, %1593 : vector<8x128xf32>
      %c372 = arith.constant 372 : index
      %c0_817 = arith.constant 0 : index
      %c0_818 = arith.constant 0 : index
      %1595 = vector.load %arg1[%c372, %c0_817, %c0_818] : memref<411x8x128xf32, #tpu.memory_space<vmem>>, vector<1x8x128xf32>
      %1596 = vector.shape_cast %1595 : vector<1x8x128xf32> to vector<8x128xf32>
      %1597 = arith.mulf %1596, %1023 : vector<8x128xf32>
      %1598 = arith.addf %1594, %1597 : vector<8x128xf32>
      %c376 = arith.constant 376 : index
      %c0_819 = arith.constant 0 : index
      %c0_820 = arith.constant 0 : index
      %1599 = vector.load %arg1[%c376, %c0_819, %c0_820] : memref<411x8x128xf32, #tpu.memory_space<vmem>>, vector<1x8x128xf32>
      %1600 = vector.shape_cast %1599 : vector<1x8x128xf32> to vector<8x128xf32>
      %1601 = arith.mulf %1600, %1092 : vector<8x128xf32>
      %1602 = arith.addf %1598, %1601 : vector<8x128xf32>
      %c380 = arith.constant 380 : index
      %c0_821 = arith.constant 0 : index
      %c0_822 = arith.constant 0 : index
      %1603 = vector.load %arg1[%c380, %c0_821, %c0_822] : memref<411x8x128xf32, #tpu.memory_space<vmem>>, vector<1x8x128xf32>
      %1604 = vector.shape_cast %1603 : vector<1x8x128xf32> to vector<8x128xf32>
      %1605 = arith.mulf %1604, %1161 : vector<8x128xf32>
      %1606 = arith.addf %1602, %1605 : vector<8x128xf32>
      %c384 = arith.constant 384 : index
      %c0_823 = arith.constant 0 : index
      %c0_824 = arith.constant 0 : index
      %1607 = vector.load %arg1[%c384, %c0_823, %c0_824] : memref<411x8x128xf32, #tpu.memory_space<vmem>>, vector<1x8x128xf32>
      %1608 = vector.shape_cast %1607 : vector<1x8x128xf32> to vector<8x128xf32>
      %1609 = arith.mulf %1608, %1230 : vector<8x128xf32>
      %1610 = arith.addf %1606, %1609 : vector<8x128xf32>
      %c388 = arith.constant 388 : index
      %c0_825 = arith.constant 0 : index
      %c0_826 = arith.constant 0 : index
      %1611 = vector.load %arg1[%c388, %c0_825, %c0_826] : memref<411x8x128xf32, #tpu.memory_space<vmem>>, vector<1x8x128xf32>
      %1612 = vector.shape_cast %1611 : vector<1x8x128xf32> to vector<8x128xf32>
      %1613 = arith.mulf %1612, %1299 : vector<8x128xf32>
      %1614 = arith.addf %1610, %1613 : vector<8x128xf32>
      %c392 = arith.constant 392 : index
      %c0_827 = arith.constant 0 : index
      %c0_828 = arith.constant 0 : index
      %1615 = vector.load %arg1[%c392, %c0_827, %c0_828] : memref<411x8x128xf32, #tpu.memory_space<vmem>>, vector<1x8x128xf32>
      %1616 = vector.shape_cast %1615 : vector<1x8x128xf32> to vector<8x128xf32>
      %1617 = arith.mulf %1616, %1368 : vector<8x128xf32>
      %1618 = arith.addf %1614, %1617 : vector<8x128xf32>
      %c396 = arith.constant 396 : index
      %c0_829 = arith.constant 0 : index
      %c0_830 = arith.constant 0 : index
      %1619 = vector.load %arg1[%c396, %c0_829, %c0_830] : memref<411x8x128xf32, #tpu.memory_space<vmem>>, vector<1x8x128xf32>
      %1620 = vector.shape_cast %1619 : vector<1x8x128xf32> to vector<8x128xf32>
      %1621 = arith.mulf %1620, %1437 : vector<8x128xf32>
      %1622 = arith.addf %1618, %1621 : vector<8x128xf32>
      %c400 = arith.constant 400 : index
      %c0_831 = arith.constant 0 : index
      %c0_832 = arith.constant 0 : index
      %1623 = vector.load %arg1[%c400, %c0_831, %c0_832] : memref<411x8x128xf32, #tpu.memory_space<vmem>>, vector<1x8x128xf32>
      %1624 = vector.shape_cast %1623 : vector<1x8x128xf32> to vector<8x128xf32>
      %1625 = arith.mulf %1624, %1506 : vector<8x128xf32>
      %1626 = arith.addf %1622, %1625 : vector<8x128xf32>
      %cst_833 = arith.constant 1.000000e-01 : f32
      %1627 = vector.broadcast %cst_833 : f32 to vector<8x128xf32>
      %1628 = arith.mulf %1627, %1626 : vector<8x128xf32>
      %1629 = arith.maximumf %1626, %1628 : vector<8x128xf32>
      %c405 = arith.constant 405 : index
      %c0_834 = arith.constant 0 : index
      %c0_835 = arith.constant 0 : index
      %1630 = vector.load %arg1[%c405, %c0_834, %c0_835] : memref<411x8x128xf32, #tpu.memory_space<vmem>>, vector<1x8x128xf32>
      %1631 = vector.shape_cast %1630 : vector<1x8x128xf32> to vector<8x128xf32>
      %c369 = arith.constant 369 : index
      %c0_836 = arith.constant 0 : index
      %c0_837 = arith.constant 0 : index
      %1632 = vector.load %arg1[%c369, %c0_836, %c0_837] : memref<411x8x128xf32, #tpu.memory_space<vmem>>, vector<1x8x128xf32>
      %1633 = vector.shape_cast %1632 : vector<1x8x128xf32> to vector<8x128xf32>
      %1634 = arith.mulf %1633, %954 : vector<8x128xf32>
      %1635 = arith.addf %1631, %1634 : vector<8x128xf32>
      %c373 = arith.constant 373 : index
      %c0_838 = arith.constant 0 : index
      %c0_839 = arith.constant 0 : index
      %1636 = vector.load %arg1[%c373, %c0_838, %c0_839] : memref<411x8x128xf32, #tpu.memory_space<vmem>>, vector<1x8x128xf32>
      %1637 = vector.shape_cast %1636 : vector<1x8x128xf32> to vector<8x128xf32>
      %1638 = arith.mulf %1637, %1023 : vector<8x128xf32>
      %1639 = arith.addf %1635, %1638 : vector<8x128xf32>
      %c377 = arith.constant 377 : index
      %c0_840 = arith.constant 0 : index
      %c0_841 = arith.constant 0 : index
      %1640 = vector.load %arg1[%c377, %c0_840, %c0_841] : memref<411x8x128xf32, #tpu.memory_space<vmem>>, vector<1x8x128xf32>
      %1641 = vector.shape_cast %1640 : vector<1x8x128xf32> to vector<8x128xf32>
      %1642 = arith.mulf %1641, %1092 : vector<8x128xf32>
      %1643 = arith.addf %1639, %1642 : vector<8x128xf32>
      %c381 = arith.constant 381 : index
      %c0_842 = arith.constant 0 : index
      %c0_843 = arith.constant 0 : index
      %1644 = vector.load %arg1[%c381, %c0_842, %c0_843] : memref<411x8x128xf32, #tpu.memory_space<vmem>>, vector<1x8x128xf32>
      %1645 = vector.shape_cast %1644 : vector<1x8x128xf32> to vector<8x128xf32>
      %1646 = arith.mulf %1645, %1161 : vector<8x128xf32>
      %1647 = arith.addf %1643, %1646 : vector<8x128xf32>
      %c385 = arith.constant 385 : index
      %c0_844 = arith.constant 0 : index
      %c0_845 = arith.constant 0 : index
      %1648 = vector.load %arg1[%c385, %c0_844, %c0_845] : memref<411x8x128xf32, #tpu.memory_space<vmem>>, vector<1x8x128xf32>
      %1649 = vector.shape_cast %1648 : vector<1x8x128xf32> to vector<8x128xf32>
      %1650 = arith.mulf %1649, %1230 : vector<8x128xf32>
      %1651 = arith.addf %1647, %1650 : vector<8x128xf32>
      %c389 = arith.constant 389 : index
      %c0_846 = arith.constant 0 : index
      %c0_847 = arith.constant 0 : index
      %1652 = vector.load %arg1[%c389, %c0_846, %c0_847] : memref<411x8x128xf32, #tpu.memory_space<vmem>>, vector<1x8x128xf32>
      %1653 = vector.shape_cast %1652 : vector<1x8x128xf32> to vector<8x128xf32>
      %1654 = arith.mulf %1653, %1299 : vector<8x128xf32>
      %1655 = arith.addf %1651, %1654 : vector<8x128xf32>
      %c393 = arith.constant 393 : index
      %c0_848 = arith.constant 0 : index
      %c0_849 = arith.constant 0 : index
      %1656 = vector.load %arg1[%c393, %c0_848, %c0_849] : memref<411x8x128xf32, #tpu.memory_space<vmem>>, vector<1x8x128xf32>
      %1657 = vector.shape_cast %1656 : vector<1x8x128xf32> to vector<8x128xf32>
      %1658 = arith.mulf %1657, %1368 : vector<8x128xf32>
      %1659 = arith.addf %1655, %1658 : vector<8x128xf32>
      %c397 = arith.constant 397 : index
      %c0_850 = arith.constant 0 : index
      %c0_851 = arith.constant 0 : index
      %1660 = vector.load %arg1[%c397, %c0_850, %c0_851] : memref<411x8x128xf32, #tpu.memory_space<vmem>>, vector<1x8x128xf32>
      %1661 = vector.shape_cast %1660 : vector<1x8x128xf32> to vector<8x128xf32>
      %1662 = arith.mulf %1661, %1437 : vector<8x128xf32>
      %1663 = arith.addf %1659, %1662 : vector<8x128xf32>
      %c401 = arith.constant 401 : index
      %c0_852 = arith.constant 0 : index
      %c0_853 = arith.constant 0 : index
      %1664 = vector.load %arg1[%c401, %c0_852, %c0_853] : memref<411x8x128xf32, #tpu.memory_space<vmem>>, vector<1x8x128xf32>
      %1665 = vector.shape_cast %1664 : vector<1x8x128xf32> to vector<8x128xf32>
      %1666 = arith.mulf %1665, %1506 : vector<8x128xf32>
      %1667 = arith.addf %1663, %1666 : vector<8x128xf32>
      %cst_854 = arith.constant 1.000000e-01 : f32
      %1668 = vector.broadcast %cst_854 : f32 to vector<8x128xf32>
      %1669 = arith.mulf %1668, %1667 : vector<8x128xf32>
      %1670 = arith.maximumf %1667, %1669 : vector<8x128xf32>
      %c410 = arith.constant 410 : index
      %c0_855 = arith.constant 0 : index
      %c0_856 = arith.constant 0 : index
      %1671 = vector.load %arg1[%c410, %c0_855, %c0_856] : memref<411x8x128xf32, #tpu.memory_space<vmem>>, vector<1x8x128xf32>
      %1672 = vector.shape_cast %1671 : vector<1x8x128xf32> to vector<8x128xf32>
      %c406 = arith.constant 406 : index
      %c0_857 = arith.constant 0 : index
      %c0_858 = arith.constant 0 : index
      %1673 = vector.load %arg1[%c406, %c0_857, %c0_858] : memref<411x8x128xf32, #tpu.memory_space<vmem>>, vector<1x8x128xf32>
      %1674 = vector.shape_cast %1673 : vector<1x8x128xf32> to vector<8x128xf32>
      %1675 = arith.mulf %1674, %1547 : vector<8x128xf32>
      %1676 = arith.addf %1672, %1675 : vector<8x128xf32>
      %c407 = arith.constant 407 : index
      %c0_859 = arith.constant 0 : index
      %c0_860 = arith.constant 0 : index
      %1677 = vector.load %arg1[%c407, %c0_859, %c0_860] : memref<411x8x128xf32, #tpu.memory_space<vmem>>, vector<1x8x128xf32>
      %1678 = vector.shape_cast %1677 : vector<1x8x128xf32> to vector<8x128xf32>
      %1679 = arith.mulf %1678, %1588 : vector<8x128xf32>
      %1680 = arith.addf %1676, %1679 : vector<8x128xf32>
      %c408 = arith.constant 408 : index
      %c0_861 = arith.constant 0 : index
      %c0_862 = arith.constant 0 : index
      %1681 = vector.load %arg1[%c408, %c0_861, %c0_862] : memref<411x8x128xf32, #tpu.memory_space<vmem>>, vector<1x8x128xf32>
      %1682 = vector.shape_cast %1681 : vector<1x8x128xf32> to vector<8x128xf32>
      %1683 = arith.mulf %1682, %1629 : vector<8x128xf32>
      %1684 = arith.addf %1680, %1683 : vector<8x128xf32>
      %c409 = arith.constant 409 : index
      %c0_863 = arith.constant 0 : index
      %c0_864 = arith.constant 0 : index
      %1685 = vector.load %arg1[%c409, %c0_863, %c0_864] : memref<411x8x128xf32, #tpu.memory_space<vmem>>, vector<1x8x128xf32>
      %1686 = vector.shape_cast %1685 : vector<1x8x128xf32> to vector<8x128xf32>
      %1687 = arith.mulf %1686, %1670 : vector<8x128xf32>
      %1688 = arith.addf %1684, %1687 : vector<8x128xf32>
      %c0_865 = arith.constant 0 : index
      %1689 = arith.index_cast %2 : i32 to index
      %1690 = vector.load %arg3[%c0_865, %1689] : memref<8x384xf32, #tpu.memory_space<vmem>>, vector<8x128xf32>
      tpu.vector_store %arg3[%c0_865, %1689], %1688 {strides = array<i32>} : memref<8x384xf32, #tpu.memory_space<vmem>>, vector<8x128xf32>,
    }
    %c3_i32_0 = arith.constant 3 : i32
    return
  }
  func.func @transform_0(%arg0: i32) -> (i32, i32, i32) {
    %c0_i32 = arith.constant 0 : i32
    %c0_i32_0 = arith.constant 0 : i32
    %c0_i32_1 = arith.constant 0 : i32
    %c0_i32_2 = arith.constant 0 : i32
    return %c0_i32, %c0_i32_0, %c0_i32_1 : i32, i32, i32
  }
  func.func @transform_1(%arg0: i32) -> (i32, i32) {
    %c0_i32 = arith.constant 0 : i32
    %c0_i32_0 = arith.constant 0 : i32
    return %arg0, %c0_i32 : i32, i32
  }
  func.func @transform_2(%arg0: i32) -> (i32, i32) {
    %c0_i32 = arith.constant 0 : i32
    %c0_i32_0 = arith.constant 0 : i32
    return %arg0, %c0_i32 : i32, i32
  }
}

</mosaic_0001>

<llo_original>
// kernel: net_forward.1
$region0: #{net_forward.1}
  #allocation0 [shape = 'u32[]', space=smem, size = 0x4, offset = 0x4, fixed_abs, tag = 'smem constant byte address 0x4 - core index']
  #allocation1 [shape = 'u32[72,128]{1,0:T(1,128)}', space=vmem, size = 0x9000, scoped, tag = 'internal scratch']
  %s0 = inlined_call_operand.hbm [shape: f32[411,8,128], index: 0, kind: input, shape index: {}]
  %s1 = inlined_call_operand.vmem [shape: f32[16,384], index: 1, kind: input, shape index: {}]
  %s2 = inlined_call_operand.vmem [shape: f32[16,384], index: 2, kind: output, shape index: {}]
  %s3 = sld [smem:[#allocation0]]
  $region52: #{net_forward.1} parent=0
    _
  %s5 = ssub.s32 1, %s3
  %s6 = scalar_select 0, %s5, %s3
  $region1: #{net_forward.1} parent=0
    #allocation2 [shape = 'u8[1683456]{0}', space=vmem, size = 0x19b000, scoped, tag = 'input window, operand 0, single buffered']
    #allocation3 [shape = 's32[2]{0}', space=sflag, size = 0x8, scoped, tag = 'scoped memory for net_forward.1']
    %7 = vsyncpa [#allocation3], 0
    loop: start=0, step=1, limit=4
    $region2: #{net_forward.1} parent=1 // loop_pre_header
      _
    $region3: #{net_forward.1} parent=1 // loop_header
      %s9 = sphi 0, %s13
      %p10 = scmp.ge.s32.totalorder %s9, 4
      %s17 = sphi 0, %s17
      %s19 = sphi 0, %s17
      %s20 = sphi 0, %s19
      %s34 = sphi 0, %s20
      %s40 = sphi 0, %s42
      %s43 = sphi 0, %s40
      %s44 = sphi 0, %s43
      %s60 = sphi 0, %s44
      %s66 = sphi 0, %s68
      %s69 = sphi 0, %s66
      %s70 = sphi 0, %s69
      %s86 = sphi 0, %s70
    $region4: #{net_forward.1} parent=1 // loop_header_branch
      %12 = sbr.rel (%p10) target = $region8
    $region5: #{net_forward.1} parent=1 // loop_body
      %s14 = ssub.s32 %s9, 1
      %s15 = ssub.s32 %s9, 2
      %s16 = sadd.s32 %s9, 1
      %s18 = sadd.s32 %s17, 1
      %p21 = scmp.eq.s32.totalorder %s9, 1
      %p22 = scmp.ne.s32.totalorder %s17, %s19
      %p23 = scmp.eq.s32.totalorder %s9, 0
      %p24 = por %p22, %p23
      %p25 = scmp.ne.s32.totalorder %s17, %s19
      %p26 = scmp.eq.s32.totalorder %s14, 1
      %p27 = por %p25, %p26
      %p28 = scmp.ne.s32.totalorder %s19, %s20
      %p29 = scmp.eq.s32.totalorder %s14, 0
      %p30 = por %p28, %p29
      %p31 = scmp.ne.s32.totalorder %s19, %s20
      %p32 = scmp.eq.s32.totalorder %s15, 1
      %p33 = por %p31, %p32
      %p35 = scmp.ne.s32.totalorder %s20, %s34
      %p36 = scmp.eq.s32.totalorder %s15, 0
      %p37 = por %p35, %p36
      %s38 = ssub.s32 %s9, %s16
      %p39 = scmp.eq.s32.totalorder %s38, 0
      %s41 = sadd.s32 %s40, 1
      %s42 = scalar_select %p39, %s40, %s41
      %p45 = pneg %p39
      %p46 = scmp.eq.s32.totalorder %s9, 1
      %p47 = por %p45, %p46
      %p48 = scmp.ne.s32.totalorder %s40, %s43
      %p49 = scmp.eq.s32.totalorder %s9, 0
      %p50 = por %p48, %p49
      %p51 = scmp.ne.s32.totalorder %s40, %s43
      %p52 = scmp.eq.s32.totalorder %s14, 1
      %p53 = por %p51, %p52
      %p54 = scmp.ne.s32.totalorder %s43, %s44
      %p55 = scmp.eq.s32.totalorder %s14, 0
      %p56 = por %p54, %p55
      %p57 = scmp.ne.s32.totalorder %s43, %s44
      %p58 = scmp.eq.s32.totalorder %s15, 1
      %p59 = por %p57, %p58
      %p61 = scmp.ne.s32.totalorder %s44, %s60
      %p62 = scmp.eq.s32.totalorder %s15, 0
      %p63 = por %p61, %p62
      %s64 = ssub.s32 %s9, %s16
      %p65 = scmp.eq.s32.totalorder %s64, 0
      %s67 = sadd.s32 %s66, 1
      %s68 = scalar_select %p65, %s66, %s67
      %p71 = pneg %p65
      %p72 = scmp.eq.s32.totalorder %s9, 1
      %p73 = por %p71, %p72
      %p74 = scmp.ne.s32.totalorder %s66, %s69
      %p75 = scmp.eq.s32.totalorder %s9, 0
      %p76 = por %p74, %p75
      %p77 = scmp.ne.s32.totalorder %s66, %s69
      %p78 = scmp.eq.s32.totalorder %s14, 1
      %p79 = por %p77, %p78
      %p80 = scmp.ne.s32.totalorder %s69, %s70
      %p81 = scmp.eq.s32.totalorder %s14, 0
      %p82 = por %p80, %p81
      %p83 = scmp.ne.s32.totalorder %s69, %s70
      %p84 = scmp.eq.s32.totalorder %s15, 1
      %p85 = por %p83, %p84
      %p87 = scmp.ne.s32.totalorder %s70, %s86
      %p88 = scmp.eq.s32.totalorder %s15, 0
      %p89 = por %p87, %p88
      %p90 = scmp.le.s32.totalorder 1, %s9
      %p91 = scmp.lt.s32.totalorder %s9, 3
      %p92 = pnand %p90, %p91
      %p93 = pneg %p92
      // Predicated region
      $region9: #{net_forward.1} parent=5 // pred_check
        _
      $region10: #{net_forward.1} parent=5 // pred_check_branch
        %95 = sbr.rel (%p92) target = $region12
      $region11: #{net_forward.1} parent=5 // pred_region
        %s96 = ssub.s32 %s9, 1
        // Predicated region
        $region13: #{net_forward.1} parent=11 // pred_check
          %p97 = pneg %p30
        $region14: #{net_forward.1} parent=11 // pred_check_branch
          %99 = sbr.rel (%p97) target = $region16
        $region15: #{net_forward.1} parent=11 // pred_region
          %101 = vsyncadd [#allocation3], 0
          %s102 = sshll.u32 %s0, 4
          %s103 = int_to_ptr.hbm [resolvable:$true] %s102
          %s104 = sshll.u32 [#allocation2], 4
          %s105 = int_to_ptr.vmem [resolvable:$true] %s104
          %110 = dma.hbm_to_vmem [thread:$0]  %s103, 52608, %s105, [#allocation3], 128, 128, 8
        $region16: #{net_forward.1} parent=11 // pred_fallthru
          _
      $region12: #{net_forward.1} parent=5 // pred_fallthru
        _
      %p111 = scmp.lt.s32.totalorder %s9, 2
      // Predicated region
      $region17: #{net_forward.1} parent=5 // pred_check
        %p112 = pneg %p111
      $region18: #{net_forward.1} parent=5 // pred_check_branch
        %114 = sbr.rel (%p112) target = $region20
      $region19: #{net_forward.1} parent=5 // pred_region
        // Predicated region
        $region21: #{net_forward.1} parent=19 // pred_check
          %p115 = pneg %p50
        $region22: #{net_forward.1} parent=19 // pred_check_branch
          %117 = sbr.rel (%p115) target = $region24
        $region23: #{net_forward.1} parent=19 // pred_region
          %p118 = scmp.lt.s32.totalorder %s9, 1
          %s119 = scalar_select %p118, %s9, 1
          %s120 = smul.addr %s119, 3
          %s121 = smul.addr %s120, 8
          %s122 = scalar_lea.vmem %s1, %s121
        $region24: #{net_forward.1} parent=19 // pred_fallthru
          _
      $region20: #{net_forward.1} parent=5 // pred_fallthru
        _
      %p123 = scmp.le.s32.totalorder 1, %s9
      %p124 = scmp.lt.s32.totalorder %s9, 3
      %p125 = pnand %p123, %p124
      %p126 = pneg %p125
      // Predicated region
      $region25: #{net_forward.1} parent=5 // pred_check
        _
      $region26: #{net_forward.1} parent=5 // pred_check_branch
        %128 = sbr.rel (%p125) target = $region28
      $region27: #{net_forward.1} parent=5 // pred_region
        %s129 = ssub.s32 %s9, 1
        // Predicated region
        $region29: #{net_forward.1} parent=27 // pred_check
          %p130 = pneg %p30
        $region30: #{net_forward.1} parent=27 // pred_check_branch
          %132 = sbr.rel (%p130) target = $region32
        $region31: #{net_forward.1} parent=27 // pred_region
          %134 = dma.done [#allocation3], 52608
        $region32: #{net_forward.1} parent=27 // pred_fallthru
          _
        %p135 = pneg %p30
        %p136 = pneg %p27
        %p137 = scmp.lt.s32.totalorder %s14, 1
        %s138 = scalar_select %p137, %s14, 1
        %s139 = smul.addr %s138, 3
        %s140 = smul.addr %s139, 8
        %s141 = scalar_lea.vmem %s1, %s140
        %p142 = pneg %p56
        %p143 = pneg %p53
        %p144 = pneg %p82
        %p145 = pneg %p79
        %p146 = scmp.lt.s32.totalorder %s14, 1
        %s147 = scalar_select %p146, %s14, 1
        %s148 = smul.addr %s147, 3
        %s149 = smul.addr %s148, 8
        %s150 = scalar_lea.vmem %s2, %s149
        %p151 = scmp.lt.s32.totalorder %s14, 1
        %s152 = scalar_select %p151, %s14, 1
        %s153 = smul.addr %s152, 3
        %s154 = smul.addr %s153, 8
        %s155 = scalar_lea.vmem %s1, %s154
        %p156 = scmp.lt.s32.totalorder %s14, 1
        %s157 = scalar_select %p156, %s14, 1
        %s158 = smul.addr %s157, 3
        %s159 = smul.addr %s158, 8
        %s160 = scalar_lea.vmem %s2, %s159
        loop: start=0, step=1, limit=3
        $region33: #{net_forward.1} parent=27 // loop_pre_header
          _
        $region34: #{net_forward.1} parent=27 // loop_header
          %s162 = sphi 0, %s166
          %p163 = scmp.ge.s32.totalorder %s162, 3
        $region35: #{net_forward.1} parent=27 // loop_header_branch
          %165 = sbr.rel (%p163) target = $region39
        $region36: #{net_forward.1} parent=27 // loop_body
          %s167 = smul.u32 %s162, 128
          %s168 = sshra.s32 %s167, 7
          %s169 = sand.u32 %s167, 127
          %s170 = smul.addr %s168, 8
          %s171 = scalar_lea.vmem %s155, %s170
          %v172 = vld [vmem:[%s171] sm:$0xff]
          %s173 = scalar_lea.vmem [#allocation2], 32
          %v174 = vld [vmem:[%s173] sm:$0xff]
          %v175 = vld [vmem:[#allocation2] sm:$0xff]
          %v176 = vmul.f32 %v175, %v172
          %v177 = vadd.f32 %v174, %v176
          %v178 = vmul.f32 %v177, 0.1
          %v179 = vmax.f32 %v177, %v178
          %s180 = scalar_lea.vmem [#allocation2], 40
          %v181 = vld [vmem:[%s180] sm:$0xff]
          %s182 = scalar_lea.vmem [#allocation2], 8
          %v183 = vld [vmem:[%s182] sm:$0xff]
          %v184 = vmul.f32 %v183, %v172
          %v185 = vadd.f32 %v181, %v184
          %v186 = vmul.f32 %v185, 0.1
          %v187 = vmax.f32 %v185, %v186
          %s188 = scalar_lea.vmem [#allocation2], 48
          %v189 = vld [vmem:[%s188] sm:$0xff]
          %s190 = scalar_lea.vmem [#allocation2], 16
          %v191 = vld [vmem:[%s190] sm:$0xff]
          %v192 = vmul.f32 %v191, %v172
          %v193 = vadd.f32 %v189, %v192
          %v194 = vmul.f32 %v193, 0.1
          %v195 = vmax.f32 %v193, %v194
          %s196 = scalar_lea.vmem [#allocation2], 56
          %v197 = vld [vmem:[%s196] sm:$0xff]
          %s198 = scalar_lea.vmem [#allocation2], 24
          %v199 = vld [vmem:[%s198] sm:$0xff]
          %v200 = vmul.f32 %v199, %v172
          %v201 = vadd.f32 %v197, %v200
          %v202 = vmul.f32 %v201, 0.1
          %v203 = vmax.f32 %v201, %v202
          %s204 = scalar_lea.vmem [#allocation2], 352
          %v205 = vld [vmem:[%s204] sm:$0xff]
          %s206 = scalar_lea.vmem [#allocation2], 64
          %v207 = vld [vmem:[%s206] sm:$0xff]
          %v208 = vmul.f32 %v207, %v179
          %v209 = vadd.f32 %v205, %v208
          %s210 = scalar_lea.vmem [#allocation2], 136
          %v211 = vld [vmem:[%s210] sm:$0xff]
          %v212 = vmul.f32 %v211, %v187
          %v213 = vadd.f32 %v209, %v212
          %s214 = scalar_lea.vmem [#allocation2], 208
          %v215 = vld [vmem:[%s214] sm:$0xff]
          %v216 = vmul.f32 %v215, %v195
          %v217 = vadd.f32 %v213, %v216
          %s218 = scalar_lea.vmem [#allocation2], 280
          %v219 = vld [vmem:[%s218] sm:$0xff]
          %v220 = vmul.f32 %v219, %v203
          %v221 = vadd.f32 %v217, %v220
          %v222 = vmul.f32 %v221, 0.1
          %v223 = vmax.f32 %v221, %v222
          %s224 = scalar_lea.vmem [#allocation2], 360
          %v225 = vld [vmem:[%s224] sm:$0xff]
          %s226 = scalar_lea.vmem [#allocation2], 72
          %v227 = vld [vmem:[%s226] sm:$0xff]
          %v228 = vmul.f32 %v227, %v179
          %v229 = vadd.f32 %v225, %v228
          %s230 = scalar_lea.vmem [#allocation2], 144
          %v231 = vld [vmem:[%s230] sm:$0xff]
          %v232 = vmul.f32 %v231, %v187
          %v233 = vadd.f32 %v229, %v232
          %s234 = scalar_lea.vmem [#allocation2], 216
          %v235 = vld [vmem:[%s234] sm:$0xff]
          %v236 = vmul.f32 %v235, %v195
          %v237 = vadd.f32 %v233, %v236
          %s238 = scalar_lea.vmem [#allocation2], 288
          %v239 = vld [vmem:[%s238] sm:$0xff]
          %v240 = vmul.f32 %v239, %v203
          %v241 = vadd.f32 %v237, %v240
          %v242 = vmul.f32 %v241, 0.1
          %v243 = vmax.f32 %v241, %v242
          %s244 = scalar_lea.vmem [#allocation2], 368
          %v245 = vld [vmem:[%s244] sm:$0xff]
          %s246 = scalar_lea.vmem [#allocation2], 80
          %v247 = vld [vmem:[%s246] sm:$0xff]
          %v248 = vmul.f32 %v247, %v179
          %v249 = vadd.f32 %v245, %v248
          %s250 = scalar_lea.vmem [#allocation2], 152
          %v251 = vld [vmem:[%s250] sm:$0xff]
          %v252 = vmul.f32 %v251, %v187
          %v253 = vadd.f32 %v249, %v252
          %s254 = scalar_lea.vmem [#allocation2], 224
          %v255 = vld [vmem:[%s254] sm:$0xff]
          %v256 = vmul.f32 %v255, %v195
          %v257 = vadd.f32 %v253, %v256
          %s258 = scalar_lea.vmem [#allocation2], 296
          %v259 = vld [vmem:[%s258] sm:$0xff]
          %v260 = vmul.f32 %v259, %v203
          %v261 = vadd.f32 %v257, %v260
          %v262 = vmul.f32 %v261, 0.1
          %v263 = vmax.f32 %v261, %v262
          %s264 = scalar_lea.vmem [#allocation2], 376
          %v265 = vld [vmem:[%s264] sm:$0xff]
          %s266 = scalar_lea.vmem [#allocation2], 88
          %v267 = vld [vmem:[%s266] sm:$0xff]
          %v268 = vmul.f32 %v267, %v179
          %v269 = vadd.f32 %v265, %v268
          %s270 = scalar_lea.vmem [#allocation2], 160
          %v271 = vld [vmem:[%s270] sm:$0xff]
          %v272 = vmul.f32 %v271, %v187
          %v273 = vadd.f32 %v269, %v272
          %s274 = scalar_lea.vmem [#allocation2], 232
          %v275 = vld [vmem:[%s274] sm:$0xff]
          %v276 = vmul.f32 %v275, %v195
          %v277 = vadd.f32 %v273, %v276
          %s278 = scalar_lea.vmem [#allocation2], 304
          %v279 = vld [vmem:[%s278] sm:$0xff]
          %v280 = vmul.f32 %v279, %v203
          %v281 = vadd.f32 %v277, %v280
          %v282 = vmul.f32 %v281, 0.1
          %v283 = vmax.f32 %v281, %v282
          %s284 = scalar_lea.vmem [#allocation2], 384
          %v285 = vld [vmem:[%s284] sm:$0xff]
          %s286 = scalar_lea.vmem [#allocation2], 96
          %v287 = vld [vmem:[%s286] sm:$0xff]
          %v288 = vmul.f32 %v287, %v179
          %v289 = vadd.f32 %v285, %v288
          %s290 = scalar_lea.vmem [#allocation2], 168
          %v291 = vld [vmem:[%s290] sm:$0xff]
          %v292 = vmul.f32 %v291, %v187
          %v293 = vadd.f32 %v289, %v292
          %s294 = scalar_lea.vmem [#allocation2], 240
          %v295 = vld [vmem:[%s294] sm:$0xff]
          %v296 = vmul.f32 %v295, %v195
          %v297 = vadd.f32 %v293, %v296
          %s298 = scalar_lea.vmem [#allocation2], 312
          %v299 = vld [vmem:[%s298] sm:$0xff]
          %v300 = vmul.f32 %v299, %v203
          %v301 = vadd.f32 %v297, %v300
          %v302 = vmul.f32 %v301, 0.1
          %v303 = vmax.f32 %v301, %v302
          %s304 = scalar_lea.vmem [#allocation2], 392
          %v305 = vld [vmem:[%s304] sm:$0xff]
          %s306 = scalar_lea.vmem [#allocation2], 104
          %v307 = vld [vmem:[%s306] sm:$0xff]
          %v308 = vmul.f32 %v307, %v179
          %v309 = vadd.f32 %v305, %v308
          %s310 = scalar_lea.vmem [#allocation2], 176
          %v311 = vld [vmem:[%s310] sm:$0xff]
          %v312 = vmul.f32 %v311, %v187
          %v313 = vadd.f32 %v309, %v312
          %s314 = scalar_lea.vmem [#allocation2], 248
          %v315 = vld [vmem:[%s314] sm:$0xff]
          %v316 = vmul.f32 %v315, %v195
          %v317 = vadd.f32 %v313, %v316
          %s318 = scalar_lea.vmem [#allocation2], 320
          %v319 = vld [vmem:[%s318] sm:$0xff]
          %v320 = vmul.f32 %v319, %v203
          %v321 = vadd.f32 %v317, %v320
          %v322 = vmul.f32 %v321, 0.1
          %v323 = vmax.f32 %v321, %v322
          %s324 = scalar_lea.vmem [#allocation2], 400
          %v325 = vld [vmem:[%s324] sm:$0xff]
          %s326 = scalar_lea.vmem [#allocation2], 112
          %v327 = vld [vmem:[%s326] sm:$0xff]
          %v328 = vmul.f32 %v327, %v179
          %v329 = vadd.f32 %v325, %v328
          %s330 = scalar_lea.vmem [#allocation2], 184
          %v331 = vld [vmem:[%s330] sm:$0xff]
          %v332 = vmul.f32 %v331, %v187
          %v333 = vadd.f32 %v329, %v332
          %s334 = scalar_lea.vmem [#allocation2], 256
          %v335 = vld [vmem:[%s334] sm:$0xff]
          %v336 = vmul.f32 %v335, %v195
          %v337 = vadd.f32 %v333, %v336
          %s338 = scalar_lea.vmem [#allocation2], 328
          %v339 = vld [vmem:[%s338] sm:$0xff]
          %v340 = vmul.f32 %v339, %v203
          %v341 = vadd.f32 %v337, %v340
          %v342 = vmul.f32 %v341, 0.1
          %v343 = vmax.f32 %v341, %v342
          %s344 = scalar_lea.vmem [#allocation2], 408
          %v345 = vld [vmem:[%s344] sm:$0xff]
          %s346 = scalar_lea.vmem [#allocation2], 120
          %v347 = vld [vmem:[%s346] sm:$0xff]
          %v348 = vmul.f32 %v347, %v179
          %v349 = vadd.f32 %v345, %v348
          %s350 = scalar_lea.vmem [#allocation2], 192
          %v351 = vld [vmem:[%s350] sm:$0xff]
          %v352 = vmul.f32 %v351, %v187
          %v353 = vadd.f32 %v349, %v352
          %s354 = scalar_lea.vmem [#allocation2], 264
          %v355 = vld [vmem:[%s354] sm:$0xff]
          %v356 = vmul.f32 %v355, %v195
          %v357 = vadd.f32 %v353, %v356
          %s358 = scalar_lea.vmem [#allocation2], 336
          %v359 = vld [vmem:[%s358] sm:$0xff]
          %v360 = vmul.f32 %v359, %v203
          %v361 = vadd.f32 %v357, %v360
          %v362 = vmul.f32 %v361, 0.1
          %v363 = vmax.f32 %v361, %v362
          %s364 = scalar_lea.vmem [#allocation2], 416
          %v365 = vld [vmem:[%s364] sm:$0xff]
          %s366 = scalar_lea.vmem [#allocation2], 128
          %v367 = vld [vmem:[%s366] sm:$0xff]
          %v368 = vmul.f32 %v367, %v179
          %v369 = vadd.f32 %v365, %v368
          %s370 = scalar_lea.vmem [#allocation2], 200
          %v371 = vld [vmem:[%s370] sm:$0xff]
          %v372 = vmul.f32 %v371, %v187
          %v373 = vadd.f32 %v369, %v372
          %s374 = scalar_lea.vmem [#allocation2], 272
          %v375 = vld [vmem:[%s374] sm:$0xff]
          %v376 = vmul.f32 %v375, %v195
          %v377 = vadd.f32 %v373, %v376
          %s378 = scalar_lea.vmem [#allocation2], 344
          %v379 = vld [vmem:[%s378] sm:$0xff]
          %v380 = vmul.f32 %v379, %v203
          %v381 = vadd.f32 %v377, %v380
          %v382 = vmul.f32 %v381, 0.1
          %v383 = vmax.f32 %v381, %v382
          %s384 = scalar_lea.vmem [#allocation2], 1576
          %v385 = vld [vmem:[%s384] sm:$0xff]
          %s386 = scalar_lea.vmem [#allocation2], 424
          %v387 = vld [vmem:[%s386] sm:$0xff]
          %v388 = vmul.f32 %v387, %v223
          %v389 = vadd.f32 %v385, %v388
          %s390 = scalar_lea.vmem [#allocation2], 552
          %v391 = vld [vmem:[%s390] sm:$0xff]
          %v392 = vmul.f32 %v391, %v243
          %v393 = vadd.f32 %v389, %v392
          %s394 = scalar_lea.vmem [#allocation2], 680
          %v395 = vld [vmem:[%s394] sm:$0xff]
          %v396 = vmul.f32 %v395, %v263
          %v397 = vadd.f32 %v393, %v396
          %s398 = scalar_lea.vmem [#allocation2], 808
          %v399 = vld [vmem:[%s398] sm:$0xff]
          %v400 = vmul.f32 %v399, %v283
          %v401 = vadd.f32 %v397, %v400
          %s402 = scalar_lea.vmem [#allocation2], 936
          %v403 = vld [vmem:[%s402] sm:$0xff]
          %v404 = vmul.f32 %v403, %v303
          %v405 = vadd.f32 %v401, %v404
          %s406 = scalar_lea.vmem [#allocation2], 1064
          %v407 = vld [vmem:[%s406] sm:$0xff]
          %v408 = vmul.f32 %v407, %v323
          %v409 = vadd.f32 %v405, %v408
          %s410 = scalar_lea.vmem [#allocation2], 1192
          %v411 = vld [vmem:[%s410] sm:$0xff]
          %v412 = vmul.f32 %v411, %v343
          %v413 = vadd.f32 %v409, %v412
          %s414 = scalar_lea.vmem [#allocation2], 1320
          %v415 = vld [vmem:[%s414] sm:$0xff]
          %v416 = vmul.f32 %v415, %v363
          %v417 = vadd.f32 %v413, %v416
          %s418 = scalar_lea.vmem [#allocation2], 1448
          %v419 = vld [vmem:[%s418] sm:$0xff]
          %v420 = vmul.f32 %v419, %v383
          %v421 = vadd.f32 %v417, %v420
          %v422 = vmul.f32 %v421, 0.1
          %v423 = vmax.f32 %v421, %v422
          %s424 = scalar_lea.vmem [#allocation2], 1584
          %v425 = vld [vmem:[%s424] sm:$0xff]
          %s426 = scalar_lea.vmem [#allocation2], 432
          %v427 = vld [vmem:[%s426] sm:$0xff]
          %v428 = vmul.f32 %v427, %v223
          %v429 = vadd.f32 %v425, %v428
          %s430 = scalar_lea.vmem [#allocation2], 560
          %v431 = vld [vmem:[%s430] sm:$0xff]
          %v432 = vmul.f32 %v431, %v243
          %v433 = vadd.f32 %v429, %v432
          %s434 = scalar_lea.vmem [#allocation2], 688
          %v435 = vld [vmem:[%s434] sm:$0xff]
          %v436 = vmul.f32 %v435, %v263
          %v437 = vadd.f32 %v433, %v436
          %s438 = scalar_lea.vmem [#allocation2], 816
          %v439 = vld [vmem:[%s438] sm:$0xff]
          %v440 = vmul.f32 %v439, %v283
          %v441 = vadd.f32 %v437, %v440
          %s442 = scalar_lea.vmem [#allocation2], 944
          %v443 = vld [vmem:[%s442] sm:$0xff]
          %v444 = vmul.f32 %v443, %v303
          %v445 = vadd.f32 %v441, %v444
          %s446 = scalar_lea.vmem [#allocation2], 1072
          %v447 = vld [vmem:[%s446] sm:$0xff]
          %v448 = vmul.f32 %v447, %v323
          %v449 = vadd.f32 %v445, %v448
          %s450 = scalar_lea.vmem [#allocation2], 1200
          %v451 = vld [vmem:[%s450] sm:$0xff]
          %v452 = vmul.f32 %v451, %v343
          %v453 = vadd.f32 %v449, %v452
          %s454 = scalar_lea.vmem [#allocation2], 1328
          %v455 = vld [vmem:[%s454] sm:$0xff]
          %v456 = vmul.f32 %v455, %v363
          %v457 = vadd.f32 %v453, %v456
          %s458 = scalar_lea.vmem [#allocation2], 1456
          %v459 = vld [vmem:[%s458] sm:$0xff]
          %v460 = vmul.f32 %v459, %v383
          %v461 = vadd.f32 %v457, %v460
          %v462 = vmul.f32 %v461, 0.1
          %v463 = vmax.f32 %v461, %v462
          %s464 = scalar_lea.vmem [#allocation2], 1592
          %v465 = vld [vmem:[%s464] sm:$0xff]
          %s466 = scalar_lea.vmem [#allocation2], 440
          %v467 = vld [vmem:[%s466] sm:$0xff]
          %v468 = vmul.f32 %v467, %v223
          %v469 = vadd.f32 %v465, %v468
          %s470 = scalar_lea.vmem [#allocation2], 568
          %v471 = vld [vmem:[%s470] sm:$0xff]
          %v472 = vmul.f32 %v471, %v243
          %v473 = vadd.f32 %v469, %v472
          %s474 = scalar_lea.vmem [#allocation2], 696
          %v475 = vld [vmem:[%s474] sm:$0xff]
          %v476 = vmul.f32 %v475, %v263
          %v477 = vadd.f32 %v473, %v476
          %s478 = scalar_lea.vmem [#allocation2], 824
          %v479 = vld [vmem:[%s478] sm:$0xff]
          %v480 = vmul.f32 %v479, %v283
          %v481 = vadd.f32 %v477, %v480
          %s482 = scalar_lea.vmem [#allocation2], 952
          %v483 = vld [vmem:[%s482] sm:$0xff]
          %v484 = vmul.f32 %v483, %v303
          %v485 = vadd.f32 %v481, %v484
          %s486 = scalar_lea.vmem [#allocation2], 1080
          %v487 = vld [vmem:[%s486] sm:$0xff]
          %v488 = vmul.f32 %v487, %v323
          %v489 = vadd.f32 %v485, %v488
          %s490 = scalar_lea.vmem [#allocation2], 1208
          %v491 = vld [vmem:[%s490] sm:$0xff]
          %v492 = vmul.f32 %v491, %v343
          %v493 = vadd.f32 %v489, %v492
          %s494 = scalar_lea.vmem [#allocation2], 1336
          %v495 = vld [vmem:[%s494] sm:$0xff]
          %v496 = vmul.f32 %v495, %v363
          %v497 = vadd.f32 %v493, %v496
          %s498 = scalar_lea.vmem [#allocation2], 1464
          %v499 = vld [vmem:[%s498] sm:$0xff]
          %v500 = vmul.f32 %v499, %v383
          %v501 = vadd.f32 %v497, %v500
          %v502 = vmul.f32 %v501, 0.1
          %v503 = vmax.f32 %v501, %v502
          %s504 = scalar_lea.vmem [#allocation2], 1600
          %v505 = vld [vmem:[%s504] sm:$0xff]
          %s506 = scalar_lea.vmem [#allocation2], 448
          %v507 = vld [vmem:[%s506] sm:$0xff]
          %v508 = vmul.f32 %v507, %v223
          %v509 = vadd.f32 %v505, %v508
          %s510 = scalar_lea.vmem [#allocation2], 576
          %v511 = vld [vmem:[%s510] sm:$0xff]
          %v512 = vmul.f32 %v511, %v243
          %v513 = vadd.f32 %v509, %v512
          %s514 = scalar_lea.vmem [#allocation2], 704
          %v515 = vld [vmem:[%s514] sm:$0xff]
          %v516 = vmul.f32 %v515, %v263
          %v517 = vadd.f32 %v513, %v516
          %s518 = scalar_lea.vmem [#allocation2], 832
          %v519 = vld [vmem:[%s518] sm:$0xff]
          %v520 = vmul.f32 %v519, %v283
          %v521 = vadd.f32 %v517, %v520
          %s522 = scalar_lea.vmem [#allocation2], 960
          %v523 = vld [vmem:[%s522] sm:$0xff]
          %v524 = vmul.f32 %v523, %v303
          %v525 = vadd.f32 %v521, %v524
          %s526 = scalar_lea.vmem [#allocation2], 1088
          %v527 = vld [vmem:[%s526] sm:$0xff]
          %v528 = vmul.f32 %v527, %v323
          %v529 = vadd.f32 %v525, %v528
          %s530 = scalar_lea.vmem [#allocation2], 1216
          %v531 = vld [vmem:[%s530] sm:$0xff]
          %v532 = vmul.f32 %v531, %v343
          %v533 = vadd.f32 %v529, %v532
          %s534 = scalar_lea.vmem [#allocation2], 1344
          %v535 = vld [vmem:[%s534] sm:$0xff]
          %v536 = vmul.f32 %v535, %v363
          %v537 = vadd.f32 %v533, %v536
          %s538 = scalar_lea.vmem [#allocation2], 1472
          %v539 = vld [vmem:[%s538] sm:$0xff]
          %v540 = vmul.f32 %v539, %v383
          %v541 = vadd.f32 %v537, %v540
          %v542 = vmul.f32 %v541, 0.1
          %v543 = vmax.f32 %v541, %v542
          %s544 = scalar_lea.vmem [#allocation2], 1608
          %v545 = vld [vmem:[%s544] sm:$0xff]
          %s546 = scalar_lea.vmem [#allocation2], 456
          %v547 = vld [vmem:[%s546] sm:$0xff]
          %v548 = vmul.f32 %v547, %v223
          %v549 = vadd.f32 %v545, %v548
          %s550 = scalar_lea.vmem [#allocation2], 584
          %v551 = vld [vmem:[%s550] sm:$0xff]
          %v552 = vmul.f32 %v551, %v243
          %v553 = vadd.f32 %v549, %v552
          %s554 = scalar_lea.vmem [#allocation2], 712
          %v555 = vld [vmem:[%s554] sm:$0xff]
          %v556 = vmul.f32 %v555, %v263
          %v557 = vadd.f32 %v553, %v556
          %s558 = scalar_lea.vmem [#allocation2], 840
          %v559 = vld [vmem:[%s558] sm:$0xff]
          %v560 = vmul.f32 %v559, %v283
          %v561 = vadd.f32 %v557, %v560
          %s562 = scalar_lea.vmem [#allocation2], 968
          %v563 = vld [vmem:[%s562] sm:$0xff]
          %v564 = vmul.f32 %v563, %v303
          %v565 = vadd.f32 %v561, %v564
          %s566 = scalar_lea.vmem [#allocation2], 1096
          %v567 = vld [vmem:[%s566] sm:$0xff]
          %v568 = vmul.f32 %v567, %v323
          %v569 = vadd.f32 %v565, %v568
          %s570 = scalar_lea.vmem [#allocation2], 1224
          %v571 = vld [vmem:[%s570] sm:$0xff]
          %v572 = vmul.f32 %v571, %v343
          %v573 = vadd.f32 %v569, %v572
          %s574 = scalar_lea.vmem [#allocation2], 1352
          %v575 = vld [vmem:[%s574] sm:$0xff]
          %v576 = vmul.f32 %v575, %v363
          %v577 = vadd.f32 %v573, %v576
          %s578 = scalar_lea.vmem [#allocation2], 1480
          %v579 = vld [vmem:[%s578] sm:$0xff]
          %v580 = vmul.f32 %v579, %v383
          %v581 = vadd.f32 %v577, %v580
          %v582 = vmul.f32 %v581, 0.1
          %v583 = vmax.f32 %v581, %v582
          %s584 = scalar_lea.vmem [#allocation2], 1616
          %v585 = vld [vmem:[%s584] sm:$0xff]
          %s586 = scalar_lea.vmem [#allocation2], 464
          %v587 = vld [vmem:[%s586] sm:$0xff]
          %v588 = vmul.f32 %v587, %v223
          %v589 = vadd.f32 %v585, %v588
          %s590 = scalar_lea.vmem [#allocation2], 592
          %v591 = vld [vmem:[%s590] sm:$0xff]
          %v592 = vmul.f32 %v591, %v243
          %v593 = vadd.f32 %v589, %v592
          %s594 = scalar_lea.vmem [#allocation2], 720
          %v595 = vld [vmem:[%s594] sm:$0xff]
          %v596 = vmul.f32 %v595, %v263
          %v597 = vadd.f32 %v593, %v596
          %s598 = scalar_lea.vmem [#allocation2], 848
          %v599 = vld [vmem:[%s598] sm:$0xff]
          %v600 = vmul.f32 %v599, %v283
          %v601 = vadd.f32 %v597, %v600
          %s602 = scalar_lea.vmem [#allocation2], 976
          %v603 = vld [vmem:[%s602] sm:$0xff]
          %v604 = vmul.f32 %v603, %v303
          %v605 = vadd.f32 %v601, %v604
          %s606 = scalar_lea.vmem [#allocation2], 1104
          %v607 = vld [vmem:[%s606] sm:$0xff]
          %v608 = vmul.f32 %v607, %v323
          %v609 = vadd.f32 %v605, %v608
          %s610 = scalar_lea.vmem [#allocation2], 1232
          %v611 = vld [vmem:[%s610] sm:$0xff]
          %v612 = vmul.f32 %v611, %v343
          %v613 = vadd.f32 %v609, %v612
          %s614 = scalar_lea.vmem [#allocation2], 1360
          %v615 = vld [vmem:[%s614] sm:$0xff]
          %v616 = vmul.f32 %v615, %v363
          %v617 = vadd.f32 %v613, %v616
          %s618 = scalar_lea.vmem [#allocation2], 1488
          %v619 = vld [vmem:[%s618] sm:$0xff]
          %v620 = vmul.f32 %v619, %v383
          %v621 = vadd.f32 %v617, %v620
          %v622 = vmul.f32 %v621, 0.1
          %v623 = vmax.f32 %v621, %v622
          %s624 = scalar_lea.vmem [#allocation2], 1624
          %v625 = vld [vmem:[%s624] sm:$0xff]
          %s626 = scalar_lea.vmem [#allocation2], 472
          %v627 = vld [vmem:[%s626] sm:$0xff]
          %v628 = vmul.f32 %v627, %v223
          %v629 = vadd.f32 %v625, %v628
          %s630 = scalar_lea.vmem [#allocation2], 600
          %v631 = vld [vmem:[%s630] sm:$0xff]
          %v632 = vmul.f32 %v631, %v243
          %v633 = vadd.f32 %v629, %v632
          %s634 = scalar_lea.vmem [#allocation2], 728
          %v635 = vld [vmem:[%s634] sm:$0xff]
          %v636 = vmul.f32 %v635, %v263
          %v637 = vadd.f32 %v633, %v636
          %s638 = scalar_lea.vmem [#allocation2], 856
          %v639 = vld [vmem:[%s638] sm:$0xff]
          %v640 = vmul.f32 %v639, %v283
          %v641 = vadd.f32 %v637, %v640
          %s642 = scalar_lea.vmem [#allocation2], 984
          %v643 = vld [vmem:[%s642] sm:$0xff]
          %v644 = vmul.f32 %v643, %v303
          %v645 = vadd.f32 %v641, %v644
          %s646 = scalar_lea.vmem [#allocation2], 1112
          %v647 = vld [vmem:[%s646] sm:$0xff]
          %v648 = vmul.f32 %v647, %v323
          %v649 = vadd.f32 %v645, %v648
          %s650 = scalar_lea.vmem [#allocation2], 1240
          %v651 = vld [vmem:[%s650] sm:$0xff]
          %v652 = vmul.f32 %v651, %v343
          %v653 = vadd.f32 %v649, %v652
          %s654 = scalar_lea.vmem [#allocation2], 1368
          %v655 = vld [vmem:[%s654] sm:$0xff]
          %v656 = vmul.f32 %v655, %v363
          %v657 = vadd.f32 %v653, %v656
          %s658 = scalar_lea.vmem [#allocation2], 1496
          %v659 = vld [vmem:[%s658] sm:$0xff]
          %v660 = vmul.f32 %v659, %v383
          %v661 = vadd.f32 %v657, %v660
          %v662 = vmul.f32 %v661, 0.1
          %v663 = vmax.f32 %v661, %v662
          %s664 = scalar_lea.vmem [#allocation2], 1632
          %v665 = vld [vmem:[%s664] sm:$0xff]
          %s666 = scalar_lea.vmem [#allocation2], 480
          %v667 = vld [vmem:[%s666] sm:$0xff]
          %v668 = vmul.f32 %v667, %v223
          %v669 = vadd.f32 %v665, %v668
          %s670 = scalar_lea.vmem [#allocation2], 608
          %v671 = vld [vmem:[%s670] sm:$0xff]
          %v672 = vmul.f32 %v671, %v243
          %v673 = vadd.f32 %v669, %v672
          %s674 = scalar_lea.vmem [#allocation2], 736
          %v675 = vld [vmem:[%s674] sm:$0xff]
          %v676 = vmul.f32 %v675, %v263
          %v677 = vadd.f32 %v673, %v676
          %s678 = scalar_lea.vmem [#allocation2], 864
          %v679 = vld [vmem:[%s678] sm:$0xff]
          %v680 = vmul.f32 %v679, %v283
          %v681 = vadd.f32 %v677, %v680
          %s682 = scalar_lea.vmem [#allocation2], 992
          %v683 = vld [vmem:[%s682] sm:$0xff]
          %v684 = vmul.f32 %v683, %v303
          %v685 = vadd.f32 %v681, %v684
          %s686 = scalar_lea.vmem [#allocation2], 1120
          %v687 = vld [vmem:[%s686] sm:$0xff]
          %v688 = vmul.f32 %v687, %v323
          %v689 = vadd.f32 %v685, %v688
          %s690 = scalar_lea.vmem [#allocation2], 1248
          %v691 = vld [vmem:[%s690] sm:$0xff]
          %v692 = vmul.f32 %v691, %v343
          %v693 = vadd.f32 %v689, %v692
          %s694 = scalar_lea.vmem [#allocation2], 1376
          %v695 = vld [vmem:[%s694] sm:$0xff]
          %v696 = vmul.f32 %v695, %v363
          %v697 = vadd.f32 %v693, %v696
          %s698 = scalar_lea.vmem [#allocation2], 1504
          %v699 = vld [vmem:[%s698] sm:$0xff]
          %v700 = vmul.f32 %v699, %v383
          %v701 = vadd.f32 %v697, %v700
          %v702 = vmul.f32 %v701, 0.1
          %v703 = vmax.f32 %v701, %v702
          %s704 = scalar_lea.vmem [#allocation2], 1640
          %v705 = vld [vmem:[%s704] sm:$0xff]
          %s706 = scalar_lea.vmem [#allocation2], 488
          %v707 = vld [vmem:[%s706] sm:$0xff]
          %v708 = vmul.f32 %v707, %v223
          %v709 = vadd.f32 %v705, %v708
          %s710 = scalar_lea.vmem [#allocation2], 616
          %v711 = vld [vmem:[%s710] sm:$0xff]
          %v712 = vmul.f32 %v711, %v243
          %v713 = vadd.f32 %v709, %v712
          %s714 = scalar_lea.vmem [#allocation2], 744
          %v715 = vld [vmem:[%s714] sm:$0xff]
          %v716 = vmul.f32 %v715, %v263
          %v717 = vadd.f32 %v713, %v716
          %s718 = scalar_lea.vmem [#allocation2], 872
          %v719 = vld [vmem:[%s718] sm:$0xff]
          %v720 = vmul.f32 %v719, %v283
          %v721 = vadd.f32 %v717, %v720
          %s722 = scalar_lea.vmem [#allocation2], 1000
          %v723 = vld [vmem:[%s722] sm:$0xff]
          %v724 = vmul.f32 %v723, %v303
          %v725 = vadd.f32 %v721, %v724
          %s726 = scalar_lea.vmem [#allocation2], 1128
          %v727 = vld [vmem:[%s726] sm:$0xff]
          %v728 = vmul.f32 %v727, %v323
          %v729 = vadd.f32 %v725, %v728
          %s730 = scalar_lea.vmem [#allocation2], 1256
          %v731 = vld [vmem:[%s730] sm:$0xff]
          %v732 = vmul.f32 %v731, %v343
          %v733 = vadd.f32 %v729, %v732
          %s734 = scalar_lea.vmem [#allocation2], 1384
          %v735 = vld [vmem:[%s734] sm:$0xff]
          %v736 = vmul.f32 %v735, %v363
          %v737 = vadd.f32 %v733, %v736
          %s738 = scalar_lea.vmem [#allocation2], 1512
          %v739 = vld [vmem:[%s738] sm:$0xff]
          %v740 = vmul.f32 %v739, %v383
          %v741 = vadd.f32 %v737, %v740
          %v742 = vmul.f32 %v741, 0.1
          %v743 = vmax.f32 %v741, %v742
          %s744 = scalar_lea.vmem [#allocation2], 1648
          %v745 = vld [vmem:[%s744] sm:$0xff]
          %s746 = scalar_lea.vmem [#allocation2], 496
          %v747 = vld [vmem:[%s746] sm:$0xff]
          %v748 = vmul.f32 %v747, %v223
          %v749 = vadd.f32 %v745, %v748
          %s750 = scalar_lea.vmem [#allocation2], 624
          %v751 = vld [vmem:[%s750] sm:$0xff]
          %v752 = vmul.f32 %v751, %v243
          %v753 = vadd.f32 %v749, %v752
          %s754 = scalar_lea.vmem [#allocation2], 752
          %v755 = vld [vmem:[%s754] sm:$0xff]
          %v756 = vmul.f32 %v755, %v263
          %v757 = vadd.f32 %v753, %v756
          %s758 = scalar_lea.vmem [#allocation2], 880
          %v759 = vld [vmem:[%s758] sm:$0xff]
          %v760 = vmul.f32 %v759, %v283
          %v761 = vadd.f32 %v757, %v760
          %s762 = scalar_lea.vmem [#allocation2], 1008
          %v763 = vld [vmem:[%s762] sm:$0xff]
          %v764 = vmul.f32 %v763, %v303
          %v765 = vadd.f32 %v761, %v764
          %s766 = scalar_lea.vmem [#allocation2], 1136
          %v767 = vld [vmem:[%s766] sm:$0xff]
          %v768 = vmul.f32 %v767, %v323
          %v769 = vadd.f32 %v765, %v768
          %s770 = scalar_lea.vmem [#allocation2], 1264
          %v771 = vld [vmem:[%s770] sm:$0xff]
          %v772 = vmul.f32 %v771, %v343
          %v773 = vadd.f32 %v769, %v772
          %s774 = scalar_lea.vmem [#allocation2], 1392
          %v775 = vld [vmem:[%s774] sm:$0xff]
          %v776 = vmul.f32 %v775, %v363
          %v777 = vadd.f32 %v773, %v776
          %s778 = scalar_lea.vmem [#allocation2], 1520
          %v779 = vld [vmem:[%s778] sm:$0xff]
          %v780 = vmul.f32 %v779, %v383
          %v781 = vadd.f32 %v777, %v780
          %v782 = vmul.f32 %v781, 0.1
          %v783 = vmax.f32 %v781, %v782
          %s784 = scalar_lea.vmem [#allocation2], 1656
          %v785 = vld [vmem:[%s784] sm:$0xff]
          %s786 = scalar_lea.vmem [#allocation2], 504
          %v787 = vld [vmem:[%s786] sm:$0xff]
          %v788 = vmul.f32 %v787, %v223
          %v789 = vadd.f32 %v785, %v788
          %s790 = scalar_lea.vmem [#allocation2], 632
          %v791 = vld [vmem:[%s790] sm:$0xff]
          %v792 = vmul.f32 %v791, %v243
          %v793 = vadd.f32 %v789, %v792
          %s794 = scalar_lea.vmem [#allocation2], 760
          %v795 = vld [vmem:[%s794] sm:$0xff]
          %v796 = vmul.f32 %v795, %v263
          %v797 = vadd.f32 %v793, %v796
          %s798 = scalar_lea.vmem [#allocation2], 888
          %v799 = vld [vmem:[%s798] sm:$0xff]
          %v800 = vmul.f32 %v799, %v283
          %v801 = vadd.f32 %v797, %v800
          %s802 = scalar_lea.vmem [#allocation2], 1016
          %v803 = vld [vmem:[%s802] sm:$0xff]
          %v804 = vmul.f32 %v803, %v303
          %v805 = vadd.f32 %v801, %v804
          %s806 = scalar_lea.vmem [#allocation2], 1144
          %v807 = vld [vmem:[%s806] sm:$0xff]
          %v808 = vmul.f32 %v807, %v323
          %v809 = vadd.f32 %v805, %v808
          %s810 = scalar_lea.vmem [#allocation2], 1272
          %v811 = vld [vmem:[%s810] sm:$0xff]
          %v812 = vmul.f32 %v811, %v343
          %v813 = vadd.f32 %v809, %v812
          %s814 = scalar_lea.vmem [#allocation2], 1400
          %v815 = vld [vmem:[%s814] sm:$0xff]
          %v816 = vmul.f32 %v815, %v363
          %v817 = vadd.f32 %v813, %v816
          %s818 = scalar_lea.vmem [#allocation2], 1528
          %v819 = vld [vmem:[%s818] sm:$0xff]
          %v820 = vmul.f32 %v819, %v383
          %v821 = vadd.f32 %v817, %v820
          %v822 = vmul.f32 %v821, 0.1
          %v823 = vmax.f32 %v821, %v822
          %s824 = scalar_lea.vmem [#allocation2], 1664
          %v825 = vld [vmem:[%s824] sm:$0xff]
          %s826 = scalar_lea.vmem [#allocation2], 512
          %v827 = vld [vmem:[%s826] sm:$0xff]
          %v828 = vmul.f32 %v827, %v223
          %v829 = vadd.f32 %v825, %v828
          %s830 = scalar_lea.vmem [#allocation2], 640
          %v831 = vld [vmem:[%s830] sm:$0xff]
          %v832 = vmul.f32 %v831, %v243
          %v833 = vadd.f32 %v829, %v832
          %s834 = scalar_lea.vmem [#allocation2], 768
          %v835 = vld [vmem:[%s834] sm:$0xff]
          %v836 = vmul.f32 %v835, %v263
          %v837 = vadd.f32 %v833, %v836
          %s838 = scalar_lea.vmem [#allocation2], 896
          %v839 = vld [vmem:[%s838] sm:$0xff]
          %v840 = vmul.f32 %v839, %v283
          %v841 = vadd.f32 %v837, %v840
          %s842 = scalar_lea.vmem [#allocation2], 1024
          %v843 = vld [vmem:[%s842] sm:$0xff]
          %v844 = vmul.f32 %v843, %v303
          %v845 = vadd.f32 %v841, %v844
          %s846 = scalar_lea.vmem [#allocation2], 1152
          %v847 = vld [vmem:[%s846] sm:$0xff]
          %v848 = vmul.f32 %v847, %v323
          %v849 = vadd.f32 %v845, %v848
          %s850 = scalar_lea.vmem [#allocation2], 1280
          %v851 = vld [vmem:[%s850] sm:$0xff]
          %v852 = vmul.f32 %v851, %v343
          %v853 = vadd.f32 %v849, %v852
          %s854 = scalar_lea.vmem [#allocation2], 1408
          %v855 = vld [vmem:[%s854] sm:$0xff]
          %v856 = vmul.f32 %v855, %v363
          %v857 = vadd.f32 %v853, %v856
          %s858 = scalar_lea.vmem [#allocation2], 1536
          %v859 = vld [vmem:[%s858] sm:$0xff]
          %v860 = vmul.f32 %v859, %v383
          %v861 = vadd.f32 %v857, %v860
          %v862 = vmul.f32 %v861, 0.1
          %v863 = vmax.f32 %v861, %v862
          %s864 = scalar_lea.vmem [#allocation2], 1672
          %v865 = vld [vmem:[%s864] sm:$0xff]
          %s866 = scalar_lea.vmem [#allocation2], 520
          %v867 = vld [vmem:[%s866] sm:$0xff]
          %v868 = vmul.f32 %v867, %v223
          %v869 = vadd.f32 %v865, %v868
          %s870 = scalar_lea.vmem [#allocation2], 648
          %v871 = vld [vmem:[%s870] sm:$0xff]
          %v872 = vmul.f32 %v871, %v243
          %v873 = vadd.f32 %v869, %v872
          %s874 = scalar_lea.vmem [#allocation2], 776
          %v875 = vld [vmem:[%s874] sm:$0xff]
          %v876 = vmul.f32 %v875, %v263
          %v877 = vadd.f32 %v873, %v876
          %s878 = scalar_lea.vmem [#allocation2], 904
          %v879 = vld [vmem:[%s878] sm:$0xff]
          %v880 = vmul.f32 %v879, %v283
          %v881 = vadd.f32 %v877, %v880
          %s882 = scalar_lea.vmem [#allocation2], 1032
          %v883 = vld [vmem:[%s882] sm:$0xff]
          %v884 = vmul.f32 %v883, %v303
          %v885 = vadd.f32 %v881, %v884
          %s886 = scalar_lea.vmem [#allocation2], 1160
          %v887 = vld [vmem:[%s886] sm:$0xff]
          %v888 = vmul.f32 %v887, %v323
          %v889 = vadd.f32 %v885, %v888
          %s890 = scalar_lea.vmem [#allocation2], 1288
          %v891 = vld [vmem:[%s890] sm:$0xff]
          %v892 = vmul.f32 %v891, %v343
          %v893 = vadd.f32 %v889, %v892
          %s894 = scalar_lea.vmem [#allocation2], 1416
          %v895 = vld [vmem:[%s894] sm:$0xff]
          %v896 = vmul.f32 %v895, %v363
          %v897 = vadd.f32 %v893, %v896
          %s898 = scalar_lea.vmem [#allocation2], 1544
          %v899 = vld [vmem:[%s898] sm:$0xff]
          %v900 = vmul.f32 %v899, %v383
          %v901 = vadd.f32 %v897, %v900
          %v902 = vmul.f32 %v901, 0.1
          %v903 = vmax.f32 %v901, %v902
          %s904 = scalar_lea.vmem [#allocation2], 1680
          %v905 = vld [vmem:[%s904] sm:$0xff]
          %s906 = scalar_lea.vmem [#allocation2], 528
          %v907 = vld [vmem:[%s906] sm:$0xff]
          %v908 = vmul.f32 %v907, %v223
          %v909 = vadd.f32 %v905, %v908
          %s910 = scalar_lea.vmem [#allocation2], 656
          %v911 = vld [vmem:[%s910] sm:$0xff]
          %v912 = vmul.f32 %v911, %v243
          %v913 = vadd.f32 %v909, %v912
          %s914 = scalar_lea.vmem [#allocation2], 784
          %v915 = vld [vmem:[%s914] sm:$0xff]
          %v916 = vmul.f32 %v915, %v263
          %v917 = vadd.f32 %v913, %v916
          %s918 = scalar_lea.vmem [#allocation2], 912
          %v919 = vld [vmem:[%s918] sm:$0xff]
          %v920 = vmul.f32 %v919, %v283
          %v921 = vadd.f32 %v917, %v920
          %s922 = scalar_lea.vmem [#allocation2], 1040
          %v923 = vld [vmem:[%s922] sm:$0xff]
          %v924 = vmul.f32 %v923, %v303
          %v925 = vadd.f32 %v921, %v924
          %s926 = scalar_lea.vmem [#allocation2], 1168
          %v927 = vld [vmem:[%s926] sm:$0xff]
          %v928 = vmul.f32 %v927, %v323
          %v929 = vadd.f32 %v925, %v928
          %s930 = scalar_lea.vmem [#allocation2], 1296
          %v931 = vld [vmem:[%s930] sm:$0xff]
          %v932 = vmul.f32 %v931, %v343
          %v933 = vadd.f32 %v929, %v932
          %s934 = scalar_lea.vmem [#allocation2], 1424
          %v935 = vld [vmem:[%s934] sm:$0xff]
          %v936 = vmul.f32 %v935, %v363
          %v937 = vadd.f32 %v933, %v936
          %s938 = scalar_lea.vmem [#allocation2], 1552
          %v939 = vld [vmem:[%s938] sm:$0xff]
          %v940 = vmul.f32 %v939, %v383
          %v941 = vadd.f32 %v937, %v940
          %v942 = vmul.f32 %v941, 0.1
          %v943 = vmax.f32 %v941, %v942
          %s944 = scalar_lea.vmem [#allocation2], 1688
          %v945 = vld [vmem:[%s944] sm:$0xff]
          %s946 = scalar_lea.vmem [#allocation2], 536
          %v947 = vld [vmem:[%s946] sm:$0xff]
          %v948 = vmul.f32 %v947, %v223
          %v949 = vadd.f32 %v945, %v948
          %s950 = scalar_lea.vmem [#allocation2], 664
          %v951 = vld [vmem:[%s950] sm:$0xff]
          %v952 = vmul.f32 %v951, %v243
          %v953 = vadd.f32 %v949, %v952
          %s954 = scalar_lea.vmem [#allocation2], 792
          %v955 = vld [vmem:[%s954] sm:$0xff]
          %v956 = vmul.f32 %v955, %v263
          %v957 = vadd.f32 %v953, %v956
          %s958 = scalar_lea.vmem [#allocation2], 920
          %v959 = vld [vmem:[%s958] sm:$0xff]
          %v960 = vmul.f32 %v959, %v283
          %v961 = vadd.f32 %v957, %v960
          %s962 = scalar_lea.vmem [#allocation2], 1048
          %v963 = vld [vmem:[%s962] sm:$0xff]
          %v964 = vmul.f32 %v963, %v303
          %v965 = vadd.f32 %v961, %v964
          %s966 = scalar_lea.vmem [#allocation2], 1176
          %v967 = vld [vmem:[%s966] sm:$0xff]
          %v968 = vmul.f32 %v967, %v323
          %v969 = vadd.f32 %v965, %v968
          %s970 = scalar_lea.vmem [#allocation2], 1304
          %v971 = vld [vmem:[%s970] sm:$0xff]
          %v972 = vmul.f32 %v971, %v343
          %v973 = vadd.f32 %v969, %v972
          %s974 = scalar_lea.vmem [#allocation2], 1432
          %v975 = vld [vmem:[%s974] sm:$0xff]
          %v976 = vmul.f32 %v975, %v363
          %v977 = vadd.f32 %v973, %v976
          %s978 = scalar_lea.vmem [#allocation2], 1560
          %v979 = vld [vmem:[%s978] sm:$0xff]
          %v980 = vmul.f32 %v979, %v383
          %v981 = vadd.f32 %v977, %v980
          %v982 = vmul.f32 %v981, 0.1
          %v983 = vmax.f32 %v981, %v982
          %s984 = scalar_lea.vmem [#allocation2], 1696
          %v985 = vld [vmem:[%s984] sm:$0xff]
          %s986 = scalar_lea.vmem [#allocation2], 544
          %v987 = vld [vmem:[%s986] sm:$0xff]
          %v988 = vmul.f32 %v987, %v223
          %v989 = vadd.f32 %v985, %v988
          %s990 = scalar_lea.vmem [#allocation2], 672
          %v991 = vld [vmem:[%s990] sm:$0xff]
          %v992 = vmul.f32 %v991, %v243
          %v993 = vadd.f32 %v989, %v992
          %s994 = scalar_lea.vmem [#allocation2], 800
          %v995 = vld [vmem:[%s994] sm:$0xff]
          %v996 = vmul.f32 %v995, %v263
          %v997 = vadd.f32 %v993, %v996
          %s998 = scalar_lea.vmem [#allocation2], 928
          %v999 = vld [vmem:[%s998] sm:$0xff]
          %v1000 = vmul.f32 %v999, %v283
          %v1001 = vadd.f32 %v997, %v1000
          %s1002 = scalar_lea.vmem [#allocation2], 1056
          %v1003 = vld [vmem:[%s1002] sm:$0xff]
          %v1004 = vmul.f32 %v1003, %v303
          %v1005 = vadd.f32 %v1001, %v1004
          %s1006 = scalar_lea.vmem [#allocation2], 1184
          %v1007 = vld [vmem:[%s1006] sm:$0xff]
          %v1008 = vmul.f32 %v1007, %v323
          %v1009 = vadd.f32 %v1005, %v1008
          %s1010 = scalar_lea.vmem [#allocation2], 1312
          %v1011 = vld [vmem:[%s1010] sm:$0xff]
          %v1012 = vmul.f32 %v1011, %v343
          %v1013 = vadd.f32 %v1009, %v1012
          %s1014 = scalar_lea.vmem [#allocation2], 1440
          %v1015 = vld [vmem:[%s1014] sm:$0xff]
          %v1016 = vmul.f32 %v1015, %v363
          %v1017 = vadd.f32 %v1013, %v1016
          %s1018 = scalar_lea.vmem [#allocation2], 1568
          %v1019 = vld [vmem:[%s1018] sm:$0xff]
          %v1020 = vmul.f32 %v1019, %v383
          %v1021 = vadd.f32 %v1017, %v1020
          %v1022 = vmul.f32 %v1021, 0.1
          %v1023 = vmax.f32 %v1021, %v1022
          %s1024 = scalar_lea.vmem [#allocation2], 2856
          %v1025 = vld [vmem:[%s1024] sm:$0xff]
          %s1026 = scalar_lea.vmem [#allocation2], 1704
          %v1027 = vld [vmem:[%s1026] sm:$0xff]
          %v1028 = vmul.f32 %v1027, %v423
          %v1029 = vadd.f32 %v1025, %v1028
          %s1030 = scalar_lea.vmem [#allocation2], 1776
          %v1031 = vld [vmem:[%s1030] sm:$0xff]
          %v1032 = vmul.f32 %v1031, %v463
          %v1033 = vadd.f32 %v1029, %v1032
          %s1034 = scalar_lea.vmem [#allocation2], 1848
          %v1035 = vld [vmem:[%s1034] sm:$0xff]
          %v1036 = vmul.f32 %v1035, %v503
          %v1037 = vadd.f32 %v1033, %v1036
          %s1038 = scalar_lea.vmem [#allocation2], 1920
          %v1039 = vld [vmem:[%s1038] sm:$0xff]
          %v1040 = vmul.f32 %v1039, %v543
          %v1041 = vadd.f32 %v1037, %v1040
          %s1042 = scalar_lea.vmem [#allocation2], 1992
          %v1043 = vld [vmem:[%s1042] sm:$0xff]
          %v1044 = vmul.f32 %v1043, %v583
          %v1045 = vadd.f32 %v1041, %v1044
          %s1046 = scalar_lea.vmem [#allocation2], 2064
          %v1047 = vld [vmem:[%s1046] sm:$0xff]
          %v1048 = vmul.f32 %v1047, %v623
          %v1049 = vadd.f32 %v1045, %v1048
          %s1050 = scalar_lea.vmem [#allocation2], 2136
          %v1051 = vld [vmem:[%s1050] sm:$0xff]
          %v1052 = vmul.f32 %v1051, %v663
          %v1053 = vadd.f32 %v1049, %v1052
          %s1054 = scalar_lea.vmem [#allocation2], 2208
          %v1055 = vld [vmem:[%s1054] sm:$0xff]
          %v1056 = vmul.f32 %v1055, %v703
          %v1057 = vadd.f32 %v1053, %v1056
          %s1058 = scalar_lea.vmem [#allocation2], 2280
          %v1059 = vld [vmem:[%s1058] sm:$0xff]
          %v1060 = vmul.f32 %v1059, %v743
          %v1061 = vadd.f32 %v1057, %v1060
          %s1062 = scalar_lea.vmem [#allocation2], 2352
          %v1063 = vld [vmem:[%s1062] sm:$0xff]
          %v1064 = vmul.f32 %v1063, %v783
          %v1065 = vadd.f32 %v1061, %v1064
          %s1066 = scalar_lea.vmem [#allocation2], 2424
          %v1067 = vld [vmem:[%s1066] sm:$0xff]
          %v1068 = vmul.f32 %v1067, %v823
          %v1069 = vadd.f32 %v1065, %v1068
          %s1070 = scalar_lea.vmem [#allocation2], 2496
          %v1071 = vld [vmem:[%s1070] sm:$0xff]
          %v1072 = vmul.f32 %v1071, %v863
          %v1073 = vadd.f32 %v1069, %v1072
          %s1074 = scalar_lea.vmem [#allocation2], 2568
          %v1075 = vld [vmem:[%s1074] sm:$0xff]
          %v1076 = vmul.f32 %v1075, %v903
          %v1077 = vadd.f32 %v1073, %v1076
          %s1078 = scalar_lea.vmem [#allocation2], 2640
          %v1079 = vld [vmem:[%s1078] sm:$0xff]
          %v1080 = vmul.f32 %v1079, %v943
          %v1081 = vadd.f32 %v1077, %v1080
          %s1082 = scalar_lea.vmem [#allocation2], 2712
          %v1083 = vld [vmem:[%s1082] sm:$0xff]
          %v1084 = vmul.f32 %v1083, %v983
          %v1085 = vadd.f32 %v1081, %v1084
          %s1086 = scalar_lea.vmem [#allocation2], 2784
          %v1087 = vld [vmem:[%s1086] sm:$0xff]
          %v1088 = vmul.f32 %v1087, %v1023
          %v1089 = vadd.f32 %v1085, %v1088
          %v1090 = vmul.f32 %v1089, 0.1
          %v1091 = vmax.f32 %v1089, %v1090
          %s1092 = scalar_lea.vmem [#allocation2], 2864
          %v1093 = vld [vmem:[%s1092] sm:$0xff]
          %s1094 = scalar_lea.vmem [#allocation2], 1712
          %v1095 = vld [vmem:[%s1094] sm:$0xff]
          %v1096 = vmul.f32 %v1095, %v423
          %v1097 = vadd.f32 %v1093, %v1096
          %s1098 = scalar_lea.vmem [#allocation2], 1784
          %v1099 = vld [vmem:[%s1098] sm:$0xff]
          %v1100 = vmul.f32 %v1099, %v463
          %v1101 = vadd.f32 %v1097, %v1100
          %s1102 = scalar_lea.vmem [#allocation2], 1856
          %v1103 = vld [vmem:[%s1102] sm:$0xff]
          %v1104 = vmul.f32 %v1103, %v503
          %v1105 = vadd.f32 %v1101, %v1104
          %s1106 = scalar_lea.vmem [#allocation2], 1928
          %v1107 = vld [vmem:[%s1106] sm:$0xff]
          %v1108 = vmul.f32 %v1107, %v543
          %v1109 = vadd.f32 %v1105, %v1108
          %s1110 = scalar_lea.vmem [#allocation2], 2000
          %v1111 = vld [vmem:[%s1110] sm:$0xff]
          %v1112 = vmul.f32 %v1111, %v583
          %v1113 = vadd.f32 %v1109, %v1112
          %s1114 = scalar_lea.vmem [#allocation2], 2072
          %v1115 = vld [vmem:[%s1114] sm:$0xff]
          %v1116 = vmul.f32 %v1115, %v623
          %v1117 = vadd.f32 %v1113, %v1116
          %s1118 = scalar_lea.vmem [#allocation2], 2144
          %v1119 = vld [vmem:[%s1118] sm:$0xff]
          %v1120 = vmul.f32 %v1119, %v663
          %v1121 = vadd.f32 %v1117, %v1120
          %s1122 = scalar_lea.vmem [#allocation2], 2216
          %v1123 = vld [vmem:[%s1122] sm:$0xff]
          %v1124 = vmul.f32 %v1123, %v703
          %v1125 = vadd.f32 %v1121, %v1124
          %s1126 = scalar_lea.vmem [#allocation2], 2288
          %v1127 = vld [vmem:[%s1126] sm:$0xff]
          %v1128 = vmul.f32 %v1127, %v743
          %v1129 = vadd.f32 %v1125, %v1128
          %s1130 = scalar_lea.vmem [#allocation2], 2360
          %v1131 = vld [vmem:[%s1130] sm:$0xff]
          %v1132 = vmul.f32 %v1131, %v783
          %v1133 = vadd.f32 %v1129, %v1132
          %s1134 = scalar_lea.vmem [#allocation2], 2432
          %v1135 = vld [vmem:[%s1134] sm:$0xff]
          %v1136 = vmul.f32 %v1135, %v823
          %v1137 = vadd.f32 %v1133, %v1136
          %s1138 = scalar_lea.vmem [#allocation2], 2504
          %v1139 = vld [vmem:[%s1138] sm:$0xff]
          %v1140 = vmul.f32 %v1139, %v863
          %v1141 = vadd.f32 %v1137, %v1140
          %s1142 = scalar_lea.vmem [#allocation2], 2576
          %v1143 = vld [vmem:[%s1142] sm:$0xff]
          %v1144 = vmul.f32 %v1143, %v903
          %v1145 = vadd.f32 %v1141, %v1144
          %s1146 = scalar_lea.vmem [#allocation2], 2648
          %v1147 = vld [vmem:[%s1146] sm:$0xff]
          %v1148 = vmul.f32 %v1147, %v943
          %v1149 = vadd.f32 %v1145, %v1148
          %s1150 = scalar_lea.vmem [#allocation2], 2720
          %v1151 = vld [vmem:[%s1150] sm:$0xff]
          %v1152 = vmul.f32 %v1151, %v983
          %v1153 = vadd.f32 %v1149, %v1152
          %s1154 = scalar_lea.vmem [#allocation2], 2792
          %v1155 = vld [vmem:[%s1154] sm:$0xff]
          %v1156 = vmul.f32 %v1155, %v1023
          %v1157 = vadd.f32 %v1153, %v1156
          %v1158 = vmul.f32 %v1157, 0.1
          %v1159 = vmax.f32 %v1157, %v1158
          %s1160 = scalar_lea.vmem [#allocation2], 2872
          %v1161 = vld [vmem:[%s1160] sm:$0xff]
          %s1162 = scalar_lea.vmem [#allocation2], 1720
          %v1163 = vld [vmem:[%s1162] sm:$0xff]
          %v1164 = vmul.f32 %v1163, %v423
          %v1165 = vadd.f32 %v1161, %v1164
          %s1166 = scalar_lea.vmem [#allocation2], 1792
          %v1167 = vld [vmem:[%s1166] sm:$0xff]
          %v1168 = vmul.f32 %v1167, %v463
          %v1169 = vadd.f32 %v1165, %v1168
          %s1170 = scalar_lea.vmem [#allocation2], 1864
          %v1171 = vld [vmem:[%s1170] sm:$0xff]
          %v1172 = vmul.f32 %v1171, %v503
          %v1173 = vadd.f32 %v1169, %v1172
          %s1174 = scalar_lea.vmem [#allocation2], 1936
          %v1175 = vld [vmem:[%s1174] sm:$0xff]
          %v1176 = vmul.f32 %v1175, %v543
          %v1177 = vadd.f32 %v1173, %v1176
          %s1178 = scalar_lea.vmem [#allocation2], 2008
          %v1179 = vld [vmem:[%s1178] sm:$0xff]
          %v1180 = vmul.f32 %v1179, %v583
          %v1181 = vadd.f32 %v1177, %v1180
          %s1182 = scalar_lea.vmem [#allocation2], 2080
          %v1183 = vld [vmem:[%s1182] sm:$0xff]
          %v1184 = vmul.f32 %v1183, %v623
          %v1185 = vadd.f32 %v1181, %v1184
          %s1186 = scalar_lea.vmem [#allocation2], 2152
          %v1187 = vld [vmem:[%s1186] sm:$0xff]
          %v1188 = vmul.f32 %v1187, %v663
          %v1189 = vadd.f32 %v1185, %v1188
          %s1190 = scalar_lea.vmem [#allocation2], 2224
          %v1191 = vld [vmem:[%s1190] sm:$0xff]
          %v1192 = vmul.f32 %v1191, %v703
          %v1193 = vadd.f32 %v1189, %v1192
          %s1194 = scalar_lea.vmem [#allocation2], 2296
          %v1195 = vld [vmem:[%s1194] sm:$0xff]
          %v1196 = vmul.f32 %v1195, %v743
          %v1197 = vadd.f32 %v1193, %v1196
          %s1198 = scalar_lea.vmem [#allocation2], 2368
          %v1199 = vld [vmem:[%s1198] sm:$0xff]
          %v1200 = vmul.f32 %v1199, %v783
          %v1201 = vadd.f32 %v1197, %v1200
          %s1202 = scalar_lea.vmem [#allocation2], 2440
          %v1203 = vld [vmem:[%s1202] sm:$0xff]
          %v1204 = vmul.f32 %v1203, %v823
          %v1205 = vadd.f32 %v1201, %v1204
          %s1206 = scalar_lea.vmem [#allocation2], 2512
          %v1207 = vld [vmem:[%s1206] sm:$0xff]
          %v1208 = vmul.f32 %v1207, %v863
          %v1209 = vadd.f32 %v1205, %v1208
          %s1210 = scalar_lea.vmem [#allocation2], 2584
          %v1211 = vld [vmem:[%s1210] sm:$0xff]
          %v1212 = vmul.f32 %v1211, %v903
          %v1213 = vadd.f32 %v1209, %v1212
          %s1214 = scalar_lea.vmem [#allocation2], 2656
          %v1215 = vld [vmem:[%s1214] sm:$0xff]
          %v1216 = vmul.f32 %v1215, %v943
          %v1217 = vadd.f32 %v1213, %v1216
          %s1218 = scalar_lea.vmem [#allocation2], 2728
          %v1219 = vld [vmem:[%s1218] sm:$0xff]
          %v1220 = vmul.f32 %v1219, %v983
          %v1221 = vadd.f32 %v1217, %v1220
          %s1222 = scalar_lea.vmem [#allocation2], 2800
          %v1223 = vld [vmem:[%s1222] sm:$0xff]
          %v1224 = vmul.f32 %v1223, %v1023
          %v1225 = vadd.f32 %v1221, %v1224
          %v1226 = vmul.f32 %v1225, 0.1
          %v1227 = vmax.f32 %v1225, %v1226
          %s1228 = scalar_lea.vmem [#allocation2], 2880
          %v1229 = vld [vmem:[%s1228] sm:$0xff]
          %s1230 = scalar_lea.vmem [#allocation2], 1728
          %v1231 = vld [vmem:[%s1230] sm:$0xff]
          %v1232 = vmul.f32 %v1231, %v423
          %v1233 = vadd.f32 %v1229, %v1232
          %s1234 = scalar_lea.vmem [#allocation2], 1800
          %v1235 = vld [vmem:[%s1234] sm:$0xff]
          %v1236 = vmul.f32 %v1235, %v463
          %v1237 = vadd.f32 %v1233, %v1236
          %s1238 = scalar_lea.vmem [#allocation2], 1872
          %v1239 = vld [vmem:[%s1238] sm:$0xff]
          %v1240 = vmul.f32 %v1239, %v503
          %v1241 = vadd.f32 %v1237, %v1240
          %s1242 = scalar_lea.vmem [#allocation2], 1944
          %v1243 = vld [vmem:[%s1242] sm:$0xff]
          %v1244 = vmul.f32 %v1243, %v543
          %v1245 = vadd.f32 %v1241, %v1244
          %s1246 = scalar_lea.vmem [#allocation2], 2016
          %v1247 = vld [vmem:[%s1246] sm:$0xff]
          %v1248 = vmul.f32 %v1247, %v583
          %v1249 = vadd.f32 %v1245, %v1248
          %s1250 = scalar_lea.vmem [#allocation2], 2088
          %v1251 = vld [vmem:[%s1250] sm:$0xff]
          %v1252 = vmul.f32 %v1251, %v623
          %v1253 = vadd.f32 %v1249, %v1252
          %s1254 = scalar_lea.vmem [#allocation2], 2160
          %v1255 = vld [vmem:[%s1254] sm:$0xff]
          %v1256 = vmul.f32 %v1255, %v663
          %v1257 = vadd.f32 %v1253, %v1256
          %s1258 = scalar_lea.vmem [#allocation2], 2232
          %v1259 = vld [vmem:[%s1258] sm:$0xff]
          %v1260 = vmul.f32 %v1259, %v703
          %v1261 = vadd.f32 %v1257, %v1260
          %s1262 = scalar_lea.vmem [#allocation2], 2304
          %v1263 = vld [vmem:[%s1262] sm:$0xff]
          %v1264 = vmul.f32 %v1263, %v743
          %v1265 = vadd.f32 %v1261, %v1264
          %s1266 = scalar_lea.vmem [#allocation2], 2376
          %v1267 = vld [vmem:[%s1266] sm:$0xff]
          %v1268 = vmul.f32 %v1267, %v783
          %v1269 = vadd.f32 %v1265, %v1268
          %s1270 = scalar_lea.vmem [#allocation2], 2448
          %v1271 = vld [vmem:[%s1270] sm:$0xff]
          %v1272 = vmul.f32 %v1271, %v823
          %v1273 = vadd.f32 %v1269, %v1272
          %s1274 = scalar_lea.vmem [#allocation2], 2520
          %v1275 = vld [vmem:[%s1274] sm:$0xff]
          %v1276 = vmul.f32 %v1275, %v863
          %v1277 = vadd.f32 %v1273, %v1276
          %s1278 = scalar_lea.vmem [#allocation2], 2592
          %v1279 = vld [vmem:[%s1278] sm:$0xff]
          %v1280 = vmul.f32 %v1279, %v903
          %v1281 = vadd.f32 %v1277, %v1280
          %s1282 = scalar_lea.vmem [#allocation2], 2664
          %v1283 = vld [vmem:[%s1282] sm:$0xff]
          %v1284 = vmul.f32 %v1283, %v943
          %v1285 = vadd.f32 %v1281, %v1284
          %s1286 = scalar_lea.vmem [#allocation2], 2736
          %v1287 = vld [vmem:[%s1286] sm:$0xff]
          %v1288 = vmul.f32 %v1287, %v983
          %v1289 = vadd.f32 %v1285, %v1288
          %s1290 = scalar_lea.vmem [#allocation2], 2808
          %v1291 = vld [vmem:[%s1290] sm:$0xff]
          %v1292 = vmul.f32 %v1291, %v1023
          %v1293 = vadd.f32 %v1289, %v1292
          %v1294 = vmul.f32 %v1293, 0.1
          %v1295 = vmax.f32 %v1293, %v1294
          %s1296 = scalar_lea.vmem [#allocation2], 2888
          %v1297 = vld [vmem:[%s1296] sm:$0xff]
          %s1298 = scalar_lea.vmem [#allocation2], 1736
          %v1299 = vld [vmem:[%s1298] sm:$0xff]
          %v1300 = vmul.f32 %v1299, %v423
          %v1301 = vadd.f32 %v1297, %v1300
          %s1302 = scalar_lea.vmem [#allocation2], 1808
          %v1303 = vld [vmem:[%s1302] sm:$0xff]
          %v1304 = vmul.f32 %v1303, %v463
          %v1305 = vadd.f32 %v1301, %v1304
          %s1306 = scalar_lea.vmem [#allocation2], 1880
          %v1307 = vld [vmem:[%s1306] sm:$0xff]
          %v1308 = vmul.f32 %v1307, %v503
          %v1309 = vadd.f32 %v1305, %v1308
          %s1310 = scalar_lea.vmem [#allocation2], 1952
          %v1311 = vld [vmem:[%s1310] sm:$0xff]
          %v1312 = vmul.f32 %v1311, %v543
          %v1313 = vadd.f32 %v1309, %v1312
          %s1314 = scalar_lea.vmem [#allocation2], 2024
          %v1315 = vld [vmem:[%s1314] sm:$0xff]
          %v1316 = vmul.f32 %v1315, %v583
          %v1317 = vadd.f32 %v1313, %v1316
          %s1318 = scalar_lea.vmem [#allocation2], 2096
          %v1319 = vld [vmem:[%s1318] sm:$0xff]
          %v1320 = vmul.f32 %v1319, %v623
          %v1321 = vadd.f32 %v1317, %v1320
          %s1322 = scalar_lea.vmem [#allocation2], 2168
          %v1323 = vld [vmem:[%s1322] sm:$0xff]
          %v1324 = vmul.f32 %v1323, %v663
          %v1325 = vadd.f32 %v1321, %v1324
          %s1326 = scalar_lea.vmem [#allocation2], 2240
          %v1327 = vld [vmem:[%s1326] sm:$0xff]
          %v1328 = vmul.f32 %v1327, %v703
          %v1329 = vadd.f32 %v1325, %v1328
          %s1330 = scalar_lea.vmem [#allocation2], 2312
          %v1331 = vld [vmem:[%s1330] sm:$0xff]
          %v1332 = vmul.f32 %v1331, %v743
          %v1333 = vadd.f32 %v1329, %v1332
          %s1334 = scalar_lea.vmem [#allocation2], 2384
          %v1335 = vld [vmem:[%s1334] sm:$0xff]
          %v1336 = vmul.f32 %v1335, %v783
          %v1337 = vadd.f32 %v1333, %v1336
          %s1338 = scalar_lea.vmem [#allocation2], 2456
          %v1339 = vld [vmem:[%s1338] sm:$0xff]
          %v1340 = vmul.f32 %v1339, %v823
          %v1341 = vadd.f32 %v1337, %v1340
          %s1342 = scalar_lea.vmem [#allocation2], 2528
          %v1343 = vld [vmem:[%s1342] sm:$0xff]
          %v1344 = vmul.f32 %v1343, %v863
          %v1345 = vadd.f32 %v1341, %v1344
          %s1346 = scalar_lea.vmem [#allocation2], 2600
          %v1347 = vld [vmem:[%s1346] sm:$0xff]
          %v1348 = vmul.f32 %v1347, %v903
          %v1349 = vadd.f32 %v1345, %v1348
          %s1350 = scalar_lea.vmem [#allocation2], 2672
          %v1351 = vld [vmem:[%s1350] sm:$0xff]
          %v1352 = vmul.f32 %v1351, %v943
          %v1353 = vadd.f32 %v1349, %v1352
          %s1354 = scalar_lea.vmem [#allocation2], 2744
          %v1355 = vld [vmem:[%s1354] sm:$0xff]
          %v1356 = vmul.f32 %v1355, %v983
          %v1357 = vadd.f32 %v1353, %v1356
          %s1358 = scalar_lea.vmem [#allocation2], 2816
          %v1359 = vld [vmem:[%s1358] sm:$0xff]
          %v1360 = vmul.f32 %v1359, %v1023
          %v1361 = vadd.f32 %v1357, %v1360
          %v1362 = vmul.f32 %v1361, 0.1
          %v1363 = vmax.f32 %v1361, %v1362
          %s1364 = scalar_lea.vmem [#allocation2], 2896
          %v1365 = vld [vmem:[%s1364] sm:$0xff]
          %s1366 = scalar_lea.vmem [#allocation2], 1744
          %v1367 = vld [vmem:[%s1366] sm:$0xff]
          %v1368 = vmul.f32 %v1367, %v423
          %v1369 = vadd.f32 %v1365, %v1368
          %s1370 = scalar_lea.vmem [#allocation2], 1816
          %v1371 = vld [vmem:[%s1370] sm:$0xff]
          %v1372 = vmul.f32 %v1371, %v463
          %v1373 = vadd.f32 %v1369, %v1372
          %s1374 = scalar_lea.vmem [#allocation2], 1888
          %v1375 = vld [vmem:[%s1374] sm:$0xff]
          %v1376 = vmul.f32 %v1375, %v503
          %v1377 = vadd.f32 %v1373, %v1376
          %s1378 = scalar_lea.vmem [#allocation2], 1960
          %v1379 = vld [vmem:[%s1378] sm:$0xff]
          %v1380 = vmul.f32 %v1379, %v543
          %v1381 = vadd.f32 %v1377, %v1380
          %s1382 = scalar_lea.vmem [#allocation2], 2032
          %v1383 = vld [vmem:[%s1382] sm:$0xff]
          %v1384 = vmul.f32 %v1383, %v583
          %v1385 = vadd.f32 %v1381, %v1384
          %s1386 = scalar_lea.vmem [#allocation2], 2104
          %v1387 = vld [vmem:[%s1386] sm:$0xff]
          %v1388 = vmul.f32 %v1387, %v623
          %v1389 = vadd.f32 %v1385, %v1388
          %s1390 = scalar_lea.vmem [#allocation2], 2176
          %v1391 = vld [vmem:[%s1390] sm:$0xff]
          %v1392 = vmul.f32 %v1391, %v663
          %v1393 = vadd.f32 %v1389, %v1392
          %s1394 = scalar_lea.vmem [#allocation2], 2248
          %v1395 = vld [vmem:[%s1394] sm:$0xff]
          %v1396 = vmul.f32 %v1395, %v703
          %v1397 = vadd.f32 %v1393, %v1396
          %s1398 = scalar_lea.vmem [#allocation2], 2320
          %v1399 = vld [vmem:[%s1398] sm:$0xff]
          %v1400 = vmul.f32 %v1399, %v743
          %v1401 = vadd.f32 %v1397, %v1400
          %s1402 = scalar_lea.vmem [#allocation2], 2392
          %v1403 = vld [vmem:[%s1402] sm:$0xff]
          %v1404 = vmul.f32 %v1403, %v783
          %v1405 = vadd.f32 %v1401, %v1404
          %s1406 = scalar_lea.vmem [#allocation2], 2464
          %v1407 = vld [vmem:[%s1406] sm:$0xff]
          %v1408 = vmul.f32 %v1407, %v823
          %v1409 = vadd.f32 %v1405, %v1408
          %s1410 = scalar_lea.vmem [#allocation2], 2536
          %v1411 = vld [vmem:[%s1410] sm:$0xff]
          %v1412 = vmul.f32 %v1411, %v863
          %v1413 = vadd.f32 %v1409, %v1412
          %s1414 = scalar_lea.vmem [#allocation2], 2608
          %v1415 = vld [vmem:[%s1414] sm:$0xff]
          %v1416 = vmul.f32 %v1415, %v903
          %v1417 = vadd.f32 %v1413, %v1416
          %s1418 = scalar_lea.vmem [#allocation2], 2680
          %v1419 = vld [vmem:[%s1418] sm:$0xff]
          %v1420 = vmul.f32 %v1419, %v943
          %v1421 = vadd.f32 %v1417, %v1420
          %s1422 = scalar_lea.vmem [#allocation2], 2752
          %v1423 = vld [vmem:[%s1422] sm:$0xff]
          %v1424 = vmul.f32 %v1423, %v983
          %v1425 = vadd.f32 %v1421, %v1424
          %s1426 = scalar_lea.vmem [#allocation2], 2824
          %v1427 = vld [vmem:[%s1426] sm:$0xff]
          %v1428 = vmul.f32 %v1427, %v1023
          %v1429 = vadd.f32 %v1425, %v1428
          %v1430 = vmul.f32 %v1429, 0.1
          %v1431 = vmax.f32 %v1429, %v1430
          %s1432 = scalar_lea.vmem [#allocation2], 2904
          %v1433 = vld [vmem:[%s1432] sm:$0xff]
          %s1434 = scalar_lea.vmem [#allocation2], 1752
          %v1435 = vld [vmem:[%s1434] sm:$0xff]
          %v1436 = vmul.f32 %v1435, %v423
          %v1437 = vadd.f32 %v1433, %v1436
          %s1438 = scalar_lea.vmem [#allocation2], 1824
          %v1439 = vld [vmem:[%s1438] sm:$0xff]
          %v1440 = vmul.f32 %v1439, %v463
          %v1441 = vadd.f32 %v1437, %v1440
          %s1442 = scalar_lea.vmem [#allocation2], 1896
          %v1443 = vld [vmem:[%s1442] sm:$0xff]
          %v1444 = vmul.f32 %v1443, %v503
          %v1445 = vadd.f32 %v1441, %v1444
          %s1446 = scalar_lea.vmem [#allocation2], 1968
          %v1447 = vld [vmem:[%s1446] sm:$0xff]
          %v1448 = vmul.f32 %v1447, %v543
          %v1449 = vadd.f32 %v1445, %v1448
          %s1450 = scalar_lea.vmem [#allocation2], 2040
          %v1451 = vld [vmem:[%s1450] sm:$0xff]
          %v1452 = vmul.f32 %v1451, %v583
          %v1453 = vadd.f32 %v1449, %v1452
          %s1454 = scalar_lea.vmem [#allocation2], 2112
          %v1455 = vld [vmem:[%s1454] sm:$0xff]
          %v1456 = vmul.f32 %v1455, %v623
          %v1457 = vadd.f32 %v1453, %v1456
          %s1458 = scalar_lea.vmem [#allocation2], 2184
          %v1459 = vld [vmem:[%s1458] sm:$0xff]
          %v1460 = vmul.f32 %v1459, %v663
          %v1461 = vadd.f32 %v1457, %v1460
          %s1462 = scalar_lea.vmem [#allocation2], 2256
          %v1463 = vld [vmem:[%s1462] sm:$0xff]
          %v1464 = vmul.f32 %v1463, %v703
          %v1465 = vadd.f32 %v1461, %v1464
          %s1466 = scalar_lea.vmem [#allocation2], 2328
          %v1467 = vld [vmem:[%s1466] sm:$0xff]
          %v1468 = vmul.f32 %v1467, %v743
          %v1469 = vadd.f32 %v1465, %v1468
          %s1470 = scalar_lea.vmem [#allocation2], 2400
          %v1471 = vld [vmem:[%s1470] sm:$0xff]
          %v1472 = vmul.f32 %v1471, %v783
          %v1473 = vadd.f32 %v1469, %v1472
          %s1474 = scalar_lea.vmem [#allocation2], 2472
          %v1475 = vld [vmem:[%s1474] sm:$0xff]
          %v1476 = vmul.f32 %v1475, %v823
          %v1477 = vadd.f32 %v1473, %v1476
          %s1478 = scalar_lea.vmem [#allocation2], 2544
          %v1479 = vld [vmem:[%s1478] sm:$0xff]
          %v1480 = vmul.f32 %v1479, %v863
          %v1481 = vadd.f32 %v1477, %v1480
          %s1482 = scalar_lea.vmem [#allocation2], 2616
          %v1483 = vld [vmem:[%s1482] sm:$0xff]
          %v1484 = vmul.f32 %v1483, %v903
          %v1485 = vadd.f32 %v1481, %v1484
          %s1486 = scalar_lea.vmem [#allocation2], 2688
          %v1487 = vld [vmem:[%s1486] sm:$0xff]
          %v1488 = vmul.f32 %v1487, %v943
          %v1489 = vadd.f32 %v1485, %v1488
          %s1490 = scalar_lea.vmem [#allocation2], 2760
          %v1491 = vld [vmem:[%s1490] sm:$0xff]
          %v1492 = vmul.f32 %v1491, %v983
          %v1493 = vadd.f32 %v1489, %v1492
          %s1494 = scalar_lea.vmem [#allocation2], 2832
          %v1495 = vld [vmem:[%s1494] sm:$0xff]
          %v1496 = vmul.f32 %v1495, %v1023
          %v1497 = vadd.f32 %v1493, %v1496
          %v1498 = vmul.f32 %v1497, 0.1
          %v1499 = vmax.f32 %v1497, %v1498
          %s1500 = scalar_lea.vmem [#allocation2], 2912
          %v1501 = vld [vmem:[%s1500] sm:$0xff]
          %s1502 = scalar_lea.vmem [#allocation2], 1760
          %v1503 = vld [vmem:[%s1502] sm:$0xff]
          %v1504 = vmul.f32 %v1503, %v423
          %v1505 = vadd.f32 %v1501, %v1504
          %s1506 = scalar_lea.vmem [#allocation2], 1832
          %v1507 = vld [vmem:[%s1506] sm:$0xff]
          %v1508 = vmul.f32 %v1507, %v463
          %v1509 = vadd.f32 %v1505, %v1508
          %s1510 = scalar_lea.vmem [#allocation2], 1904
          %v1511 = vld [vmem:[%s1510] sm:$0xff]
          %v1512 = vmul.f32 %v1511, %v503
          %v1513 = vadd.f32 %v1509, %v1512
          %s1514 = scalar_lea.vmem [#allocation2], 1976
          %v1515 = vld [vmem:[%s1514] sm:$0xff]
          %v1516 = vmul.f32 %v1515, %v543
          %v1517 = vadd.f32 %v1513, %v1516
          %s1518 = scalar_lea.vmem [#allocation2], 2048
          %v1519 = vld [vmem:[%s1518] sm:$0xff]
          %v1520 = vmul.f32 %v1519, %v583
          %v1521 = vadd.f32 %v1517, %v1520
          %s1522 = scalar_lea.vmem [#allocation2], 2120
          %v1523 = vld [vmem:[%s1522] sm:$0xff]
          %v1524 = vmul.f32 %v1523, %v623
          %v1525 = vadd.f32 %v1521, %v1524
          %s1526 = scalar_lea.vmem [#allocation2], 2192
          %v1527 = vld [vmem:[%s1526] sm:$0xff]
          %v1528 = vmul.f32 %v1527, %v663
          %v1529 = vadd.f32 %v1525, %v1528
          %s1530 = scalar_lea.vmem [#allocation2], 2264
          %v1531 = vld [vmem:[%s1530] sm:$0xff]
          %v1532 = vmul.f32 %v1531, %v703
          %v1533 = vadd.f32 %v1529, %v1532
          %s1534 = scalar_lea.vmem [#allocation2], 2336
          %v1535 = vld [vmem:[%s1534] sm:$0xff]
          %v1536 = vmul.f32 %v1535, %v743
          %v1537 = vadd.f32 %v1533, %v1536
          %s1538 = scalar_lea.vmem [#allocation2], 2408
          %v1539 = vld [vmem:[%s1538] sm:$0xff]
          %v1540 = vmul.f32 %v1539, %v783
          %v1541 = vadd.f32 %v1537, %v1540
          %s1542 = scalar_lea.vmem [#allocation2], 2480
          %v1543 = vld [vmem:[%s1542] sm:$0xff]
          %v1544 = vmul.f32 %v1543, %v823
          %v1545 = vadd.f32 %v1541, %v1544
          %s1546 = scalar_lea.vmem [#allocation2], 2552
          %v1547 = vld [vmem:[%s1546] sm:$0xff]
          %v1548 = vmul.f32 %v1547, %v863
          %v1549 = vadd.f32 %v1545, %v1548
          %s1550 = scalar_lea.vmem [#allocation2], 2624
          %v1551 = vld [vmem:[%s1550] sm:$0xff]
          %v1552 = vmul.f32 %v1551, %v903
          %v1553 = vadd.f32 %v1549, %v1552
          %s1554 = scalar_lea.vmem [#allocation2], 2696
          %v1555 = vld [vmem:[%s1554] sm:$0xff]
          %v1556 = vmul.f32 %v1555, %v943
          %v1557 = vadd.f32 %v1553, %v1556
          %s1558 = scalar_lea.vmem [#allocation2], 2768
          %v1559 = vld [vmem:[%s1558] sm:$0xff]
          %v1560 = vmul.f32 %v1559, %v983
          %v1561 = vadd.f32 %v1557, %v1560
          %s1562 = scalar_lea.vmem [#allocation2], 2840
          %v1563 = vld [vmem:[%s1562] sm:$0xff]
          %v1564 = vmul.f32 %v1563, %v1023
          %v1565 = vadd.f32 %v1561, %v1564
          %v1566 = vmul.f32 %v1565, 0.1
          %v1567 = vmax.f32 %v1565, %v1566
          %s1568 = scalar_lea.vmem [#allocation2], 2920
          %v1569 = vld [vmem:[%s1568] sm:$0xff]
          %s1570 = scalar_lea.vmem [#allocation2], 1768
          %v1571 = vld [vmem:[%s1570] sm:$0xff]
          %v1572 = vmul.f32 %v1571, %v423
          %v1573 = vadd.f32 %v1569, %v1572
          %s1574 = scalar_lea.vmem [#allocation2], 1840
          %v1575 = vld [vmem:[%s1574] sm:$0xff]
          %v1576 = vmul.f32 %v1575, %v463
          %v1577 = vadd.f32 %v1573, %v1576
          %s1578 = scalar_lea.vmem [#allocation2], 1912
          %v1579 = vld [vmem:[%s1578] sm:$0xff]
          %v1580 = vmul.f32 %v1579, %v503
          %v1581 = vadd.f32 %v1577, %v1580
          %s1582 = scalar_lea.vmem [#allocation2], 1984
          %v1583 = vld [vmem:[%s1582] sm:$0xff]
          %v1584 = vmul.f32 %v1583, %v543
          %v1585 = vadd.f32 %v1581, %v1584
          %s1586 = scalar_lea.vmem [#allocation2], 2056
          %v1587 = vld [vmem:[%s1586] sm:$0xff]
          %v1588 = vmul.f32 %v1587, %v583
          %v1589 = vadd.f32 %v1585, %v1588
          %s1590 = scalar_lea.vmem [#allocation2], 2128
          %v1591 = vld [vmem:[%s1590] sm:$0xff]
          %v1592 = vmul.f32 %v1591, %v623
          %v1593 = vadd.f32 %v1589, %v1592
          %s1594 = scalar_lea.vmem [#allocation2], 2200
          %v1595 = vld [vmem:[%s1594] sm:$0xff]
          %v1596 = vmul.f32 %v1595, %v663
          %v1597 = vadd.f32 %v1593, %v1596
          %s1598 = scalar_lea.vmem [#allocation2], 2272
          %v1599 = vld [vmem:[%s1598] sm:$0xff]
          %v1600 = vmul.f32 %v1599, %v703
          %v1601 = vadd.f32 %v1597, %v1600
          %s1602 = scalar_lea.vmem [#allocation2], 2344
          %v1603 = vld [vmem:[%s1602] sm:$0xff]
          %v1604 = vmul.f32 %v1603, %v743
          %v1605 = vadd.f32 %v1601, %v1604
          %s1606 = scalar_lea.vmem [#allocation2], 2416
          %v1607 = vld [vmem:[%s1606] sm:$0xff]
          %v1608 = vmul.f32 %v1607, %v783
          %v1609 = vadd.f32 %v1605, %v1608
          %s1610 = scalar_lea.vmem [#allocation2], 2488
          %v1611 = vld [vmem:[%s1610] sm:$0xff]
          %v1612 = vmul.f32 %v1611, %v823
          %v1613 = vadd.f32 %v1609, %v1612
          %s1614 = scalar_lea.vmem [#allocation2], 2560
          %v1615 = vld [vmem:[%s1614] sm:$0xff]
          %v1616 = vmul.f32 %v1615, %v863
          %v1617 = vadd.f32 %v1613, %v1616
          %s1618 = scalar_lea.vmem [#allocation2], 2632
          %v1619 = vld [vmem:[%s1618] sm:$0xff]
          %v1620 = vmul.f32 %v1619, %v903
          %v1621 = vadd.f32 %v1617, %v1620
          %s1622 = scalar_lea.vmem [#allocation2], 2704
          %v1623 = vld [vmem:[%s1622] sm:$0xff]
          %v1624 = vmul.f32 %v1623, %v943
          %v1625 = vadd.f32 %v1621, %v1624
          %s1626 = scalar_lea.vmem [#allocation2], 2776
          %v1627 = vld [vmem:[%s1626] sm:$0xff]
          %v1628 = vmul.f32 %v1627, %v983
          %v1629 = vadd.f32 %v1625, %v1628
          %s1630 = scalar_lea.vmem [#allocation2], 2848
          %v1631 = vld [vmem:[%s1630] sm:$0xff]
          %v1632 = vmul.f32 %v1631, %v1023
          %v1633 = vadd.f32 %v1629, %v1632
          %v1634 = vmul.f32 %v1633, 0.1
          %v1635 = vmax.f32 %v1633, %v1634
          %s1636 = scalar_lea.vmem [#allocation2], 3216
          %v1637 = vld [vmem:[%s1636] sm:$0xff]
          %s1638 = scalar_lea.vmem [#allocation2], 2928
          %v1639 = vld [vmem:[%s1638] sm:$0xff]
          %v1640 = vmul.f32 %v1639, %v1091
          %v1641 = vadd.f32 %v1637, %v1640
          %s1642 = scalar_lea.vmem [#allocation2], 2960
          %v1643 = vld [vmem:[%s1642] sm:$0xff]
          %v1644 = vmul.f32 %v1643, %v1159
          %v1645 = vadd.f32 %v1641, %v1644
          %s1646 = scalar_lea.vmem [#allocation2], 2992
          %v1647 = vld [vmem:[%s1646] sm:$0xff]
          %v1648 = vmul.f32 %v1647, %v1227
          %v1649 = vadd.f32 %v1645, %v1648
          %s1650 = scalar_lea.vmem [#allocation2], 3024
          %v1651 = vld [vmem:[%s1650] sm:$0xff]
          %v1652 = vmul.f32 %v1651, %v1295
          %v1653 = vadd.f32 %v1649, %v1652
          %s1654 = scalar_lea.vmem [#allocation2], 3056
          %v1655 = vld [vmem:[%s1654] sm:$0xff]
          %v1656 = vmul.f32 %v1655, %v1363
          %v1657 = vadd.f32 %v1653, %v1656
          %s1658 = scalar_lea.vmem [#allocation2], 3088
          %v1659 = vld [vmem:[%s1658] sm:$0xff]
          %v1660 = vmul.f32 %v1659, %v1431
          %v1661 = vadd.f32 %v1657, %v1660
          %s1662 = scalar_lea.vmem [#allocation2], 3120
          %v1663 = vld [vmem:[%s1662] sm:$0xff]
          %v1664 = vmul.f32 %v1663, %v1499
          %v1665 = vadd.f32 %v1661, %v1664
          %s1666 = scalar_lea.vmem [#allocation2], 3152
          %v1667 = vld [vmem:[%s1666] sm:$0xff]
          %v1668 = vmul.f32 %v1667, %v1567
          %v1669 = vadd.f32 %v1665, %v1668
          %s1670 = scalar_lea.vmem [#allocation2], 3184
          %v1671 = vld [vmem:[%s1670] sm:$0xff]
          %v1672 = vmul.f32 %v1671, %v1635
          %v1673 = vadd.f32 %v1669, %v1672
          %v1674 = vmul.f32 %v1673, 0.1
          %v1675 = vmax.f32 %v1673, %v1674
          %s1676 = scalar_lea.vmem [#allocation2], 3224
          %v1677 = vld [vmem:[%s1676] sm:$0xff]
          %s1678 = scalar_lea.vmem [#allocation2], 2936
          %v1679 = vld [vmem:[%s1678] sm:$0xff]
          %v1680 = vmul.f32 %v1679, %v1091
          %v1681 = vadd.f32 %v1677, %v1680
          %s1682 = scalar_lea.vmem [#allocation2], 2968
          %v1683 = vld [vmem:[%s1682] sm:$0xff]
          %v1684 = vmul.f32 %v1683, %v1159
          %v1685 = vadd.f32 %v1681, %v1684
          %s1686 = scalar_lea.vmem [#allocation2], 3000
          %v1687 = vld [vmem:[%s1686] sm:$0xff]
          %v1688 = vmul.f32 %v1687, %v1227
          %v1689 = vadd.f32 %v1685, %v1688
          %s1690 = scalar_lea.vmem [#allocation2], 3032
          %v1691 = vld [vmem:[%s1690] sm:$0xff]
          %v1692 = vmul.f32 %v1691, %v1295
          %v1693 = vadd.f32 %v1689, %v1692
          %s1694 = scalar_lea.vmem [#allocation2], 3064
          %v1695 = vld [vmem:[%s1694] sm:$0xff]
          %v1696 = vmul.f32 %v1695, %v1363
          %v1697 = vadd.f32 %v1693, %v1696
          %s1698 = scalar_lea.vmem [#allocation2], 3096
          %v1699 = vld [vmem:[%s1698] sm:$0xff]
          %v1700 = vmul.f32 %v1699, %v1431
          %v1701 = vadd.f32 %v1697, %v1700
          %s1702 = scalar_lea.vmem [#allocation2], 3128
          %v1703 = vld [vmem:[%s1702] sm:$0xff]
          %v1704 = vmul.f32 %v1703, %v1499
          %v1705 = vadd.f32 %v1701, %v1704
          %s1706 = scalar_lea.vmem [#allocation2], 3160
          %v1707 = vld [vmem:[%s1706] sm:$0xff]
          %v1708 = vmul.f32 %v1707, %v1567
          %v1709 = vadd.f32 %v1705, %v1708
          %s1710 = scalar_lea.vmem [#allocation2], 3192
          %v1711 = vld [vmem:[%s1710] sm:$0xff]
          %v1712 = vmul.f32 %v1711, %v1635
          %v1713 = vadd.f32 %v1709, %v1712
          %v1714 = vmul.f32 %v1713, 0.1
          %v1715 = vmax.f32 %v1713, %v1714
          %s1716 = scalar_lea.vmem [#allocation2], 3232
          %v1717 = vld [vmem:[%s1716] sm:$0xff]
          %s1718 = scalar_lea.vmem [#allocation2], 2944
          %v1719 = vld [vmem:[%s1718] sm:$0xff]
          %v1720 = vmul.f32 %v1719, %v1091
          %v1721 = vadd.f32 %v1717, %v1720
          %s1722 = scalar_lea.vmem [#allocation2], 2976
          %v1723 = vld [vmem:[%s1722] sm:$0xff]
          %v1724 = vmul.f32 %v1723, %v1159
          %v1725 = vadd.f32 %v1721, %v1724
          %s1726 = scalar_lea.vmem [#allocation2], 3008
          %v1727 = vld [vmem:[%s1726] sm:$0xff]
          %v1728 = vmul.f32 %v1727, %v1227
          %v1729 = vadd.f32 %v1725, %v1728
          %s1730 = scalar_lea.vmem [#allocation2], 3040
          %v1731 = vld [vmem:[%s1730] sm:$0xff]
          %v1732 = vmul.f32 %v1731, %v1295
          %v1733 = vadd.f32 %v1729, %v1732
          %s1734 = scalar_lea.vmem [#allocation2], 3072
          %v1735 = vld [vmem:[%s1734] sm:$0xff]
          %v1736 = vmul.f32 %v1735, %v1363
          %v1737 = vadd.f32 %v1733, %v1736
          %s1738 = scalar_lea.vmem [#allocation2], 3104
          %v1739 = vld [vmem:[%s1738] sm:$0xff]
          %v1740 = vmul.f32 %v1739, %v1431
          %v1741 = vadd.f32 %v1737, %v1740
          %s1742 = scalar_lea.vmem [#allocation2], 3136
          %v1743 = vld [vmem:[%s1742] sm:$0xff]
          %v1744 = vmul.f32 %v1743, %v1499
          %v1745 = vadd.f32 %v1741, %v1744
          %s1746 = scalar_lea.vmem [#allocation2], 3168
          %v1747 = vld [vmem:[%s1746] sm:$0xff]
          %v1748 = vmul.f32 %v1747, %v1567
          %v1749 = vadd.f32 %v1745, %v1748
          %s1750 = scalar_lea.vmem [#allocation2], 3200
          %v1751 = vld [vmem:[%s1750] sm:$0xff]
          %v1752 = vmul.f32 %v1751, %v1635
          %v1753 = vadd.f32 %v1749, %v1752
          %v1754 = vmul.f32 %v1753, 0.1
          %v1755 = vmax.f32 %v1753, %v1754
          %s1756 = scalar_lea.vmem [#allocation2], 3240
          %v1757 = vld [vmem:[%s1756] sm:$0xff]
          %s1758 = scalar_lea.vmem [#allocation2], 2952
          %v1759 = vld [vmem:[%s1758] sm:$0xff]
          %v1760 = vmul.f32 %v1759, %v1091
          %v1761 = vadd.f32 %v1757, %v1760
          %s1762 = scalar_lea.vmem [#allocation2], 2984
          %v1763 = vld [vmem:[%s1762] sm:$0xff]
          %v1764 = vmul.f32 %v1763, %v1159
          %v1765 = vadd.f32 %v1761, %v1764
          %s1766 = scalar_lea.vmem [#allocation2], 3016
          %v1767 = vld [vmem:[%s1766] sm:$0xff]
          %v1768 = vmul.f32 %v1767, %v1227
          %v1769 = vadd.f32 %v1765, %v1768
          %s1770 = scalar_lea.vmem [#allocation2], 3048
          %v1771 = vld [vmem:[%s1770] sm:$0xff]
          %v1772 = vmul.f32 %v1771, %v1295
          %v1773 = vadd.f32 %v1769, %v1772
          %s1774 = scalar_lea.vmem [#allocation2], 3080
          %v1775 = vld [vmem:[%s1774] sm:$0xff]
          %v1776 = vmul.f32 %v1775, %v1363
          %v1777 = vadd.f32 %v1773, %v1776
          %s1778 = scalar_lea.vmem [#allocation2], 3112
          %v1779 = vld [vmem:[%s1778] sm:$0xff]
          %v1780 = vmul.f32 %v1779, %v1431
          %v1781 = vadd.f32 %v1777, %v1780
          %s1782 = scalar_lea.vmem [#allocation2], 3144
          %v1783 = vld [vmem:[%s1782] sm:$0xff]
          %v1784 = vmul.f32 %v1783, %v1499
          %v1785 = vadd.f32 %v1781, %v1784
          %s1786 = scalar_lea.vmem [#allocation2], 3176
          %v1787 = vld [vmem:[%s1786] sm:$0xff]
          %v1788 = vmul.f32 %v1787, %v1567
          %v1789 = vadd.f32 %v1785, %v1788
          %s1790 = scalar_lea.vmem [#allocation2], 3208
          %v1791 = vld [vmem:[%s1790] sm:$0xff]
          %v1792 = vmul.f32 %v1791, %v1635
          %v1793 = vadd.f32 %v1789, %v1792
          %v1794 = vmul.f32 %v1793, 0.1
          %v1795 = vmax.f32 %v1793, %v1794
          %s1796 = scalar_lea.vmem [#allocation2], 3280
          %v1797 = vld [vmem:[%s1796] sm:$0xff]
          %s1798 = scalar_lea.vmem [#allocation2], 3248
          %v1799 = vld [vmem:[%s1798] sm:$0xff]
          %v1800 = vmul.f32 %v1799, %v1675
          %v1801 = vadd.f32 %v1797, %v1800
          %s1802 = scalar_lea.vmem [#allocation2], 3256
          %v1803 = vld [vmem:[%s1802] sm:$0xff]
          %v1804 = vmul.f32 %v1803, %v1715
          %v1805 = vadd.f32 %v1801, %v1804
          %s1806 = scalar_lea.vmem [#allocation2], 3264
          %v1807 = vld [vmem:[%s1806] sm:$0xff]
          %v1808 = vmul.f32 %v1807, %v1755
          %v1809 = vadd.f32 %v1805, %v1808
          %s1810 = scalar_lea.vmem [#allocation2], 3272
          %v1811 = vld [vmem:[%s1810] sm:$0xff]
          %v1812 = vmul.f32 %v1811, %v1795
          %v1813 = vadd.f32 %v1809, %v1812
          %s1814 = smul.addr %s168, 8
          %s1815 = scalar_lea.vmem %s160, %s1814
          %1816 = vst [vmem:[%s1815] sm:$0xff] %v1813
        $region37: #{net_forward.1} parent=27 // loop_footer
          %s166 = sadd.s32 1, %s162
        $region38: #{net_forward.1} parent=27 // loop_footer_branch
          %161 = sbr.rel target = $region34
        $region39: #{net_forward.1} parent=27 // loop_exit
          _
        %p1817 = scmp.lt.s32.totalorder %s14, 1
        %s1818 = scalar_select %p1817, %s14, 1
        %s1819 = smul.addr %s1818, 3
        %s1820 = smul.addr %s1819, 8
        %s1821 = scalar_lea.vmem %s2, %s1820
        // Predicated region
        $region40: #{net_forward.1} parent=27 // pred_check
          %p1822 = pneg %p79
        $region41: #{net_forward.1} parent=27 // pred_check_branch
          %1824 = sbr.rel (%p1822) target = $region43
        $region42: #{net_forward.1} parent=27 // pred_region
          _
        $region43: #{net_forward.1} parent=27 // pred_fallthru
          _
      $region28: #{net_forward.1} parent=5 // pred_fallthru
        _
      %p1825 = scmp.le.s32.totalorder 2, %s9
      // Predicated region
      $region44: #{net_forward.1} parent=5 // pred_check
        %p1826 = pneg %p1825
      $region45: #{net_forward.1} parent=5 // pred_check_branch
        %1828 = sbr.rel (%p1826) target = $region47
      $region46: #{net_forward.1} parent=5 // pred_region
        %s1829 = ssub.s32 %s9, 2
        // Predicated region
        $region48: #{net_forward.1} parent=46 // pred_check
          %p1830 = pneg %p85
        $region49: #{net_forward.1} parent=46 // pred_check_branch
          %1832 = sbr.rel (%p1830) target = $region51
        $region50: #{net_forward.1} parent=46 // pred_region
          %p1833 = scmp.lt.s32.totalorder %s15, 1
          %s1834 = scalar_select %p1833, %s15, 1
          %s1835 = smul.addr %s1834, 3
          %s1836 = smul.addr %s1835, 8
          %s1837 = scalar_lea.vmem %s2, %s1836
        $region51: #{net_forward.1} parent=46 // pred_fallthru
          _
      $region47: #{net_forward.1} parent=5 // pred_fallthru
        _
    $region6: #{net_forward.1} parent=1 // loop_footer
      %s13 = sadd.s32 1, %s9
    $region7: #{net_forward.1} parent=1 // loop_footer_branch
      %8 = sbr.rel target = $region3
    $region8: #{net_forward.1} parent=1 // loop_exit
      _
    %1838 = vsyncpa [#allocation3], 1
    %s1839 = scalar_lea.sflag [#allocation3], 1
    %1840 = vsyncpa %s1839, 1

</llo_original>
